<compile_context>
chip_gen: v7x
topology: tpu7x:2x2x1
jax: 0.10.0
libtpu: 0.0.40
codegen_flags: <defaults>
</compile_context>

<pallas_src>
import jax
import jax.numpy as jnp
from jax import lax
from jax.experimental import pallas as pl
from jax.experimental.pallas import tpu as pltpu

# ----- model / problem sizes (small, consistent with the module) ------------
VOCAB = 16          # amino-acid vocabulary
EMBED = 32          # embedding_size
LSTM = 32           # lstm_size (hidden units per direction)
LAYERS = 2          # lstm_layers
B = 2               # batch
L = 8               # padded sequence length
BL = B * L
H4 = 4 * LSTM       # per-direction stacked gate width (i,f,g,o) = 128
G = 2 * H4          # fwd+rev interleaved gate width = 256 (lane-dense)
HEAD_N = 128        # fused head output padded to a full vreg lane width


# ----------------------------- fused kernel ---------------------------------
def bilstm_kernel(seq_ref, table_ref,
                  w_ih0_ref, w_hh0_ref, b0_ref,
                  w_ih1_ref, w_hh1_ref, b1_ref,
                  w_head_ref, b_head_ref,
                  emb_ref, head_ref,
                  hbuf0, hbuf1):
    f32 = jnp.float32

    # ---------------- embedding lookup, both sequences at once --------------
    tok = seq_ref[...]                                          # (1, BL) int32
    iota_v = lax.broadcasted_iota(jnp.int32, (VOCAB, BL), 0)    # (V, BL)
    onehot_t = (iota_v == tok).astype(f32)                      # (V, BL)
    x = lax.dot_general(onehot_t, table_ref[...],
                        (((0,), (0,)), ((), ())),
                        preferred_element_type=f32)             # (BL, E)
    emb_ref[...] = x

    # ---------------- packed-sequence masks, hoisted out of the loop --------
    # lengths = count of non-zero tokens (same rule as the PyTorch forward)
    nz = (tok != 0).astype(jnp.int32)                           # (1, BL)
    len0 = jnp.sum(nz[:, 0:L], axis=1, keepdims=True)           # (1, 1)
    len1 = jnp.sum(nz[:, L:BL], axis=1, keepdims=True)
    step = lax.broadcasted_iota(jnp.int32, (1, L), 1)           # 0..L-1
    rstep = (L - 1) - step                                      # reverse-stream time
    mask_steps = jnp.concatenate(                               # rows: b0f,b1f,b0r,b1r
        [(step < len0).astype(f32), (step < len1).astype(f32),
         (rstep < len0).astype(f32), (rstep < len1).astype(f32)],
        axis=0)                                                 # (4, L)

    # gate-lane helpers over the interleaved layout [i_f i_r|f_f f_r|g_f g_r|o_f o_r]
    lane = lax.broadcasted_iota(jnp.int32, (4, G), 1)
    is_g = jnp.logical_and(lane >= 4 * LSTM, lane < 6 * LSTM)   # g-gate lanes
    half = jnp.where(is_g, jnp.float32(1.0), jnp.float32(0.5))  # tanh-vs-sigmoid prescale

    layer_params = [(w_ih0_ref, w_hh0_ref, b0_ref, hbuf0),
                    (w_ih1_ref, w_hh1_ref, b1_ref, hbuf1)]

    for (w_ih_ref, w_hh_ref, b_ref, hbuf) in layer_params:      # static, 2 layers
        w_hh = w_hh_ref[...]                                    # (2H, G) block-diagonal

        # fused input->gate projection: both batches + both directions at once
        xg = jnp.dot(x, w_ih_ref[...],
                     preferred_element_type=f32) + b_ref[...]   # (BL, G)

        # 4 streams: rows = [b0 fwd, b1 fwd, b0 rev, b1 rev]
        # fwd streams live in lanes [0:H] of h/c, rev streams in lanes [H:2H]
        h = jnp.zeros((4, 2 * LSTM), f32)
        c = jnp.zeros((4, 2 * LSTM), f32)

        for s in range(L):                                      # static unroll, L = 8
            # per-step gate inputs (reverse streams read time index L-1-s);
            # independent of h -> scheduled off the recurrent critical path
            gx = jnp.concatenate(
                [xg[s:s + 1, :], xg[L + s:L + s + 1, :],
                 xg[L - 1 - s:L - s, :], xg[2 * L - 1 - s:2 * L - s, :]],
                axis=0)                                         # (4, G)
            mb = jnp.broadcast_to(mask_steps[:, s:s + 1], (4, 2 * LSTM))

            gates = gx + jnp.dot(h, w_hh, preferred_element_type=f32)   # (4, G)
            # one EUP pass: sigmoid(z) = 0.5*(1 + tanh(z/2)); tanh(z) on g lanes
            t = jnp.tanh(gates * half)
            act = jnp.where(is_g, t, 0.5 + 0.5 * t)
            i_g = act[:, 0 * LSTM:2 * LSTM]
            f_g = act[:, 2 * LSTM:4 * LSTM]
            g_g = act[:, 4 * LSTM:6 * LSTM]
            o_g = act[:, 6 * LSTM:8 * LSTM]

            c_new = f_g * c + i_g * g_g
            h_new = o_g * jnp.tanh(c_new)

            # packed-sequence semantics: freeze state / zero output when invalid
            c = c + mb * (c_new - c)
            h = h + mb * (h_new - h)
            out = mb * h_new                                    # (4, 2H)

            # scatter into the (BL, 2H) layer-output scratch (reverse rows
            # un-reversed here), ready as a lane-dense next-layer input
            hbuf[s:s + 1, 0:LSTM] = out[0:1, 0:LSTM]
            hbuf[L + s:L + s + 1, 0:LSTM] = out[1:2, 0:LSTM]
            hbuf[L - 1 - s:L - s, LSTM:2 * LSTM] = out[2:3, LSTM:2 * LSTM]
            hbuf[2 * L - 1 - s:2 * L - s, LSTM:2 * LSTM] = out[3:4, LSTM:2 * LSTM]

        x = hbuf[...]                                           # (BL, 2H)

    # ---------------- fused encoder+decoder heads, one matmul ----------------
    # columns [0:E] = encoding, [E:E+V] = decoding, rest zero padding
    head_ref[...] = jnp.dot(x, w_head_ref[...],
                            preferred_element_type=f32) + b_head_ref[...]


# ----------------------------- wrapper ---------------------------------------
def bilstm_forward(sequences, params):
    """Returns (embedding, encoding, decoding), mirroring the PyTorch module."""
    seq2d = sequences.reshape(1, BL).astype(jnp.int32)
    vmem = pl.BlockSpec(memory_space=pltpu.MemorySpace.VMEM)
    out_shapes = (
        jax.ShapeDtypeStruct((BL, EMBED), jnp.float32),    # embedding (flat)
        jax.ShapeDtypeStruct((BL, HEAD_N), jnp.float32),   # [encoding | decoding | pad]
    )
    emb_flat, head_flat = pl.pallas_call(
        bilstm_kernel,
        out_shape=out_shapes,
        in_specs=[vmem] * 10,
        out_specs=(vmem, vmem),
        scratch_shapes=[pltpu.VMEM((BL, 2 * LSTM), jnp.float32),   # layer-0 outputs
                        pltpu.VMEM((BL, 2 * LSTM), jnp.float32)],  # layer-1 outputs
    )(seq2d, params["table"],
      params["w_ih0"], params["w_hh0"], params["b0"],
      params["w_ih1"], params["w_hh1"], params["b1"],
      params["w_head"], params["b_head"])

    embedding = emb_flat.reshape(B, L, EMBED)
    encoding = head_flat[:, 0:EMBED].reshape(B, L, EMBED)
    decoding = head_flat[:, EMBED:EMBED + VOCAB].reshape(B, L, VOCAB)
    return embedding, encoding, decoding


# ------------------------ deterministic parameter setup ----------------------
def init_params(key):
    ks = iter(jax.random.split(key, 64))

    def rnd(shape, scale=0.1):
        return (scale * jax.random.normal(next(ks), shape)).astype(jnp.float32)

    table = rnd((VOCAB, EMBED), 1.0)
    table = table.at[0].set(0.0)            # nn.Embedding padding_idx=0

    def interleave(wf_t, wr_t):
        # (rows, 4H) fwd/rev -> (rows, 2*4H) with columns [i_f i_r|f_f f_r|g_f g_r|o_f o_r]
        cols = []
        for g in range(4):
            cols.append(wf_t[:, g * LSTM:(g + 1) * LSTM])
            cols.append(wr_t[:, g * LSTM:(g + 1) * LSTM])
        return jnp.concatenate(cols, axis=1)

    params = {"table": table}
    for layer in range(LAYERS):
        d_in = EMBED if layer == 0 else 2 * LSTM
        # PyTorch layout: weight_ih (4H, Din), weight_hh (4H, H), gate order i,f,g,o
        w_ih_f, w_ih_r = rnd((H4, d_in)), rnd((H4, d_in))
        w_hh_f, w_hh_r = rnd((H4, LSTM)), rnd((H4, LSTM))
        b_f = rnd((H4,)) + rnd((H4,))       # b_ih + b_hh (forward)
        b_r = rnd((H4,)) + rnd((H4,))       # b_ih + b_hh (reverse)

        params[f"w_ih{layer}"] = interleave(w_ih_f.T, w_ih_r.T)         # (Din, 256)
        params[f"b{layer}"] = interleave(b_f[None, :], b_r[None, :])    # (1, 256)

        # block-diagonal recurrent weight: rows [0:H] -> fwd gate columns,
        # rows [H:2H] -> rev gate columns, so one (4,2H)@(2H,256) matmul applies
        # the correct per-direction W_hh to each stream.
        w_hh = jnp.zeros((2 * LSTM, G), jnp.float32)
        wfT, wrT = w_hh_f.T, w_hh_r.T
        for g in range(4):
            w_hh = w_hh.at[0:LSTM, (2 * g) * LSTM:(2 * g + 1) * LSTM].set(
                wfT[:, g * LSTM:(g + 1) * LSTM])
            w_hh = w_hh.at[LSTM:2 * LSTM, (2 * g + 1) * LSTM:(2 * g + 2) * LSTM].set(
                wrT[:, g * LSTM:(g + 1) * LSTM])
        params[f"w_hh{layer}"] = w_hh

    # fused encoder/decoder heads (no nonlinearity between them), zero-padded
    # to 128 columns so the kernel emits one lane-dense output store.
    w_enc, b_enc = rnd((EMBED, 2 * LSTM)), rnd((EMBED,))     # torch Linear layouts
    w_dec, b_dec = rnd((VOCAB, EMBED)), rnd((VOCAB,))
    a_enc = w_enc.T                                          # (2H, E)
    a_dec = a_enc @ w_dec.T                                  # (2H, V)
    b_dec_fused = b_enc @ w_dec.T + b_dec                    # (V,)
    w_head = jnp.zeros((2 * LSTM, HEAD_N), jnp.float32)
    w_head = w_head.at[:, 0:EMBED].set(a_enc)
    w_head = w_head.at[:, EMBED:EMBED + VOCAB].set(a_dec)
    b_head = jnp.zeros((1, HEAD_N), jnp.float32)
    b_head = b_head.at[0, 0:EMBED].set(b_enc)
    b_head = b_head.at[0, EMBED:EMBED + VOCAB].set(b_dec_fused)
    params["w_head"] = w_head
    params["b_head"] = b_head
    params["enc_b"] = b_enc                 # kept only for the sanity check below
    return params


# ----------------------------------- main ------------------------------------
if __name__ == "__main__":
    key = jax.random.PRNGKey(0)
    k_seq, k_par = jax.random.split(key)

    # tokens in [1, VOCAB); trailing zeros emulate variable-length padding
    tokens = jax.random.randint(k_seq, (B, L), 1, VOCAB, dtype=jnp.int32)
    lengths = jnp.array([L, L - 3], dtype=jnp.int32)
    positions = jnp.arange(L, dtype=jnp.int32)[None, :]
    sequences = jnp.where(positions < lengths[:, None], tokens, 0)

    params = init_params(k_par)

    embedding, encoding, decoding = bilstm_forward(sequences, params)
    jax.block_until_ready((embedding, encoding, decoding))

    assert embedding.shape == (B, L, EMBED)
    assert encoding.shape == (B, L, EMBED)
    assert decoding.shape == (B, L, VOCAB)
    assert bool(jnp.all(jnp.isfinite(decoding)))
    # padded positions: zero embedding rows, and the encoder sees pad_packed
    # zeros so the encoding there equals the encoder bias.
    assert bool(jnp.all(embedding[1, L - 3:] == 0.0))
    assert bool(jnp.allclose(encoding[1, L - 1], params["enc_b"], atol=1e-5))
    print("KERNEL_OK")
</pallas_src>

<mosaic_0001>
module attributes {stable_mosaic.version = 11 : i64} {
  func.func @bilstm_kernel(%arg0: memref<1x16xi32, #tpu.memory_space<vmem>>, %arg1: memref<16x32xf32, #tpu.memory_space<vmem>>, %arg2: memref<32x256xf32, #tpu.memory_space<vmem>>, %arg3: memref<64x256xf32, #tpu.memory_space<vmem>>, %arg4: memref<1x256xf32, #tpu.memory_space<vmem>>, %arg5: memref<64x256xf32, #tpu.memory_space<vmem>>, %arg6: memref<64x256xf32, #tpu.memory_space<vmem>>, %arg7: memref<1x256xf32, #tpu.memory_space<vmem>>, %arg8: memref<64x128xf32, #tpu.memory_space<vmem>>, %arg9: memref<1x128xf32, #tpu.memory_space<vmem>>, %arg10: memref<16x32xf32, #tpu.memory_space<vmem>>, %arg11: memref<16x128xf32, #tpu.memory_space<vmem>>, %arg12: memref<16x64xf32, #tpu.memory_space<vmem>>, %arg13: memref<16x64xf32, #tpu.memory_space<vmem>>) attributes {dimension_semantics = [], scalar_prefetch = 0 : i64, scratch_operands = 2 : i64, tpu.core_type = #tpu.core_type<tc>} {
    %c0 = arith.constant 0 : index
    %c0_0 = arith.constant 0 : index
    %0 = vector.load %arg0[%c0, %c0_0] : memref<1x16xi32, #tpu.memory_space<vmem>>, vector<1x16xi32>
    %1 = tpu.iota {dimensions = array<i32: 0>} : vector<16x16xi32>
    %2 = vector.broadcast %0 : vector<1x16xi32> to vector<16x16xi32>
    %3 = arith.cmpi eq, %1, %2 : vector<16x16xi32>
    %4 = arith.extui %3 : vector<16x16xi1> to vector<16x16xi32>
    %5 = arith.sitofp %4 : vector<16x16xi32> to vector<16x16xf32>
    %c0_1 = arith.constant 0 : index
    %c0_2 = arith.constant 0 : index
    %6 = vector.load %arg1[%c0_1, %c0_2] : memref<16x32xf32, #tpu.memory_space<vmem>>, vector<16x32xf32>
    %cst = arith.constant dense<0.000000e+00> : vector<16x32xf32>
    %7 = tpu.matmul %5, %6, %cst {dimension_numbers = #tpu.dot_dimension_numbers<[0], [0], [1], [1], [0, 1, 1, 1], [], []>} : vector<16x16xf32>, vector<16x32xf32>, vector<16x32xf32> -> vector<16x32xf32>
    %c0_3 = arith.constant 0 : index
    %c0_4 = arith.constant 0 : index
    %8 = vector.load %arg10[%c0_3, %c0_4] : memref<16x32xf32, #tpu.memory_space<vmem>>, vector<16x32xf32>
    tpu.vector_store %arg10[%c0_3, %c0_4], %7 {strides = array<i32>} : memref<16x32xf32, #tpu.memory_space<vmem>>, vector<16x32xf32>,
    %c0_i32 = arith.constant 0 : i32
    %9 = vector.broadcast %c0_i32 : i32 to vector<1x16xi32>
    %10 = arith.cmpi ne, %0, %9 : vector<1x16xi32>
    %11 = arith.extui %10 : vector<1x16xi1> to vector<1x16xi32>
    %12 = vector.extract_strided_slice %11 {offsets = [0, 0], sizes = [1, 8], strides = [1, 1]} : vector<1x16xi32> to vector<1x8xi32>
    %cst_5 = arith.constant dense<0> : vector<1xi32>
    %13 = vector.multi_reduction <add>, %12, %cst_5 [1] : vector<1x8xi32> to vector<1xi32>
    %14 = vector.shape_cast %13 : vector<1xi32> to vector<1x1xi32>
    %15 = vector.extract_strided_slice %11 {offsets = [0, 8], sizes = [1, 8], strides = [1, 1]} : vector<1x16xi32> to vector<1x8xi32>
    %cst_6 = arith.constant dense<0> : vector<1xi32>
    %16 = vector.multi_reduction <add>, %15, %cst_6 [1] : vector<1x8xi32> to vector<1xi32>
    %17 = vector.shape_cast %16 : vector<1xi32> to vector<1x1xi32>
    %18 = tpu.iota {dimensions = array<i32: 1>} : vector<1x8xi32>
    %c7_i32 = arith.constant 7 : i32
    %19 = vector.broadcast %c7_i32 : i32 to vector<1x8xi32>
    %20 = arith.subi %19, %18 : vector<1x8xi32>
    %21 = vector.broadcast %14 : vector<1x1xi32> to vector<1x8xi32>
    %22 = arith.cmpi slt, %18, %21 : vector<1x8xi32>
    %23 = arith.extui %22 : vector<1x8xi1> to vector<1x8xi32>
    %24 = arith.sitofp %23 : vector<1x8xi32> to vector<1x8xf32>
    %25 = vector.broadcast %17 : vector<1x1xi32> to vector<1x8xi32>
    %26 = arith.cmpi slt, %18, %25 : vector<1x8xi32>
    %27 = arith.extui %26 : vector<1x8xi1> to vector<1x8xi32>
    %28 = arith.sitofp %27 : vector<1x8xi32> to vector<1x8xf32>
    %29 = vector.broadcast %14 : vector<1x1xi32> to vector<1x8xi32>
    %30 = arith.cmpi slt, %20, %29 : vector<1x8xi32>
    %31 = arith.extui %30 : vector<1x8xi1> to vector<1x8xi32>
    %32 = arith.sitofp %31 : vector<1x8xi32> to vector<1x8xf32>
    %33 = vector.broadcast %17 : vector<1x1xi32> to vector<1x8xi32>
    %34 = arith.cmpi slt, %20, %33 : vector<1x8xi32>
    %35 = arith.extui %34 : vector<1x8xi1> to vector<1x8xi32>
    %36 = arith.sitofp %35 : vector<1x8xi32> to vector<1x8xf32>
    %37 = tpu.concatenate %24, %28, %32, %36 in 0 : vector<1x8xf32>, vector<1x8xf32>, vector<1x8xf32>, vector<1x8xf32> -> vector<4x8xf32>
    %38 = tpu.iota {dimensions = array<i32: 1>} : vector<4x256xi32>
    %c128_i32 = arith.constant 128 : i32
    %39 = vector.broadcast %c128_i32 : i32 to vector<4x256xi32>
    %40 = arith.cmpi sge, %38, %39 : vector<4x256xi32>
    %c192_i32 = arith.constant 192 : i32
    %41 = vector.broadcast %c192_i32 : i32 to vector<4x256xi32>
    %42 = arith.cmpi slt, %38, %41 : vector<4x256xi32>
    %43 = arith.andi %40, %42 : vector<4x256xi1>
    %cst_7 = arith.constant 1.000000e+00 : f32
    %cst_8 = arith.constant 5.000000e-01 : f32
    %44 = vector.broadcast %cst_7 : f32 to vector<4x256xf32>
    %45 = vector.broadcast %cst_8 : f32 to vector<4x256xf32>
    %46 = arith.select %43, %44, %45 : vector<4x256xi1>, vector<4x256xf32>
    %c0_9 = arith.constant 0 : index
    %c0_10 = arith.constant 0 : index
    %47 = vector.load %arg3[%c0_9, %c0_10] : memref<64x256xf32, #tpu.memory_space<vmem>>, vector<64x256xf32>
    %c0_11 = arith.constant 0 : index
    %c0_12 = arith.constant 0 : index
    %48 = vector.load %arg2[%c0_11, %c0_12] : memref<32x256xf32, #tpu.memory_space<vmem>>, vector<32x256xf32>
    %cst_13 = arith.constant dense<0.000000e+00> : vector<16x256xf32>
    %49 = tpu.matmul %7, %48, %cst_13 {dimension_numbers = #tpu.dot_dimension_numbers<[1], [0], [0], [1], [0, 0, 1, 1], [], []>} : vector<16x32xf32>, vector<32x256xf32>, vector<16x256xf32> -> vector<16x256xf32>
    %c0_14 = arith.constant 0 : index
    %c0_15 = arith.constant 0 : index
    %50 = vector.load %arg4[%c0_14, %c0_15] : memref<1x256xf32, #tpu.memory_space<vmem>>, vector<1x256xf32>
    %51 = vector.broadcast %50 : vector<1x256xf32> to vector<16x256xf32>
    %52 = arith.addf %49, %51 : vector<16x256xf32>
    %cst_16 = arith.constant 0.000000e+00 : f32
    %53 = vector.broadcast %cst_16 : f32 to vector<4x64xf32>
    %cst_17 = arith.constant 0.000000e+00 : f32
    %54 = vector.broadcast %cst_17 : f32 to vector<4x64xf32>
    %55 = vector.extract_strided_slice %52 {offsets = [0, 0], sizes = [1, 256], strides = [1, 1]} : vector<16x256xf32> to vector<1x256xf32>
    %56 = vector.extract_strided_slice %52 {offsets = [8, 0], sizes = [1, 256], strides = [1, 1]} : vector<16x256xf32> to vector<1x256xf32>
    %57 = vector.extract_strided_slice %52 {offsets = [7, 0], sizes = [1, 256], strides = [1, 1]} : vector<16x256xf32> to vector<1x256xf32>
    %58 = vector.extract_strided_slice %52 {offsets = [15, 0], sizes = [1, 256], strides = [1, 1]} : vector<16x256xf32> to vector<1x256xf32>
    %59 = tpu.concatenate %55, %56, %57, %58 in 0 : vector<1x256xf32>, vector<1x256xf32>, vector<1x256xf32>, vector<1x256xf32> -> vector<4x256xf32>
    %60 = vector.extract_strided_slice %37 {offsets = [0, 0], sizes = [4, 1], strides = [1, 1]} : vector<4x8xf32> to vector<4x1xf32>
    %61 = vector.shape_cast %60 : vector<4x1xf32> to vector<4x1xf32>
    %62 = vector.broadcast %61 : vector<4x1xf32> to vector<4x64xf32>
    %cst_18 = arith.constant dense<0.000000e+00> : vector<4x256xf32>
    %63 = tpu.matmul %53, %47, %cst_18 {dimension_numbers = #tpu.dot_dimension_numbers<[1], [0], [0], [1], [0, 0, 1, 1], [], []>} : vector<4x64xf32>, vector<64x256xf32>, vector<4x256xf32> -> vector<4x256xf32>
    %64 = arith.addf %59, %63 : vector<4x256xf32>
    %65 = arith.mulf %64, %46 : vector<4x256xf32>
    %66 = math.tanh %65 : vector<4x256xf32>
    %cst_19 = arith.constant 5.000000e-01 : f32
    %67 = vector.broadcast %cst_19 : f32 to vector<4x256xf32>
    %68 = arith.mulf %67, %66 : vector<4x256xf32>
    %cst_20 = arith.constant 5.000000e-01 : f32
    %69 = vector.broadcast %cst_20 : f32 to vector<4x256xf32>
    %70 = arith.addf %69, %68 : vector<4x256xf32>
    %71 = arith.select %43, %66, %70 : vector<4x256xi1>, vector<4x256xf32>
    %72 = vector.extract_strided_slice %71 {offsets = [0, 0], sizes = [4, 64], strides = [1, 1]} : vector<4x256xf32> to vector<4x64xf32>
    %73 = vector.extract_strided_slice %71 {offsets = [0, 64], sizes = [4, 64], strides = [1, 1]} : vector<4x256xf32> to vector<4x64xf32>
    %74 = vector.extract_strided_slice %71 {offsets = [0, 128], sizes = [4, 64], strides = [1, 1]} : vector<4x256xf32> to vector<4x64xf32>
    %75 = vector.extract_strided_slice %71 {offsets = [0, 192], sizes = [4, 64], strides = [1, 1]} : vector<4x256xf32> to vector<4x64xf32>
    %76 = arith.mulf %73, %54 : vector<4x64xf32>
    %77 = arith.mulf %72, %74 : vector<4x64xf32>
    %78 = arith.addf %76, %77 : vector<4x64xf32>
    %79 = math.tanh %78 : vector<4x64xf32>
    %80 = arith.mulf %75, %79 : vector<4x64xf32>
    %81 = arith.subf %78, %54 : vector<4x64xf32>
    %82 = arith.mulf %62, %81 : vector<4x64xf32>
    %83 = arith.addf %54, %82 : vector<4x64xf32>
    %84 = arith.subf %80, %53 : vector<4x64xf32>
    %85 = arith.mulf %62, %84 : vector<4x64xf32>
    %86 = arith.addf %53, %85 : vector<4x64xf32>
    %87 = arith.mulf %62, %80 : vector<4x64xf32>
    %88 = vector.extract_strided_slice %87 {offsets = [0, 0], sizes = [1, 32], strides = [1, 1]} : vector<4x64xf32> to vector<1x32xf32>
    %c0_21 = arith.constant 0 : index
    %c0_22 = arith.constant 0 : index
    %89 = vector.load %arg12[%c0_21, %c0_22] : memref<16x64xf32, #tpu.memory_space<vmem>>, vector<1x32xf32>
    tpu.vector_store %arg12[%c0_21, %c0_22], %88 {strides = array<i32>} : memref<16x64xf32, #tpu.memory_space<vmem>>, vector<1x32xf32>,
    %90 = vector.extract_strided_slice %87 {offsets = [1, 0], sizes = [1, 32], strides = [1, 1]} : vector<4x64xf32> to vector<1x32xf32>
    %c8 = arith.constant 8 : index
    %c0_23 = arith.constant 0 : index
    %91 = vector.load %arg12[%c8, %c0_23] : memref<16x64xf32, #tpu.memory_space<vmem>>, vector<1x32xf32>
    tpu.vector_store %arg12[%c8, %c0_23], %90 {strides = array<i32>} : memref<16x64xf32, #tpu.memory_space<vmem>>, vector<1x32xf32>,
    %92 = vector.extract_strided_slice %87 {offsets = [2, 32], sizes = [1, 32], strides = [1, 1]} : vector<4x64xf32> to vector<1x32xf32>
    %c7 = arith.constant 7 : index
    %c32 = arith.constant 32 : index
    %93 = vector.load %arg12[%c7, %c32] : memref<16x64xf32, #tpu.memory_space<vmem>>, vector<1x32xf32>
    tpu.vector_store %arg12[%c7, %c32], %92 {strides = array<i32>} : memref<16x64xf32, #tpu.memory_space<vmem>>, vector<1x32xf32>,
    %94 = vector.extract_strided_slice %87 {offsets = [3, 32], sizes = [1, 32], strides = [1, 1]} : vector<4x64xf32> to vector<1x32xf32>
    %c15 = arith.constant 15 : index
    %c32_24 = arith.constant 32 : index
    %95 = vector.load %arg12[%c15, %c32_24] : memref<16x64xf32, #tpu.memory_space<vmem>>, vector<1x32xf32>
    tpu.vector_store %arg12[%c15, %c32_24], %94 {strides = array<i32>} : memref<16x64xf32, #tpu.memory_space<vmem>>, vector<1x32xf32>,
    %96 = vector.extract_strided_slice %52 {offsets = [1, 0], sizes = [1, 256], strides = [1, 1]} : vector<16x256xf32> to vector<1x256xf32>
    %97 = vector.extract_strided_slice %52 {offsets = [9, 0], sizes = [1, 256], strides = [1, 1]} : vector<16x256xf32> to vector<1x256xf32>
    %98 = vector.extract_strided_slice %52 {offsets = [6, 0], sizes = [1, 256], strides = [1, 1]} : vector<16x256xf32> to vector<1x256xf32>
    %99 = vector.extract_strided_slice %52 {offsets = [14, 0], sizes = [1, 256], strides = [1, 1]} : vector<16x256xf32> to vector<1x256xf32>
    %100 = tpu.concatenate %96, %97, %98, %99 in 0 : vector<1x256xf32>, vector<1x256xf32>, vector<1x256xf32>, vector<1x256xf32> -> vector<4x256xf32>
    %101 = vector.extract_strided_slice %37 {offsets = [0, 1], sizes = [4, 1], strides = [1, 1]} : vector<4x8xf32> to vector<4x1xf32>
    %102 = vector.shape_cast %101 : vector<4x1xf32> to vector<4x1xf32>
    %103 = vector.broadcast %102 : vector<4x1xf32> to vector<4x64xf32>
    %cst_25 = arith.constant dense<0.000000e+00> : vector<4x256xf32>
    %104 = tpu.matmul %86, %47, %cst_25 {dimension_numbers = #tpu.dot_dimension_numbers<[1], [0], [0], [1], [0, 0, 1, 1], [], []>} : vector<4x64xf32>, vector<64x256xf32>, vector<4x256xf32> -> vector<4x256xf32>
    %105 = arith.addf %100, %104 : vector<4x256xf32>
    %106 = arith.mulf %105, %46 : vector<4x256xf32>
    %107 = math.tanh %106 : vector<4x256xf32>
    %cst_26 = arith.constant 5.000000e-01 : f32
    %108 = vector.broadcast %cst_26 : f32 to vector<4x256xf32>
    %109 = arith.mulf %108, %107 : vector<4x256xf32>
    %cst_27 = arith.constant 5.000000e-01 : f32
    %110 = vector.broadcast %cst_27 : f32 to vector<4x256xf32>
    %111 = arith.addf %110, %109 : vector<4x256xf32>
    %112 = arith.select %43, %107, %111 : vector<4x256xi1>, vector<4x256xf32>
    %113 = vector.extract_strided_slice %112 {offsets = [0, 0], sizes = [4, 64], strides = [1, 1]} : vector<4x256xf32> to vector<4x64xf32>
    %114 = vector.extract_strided_slice %112 {offsets = [0, 64], sizes = [4, 64], strides = [1, 1]} : vector<4x256xf32> to vector<4x64xf32>
    %115 = vector.extract_strided_slice %112 {offsets = [0, 128], sizes = [4, 64], strides = [1, 1]} : vector<4x256xf32> to vector<4x64xf32>
    %116 = vector.extract_strided_slice %112 {offsets = [0, 192], sizes = [4, 64], strides = [1, 1]} : vector<4x256xf32> to vector<4x64xf32>
    %117 = arith.mulf %114, %83 : vector<4x64xf32>
    %118 = arith.mulf %113, %115 : vector<4x64xf32>
    %119 = arith.addf %117, %118 : vector<4x64xf32>
    %120 = math.tanh %119 : vector<4x64xf32>
    %121 = arith.mulf %116, %120 : vector<4x64xf32>
    %122 = arith.subf %119, %83 : vector<4x64xf32>
    %123 = arith.mulf %103, %122 : vector<4x64xf32>
    %124 = arith.addf %83, %123 : vector<4x64xf32>
    %125 = arith.subf %121, %86 : vector<4x64xf32>
    %126 = arith.mulf %103, %125 : vector<4x64xf32>
    %127 = arith.addf %86, %126 : vector<4x64xf32>
    %128 = arith.mulf %103, %121 : vector<4x64xf32>
    %129 = vector.extract_strided_slice %128 {offsets = [0, 0], sizes = [1, 32], strides = [1, 1]} : vector<4x64xf32> to vector<1x32xf32>
    %c1 = arith.constant 1 : index
    %c0_28 = arith.constant 0 : index
    %130 = vector.load %arg12[%c1, %c0_28] : memref<16x64xf32, #tpu.memory_space<vmem>>, vector<1x32xf32>
    tpu.vector_store %arg12[%c1, %c0_28], %129 {strides = array<i32>} : memref<16x64xf32, #tpu.memory_space<vmem>>, vector<1x32xf32>,
    %131 = vector.extract_strided_slice %128 {offsets = [1, 0], sizes = [1, 32], strides = [1, 1]} : vector<4x64xf32> to vector<1x32xf32>
    %c9 = arith.constant 9 : index
    %c0_29 = arith.constant 0 : index
    %132 = vector.load %arg12[%c9, %c0_29] : memref<16x64xf32, #tpu.memory_space<vmem>>, vector<1x32xf32>
    tpu.vector_store %arg12[%c9, %c0_29], %131 {strides = array<i32>} : memref<16x64xf32, #tpu.memory_space<vmem>>, vector<1x32xf32>,
    %133 = vector.extract_strided_slice %128 {offsets = [2, 32], sizes = [1, 32], strides = [1, 1]} : vector<4x64xf32> to vector<1x32xf32>
    %c6 = arith.constant 6 : index
    %c32_30 = arith.constant 32 : index
    %134 = vector.load %arg12[%c6, %c32_30] : memref<16x64xf32, #tpu.memory_space<vmem>>, vector<1x32xf32>
    tpu.vector_store %arg12[%c6, %c32_30], %133 {strides = array<i32>} : memref<16x64xf32, #tpu.memory_space<vmem>>, vector<1x32xf32>,
    %135 = vector.extract_strided_slice %128 {offsets = [3, 32], sizes = [1, 32], strides = [1, 1]} : vector<4x64xf32> to vector<1x32xf32>
    %c14 = arith.constant 14 : index
    %c32_31 = arith.constant 32 : index
    %136 = vector.load %arg12[%c14, %c32_31] : memref<16x64xf32, #tpu.memory_space<vmem>>, vector<1x32xf32>
    tpu.vector_store %arg12[%c14, %c32_31], %135 {strides = array<i32>} : memref<16x64xf32, #tpu.memory_space<vmem>>, vector<1x32xf32>,
    %137 = vector.extract_strided_slice %52 {offsets = [2, 0], sizes = [1, 256], strides = [1, 1]} : vector<16x256xf32> to vector<1x256xf32>
    %138 = vector.extract_strided_slice %52 {offsets = [10, 0], sizes = [1, 256], strides = [1, 1]} : vector<16x256xf32> to vector<1x256xf32>
    %139 = vector.extract_strided_slice %52 {offsets = [5, 0], sizes = [1, 256], strides = [1, 1]} : vector<16x256xf32> to vector<1x256xf32>
    %140 = vector.extract_strided_slice %52 {offsets = [13, 0], sizes = [1, 256], strides = [1, 1]} : vector<16x256xf32> to vector<1x256xf32>
    %141 = tpu.concatenate %137, %138, %139, %140 in 0 : vector<1x256xf32>, vector<1x256xf32>, vector<1x256xf32>, vector<1x256xf32> -> vector<4x256xf32>
    %142 = vector.extract_strided_slice %37 {offsets = [0, 2], sizes = [4, 1], strides = [1, 1]} : vector<4x8xf32> to vector<4x1xf32>
    %143 = vector.shape_cast %142 : vector<4x1xf32> to vector<4x1xf32>
    %144 = vector.broadcast %143 : vector<4x1xf32> to vector<4x64xf32>
    %cst_32 = arith.constant dense<0.000000e+00> : vector<4x256xf32>
    %145 = tpu.matmul %127, %47, %cst_32 {dimension_numbers = #tpu.dot_dimension_numbers<[1], [0], [0], [1], [0, 0, 1, 1], [], []>} : vector<4x64xf32>, vector<64x256xf32>, vector<4x256xf32> -> vector<4x256xf32>
    %146 = arith.addf %141, %145 : vector<4x256xf32>
    %147 = arith.mulf %146, %46 : vector<4x256xf32>
    %148 = math.tanh %147 : vector<4x256xf32>
    %cst_33 = arith.constant 5.000000e-01 : f32
    %149 = vector.broadcast %cst_33 : f32 to vector<4x256xf32>
    %150 = arith.mulf %149, %148 : vector<4x256xf32>
    %cst_34 = arith.constant 5.000000e-01 : f32
    %151 = vector.broadcast %cst_34 : f32 to vector<4x256xf32>
    %152 = arith.addf %151, %150 : vector<4x256xf32>
    %153 = arith.select %43, %148, %152 : vector<4x256xi1>, vector<4x256xf32>
    %154 = vector.extract_strided_slice %153 {offsets = [0, 0], sizes = [4, 64], strides = [1, 1]} : vector<4x256xf32> to vector<4x64xf32>
    %155 = vector.extract_strided_slice %153 {offsets = [0, 64], sizes = [4, 64], strides = [1, 1]} : vector<4x256xf32> to vector<4x64xf32>
    %156 = vector.extract_strided_slice %153 {offsets = [0, 128], sizes = [4, 64], strides = [1, 1]} : vector<4x256xf32> to vector<4x64xf32>
    %157 = vector.extract_strided_slice %153 {offsets = [0, 192], sizes = [4, 64], strides = [1, 1]} : vector<4x256xf32> to vector<4x64xf32>
    %158 = arith.mulf %155, %124 : vector<4x64xf32>
    %159 = arith.mulf %154, %156 : vector<4x64xf32>
    %160 = arith.addf %158, %159 : vector<4x64xf32>
    %161 = math.tanh %160 : vector<4x64xf32>
    %162 = arith.mulf %157, %161 : vector<4x64xf32>
    %163 = arith.subf %160, %124 : vector<4x64xf32>
    %164 = arith.mulf %144, %163 : vector<4x64xf32>
    %165 = arith.addf %124, %164 : vector<4x64xf32>
    %166 = arith.subf %162, %127 : vector<4x64xf32>
    %167 = arith.mulf %144, %166 : vector<4x64xf32>
    %168 = arith.addf %127, %167 : vector<4x64xf32>
    %169 = arith.mulf %144, %162 : vector<4x64xf32>
    %170 = vector.extract_strided_slice %169 {offsets = [0, 0], sizes = [1, 32], strides = [1, 1]} : vector<4x64xf32> to vector<1x32xf32>
    %c2 = arith.constant 2 : index
    %c0_35 = arith.constant 0 : index
    %171 = vector.load %arg12[%c2, %c0_35] : memref<16x64xf32, #tpu.memory_space<vmem>>, vector<1x32xf32>
    tpu.vector_store %arg12[%c2, %c0_35], %170 {strides = array<i32>} : memref<16x64xf32, #tpu.memory_space<vmem>>, vector<1x32xf32>,
    %172 = vector.extract_strided_slice %169 {offsets = [1, 0], sizes = [1, 32], strides = [1, 1]} : vector<4x64xf32> to vector<1x32xf32>
    %c10 = arith.constant 10 : index
    %c0_36 = arith.constant 0 : index
    %173 = vector.load %arg12[%c10, %c0_36] : memref<16x64xf32, #tpu.memory_space<vmem>>, vector<1x32xf32>
    tpu.vector_store %arg12[%c10, %c0_36], %172 {strides = array<i32>} : memref<16x64xf32, #tpu.memory_space<vmem>>, vector<1x32xf32>,
    %174 = vector.extract_strided_slice %169 {offsets = [2, 32], sizes = [1, 32], strides = [1, 1]} : vector<4x64xf32> to vector<1x32xf32>
    %c5 = arith.constant 5 : index
    %c32_37 = arith.constant 32 : index
    %175 = vector.load %arg12[%c5, %c32_37] : memref<16x64xf32, #tpu.memory_space<vmem>>, vector<1x32xf32>
    tpu.vector_store %arg12[%c5, %c32_37], %174 {strides = array<i32>} : memref<16x64xf32, #tpu.memory_space<vmem>>, vector<1x32xf32>,
    %176 = vector.extract_strided_slice %169 {offsets = [3, 32], sizes = [1, 32], strides = [1, 1]} : vector<4x64xf32> to vector<1x32xf32>
    %c13 = arith.constant 13 : index
    %c32_38 = arith.constant 32 : index
    %177 = vector.load %arg12[%c13, %c32_38] : memref<16x64xf32, #tpu.memory_space<vmem>>, vector<1x32xf32>
    tpu.vector_store %arg12[%c13, %c32_38], %176 {strides = array<i32>} : memref<16x64xf32, #tpu.memory_space<vmem>>, vector<1x32xf32>,
    %178 = vector.extract_strided_slice %52 {offsets = [3, 0], sizes = [1, 256], strides = [1, 1]} : vector<16x256xf32> to vector<1x256xf32>
    %179 = vector.extract_strided_slice %52 {offsets = [11, 0], sizes = [1, 256], strides = [1, 1]} : vector<16x256xf32> to vector<1x256xf32>
    %180 = vector.extract_strided_slice %52 {offsets = [4, 0], sizes = [1, 256], strides = [1, 1]} : vector<16x256xf32> to vector<1x256xf32>
    %181 = vector.extract_strided_slice %52 {offsets = [12, 0], sizes = [1, 256], strides = [1, 1]} : vector<16x256xf32> to vector<1x256xf32>
    %182 = tpu.concatenate %178, %179, %180, %181 in 0 : vector<1x256xf32>, vector<1x256xf32>, vector<1x256xf32>, vector<1x256xf32> -> vector<4x256xf32>
    %183 = vector.extract_strided_slice %37 {offsets = [0, 3], sizes = [4, 1], strides = [1, 1]} : vector<4x8xf32> to vector<4x1xf32>
    %184 = vector.shape_cast %183 : vector<4x1xf32> to vector<4x1xf32>
    %185 = vector.broadcast %184 : vector<4x1xf32> to vector<4x64xf32>
    %cst_39 = arith.constant dense<0.000000e+00> : vector<4x256xf32>
    %186 = tpu.matmul %168, %47, %cst_39 {dimension_numbers = #tpu.dot_dimension_numbers<[1], [0], [0], [1], [0, 0, 1, 1], [], []>} : vector<4x64xf32>, vector<64x256xf32>, vector<4x256xf32> -> vector<4x256xf32>
    %187 = arith.addf %182, %186 : vector<4x256xf32>
    %188 = arith.mulf %187, %46 : vector<4x256xf32>
    %189 = math.tanh %188 : vector<4x256xf32>
    %cst_40 = arith.constant 5.000000e-01 : f32
    %190 = vector.broadcast %cst_40 : f32 to vector<4x256xf32>
    %191 = arith.mulf %190, %189 : vector<4x256xf32>
    %cst_41 = arith.constant 5.000000e-01 : f32
    %192 = vector.broadcast %cst_41 : f32 to vector<4x256xf32>
    %193 = arith.addf %192, %191 : vector<4x256xf32>
    %194 = arith.select %43, %189, %193 : vector<4x256xi1>, vector<4x256xf32>
    %195 = vector.extract_strided_slice %194 {offsets = [0, 0], sizes = [4, 64], strides = [1, 1]} : vector<4x256xf32> to vector<4x64xf32>
    %196 = vector.extract_strided_slice %194 {offsets = [0, 64], sizes = [4, 64], strides = [1, 1]} : vector<4x256xf32> to vector<4x64xf32>
    %197 = vector.extract_strided_slice %194 {offsets = [0, 128], sizes = [4, 64], strides = [1, 1]} : vector<4x256xf32> to vector<4x64xf32>
    %198 = vector.extract_strided_slice %194 {offsets = [0, 192], sizes = [4, 64], strides = [1, 1]} : vector<4x256xf32> to vector<4x64xf32>
    %199 = arith.mulf %196, %165 : vector<4x64xf32>
    %200 = arith.mulf %195, %197 : vector<4x64xf32>
    %201 = arith.addf %199, %200 : vector<4x64xf32>
    %202 = math.tanh %201 : vector<4x64xf32>
    %203 = arith.mulf %198, %202 : vector<4x64xf32>
    %204 = arith.subf %201, %165 : vector<4x64xf32>
    %205 = arith.mulf %185, %204 : vector<4x64xf32>
    %206 = arith.addf %165, %205 : vector<4x64xf32>
    %207 = arith.subf %203, %168 : vector<4x64xf32>
    %208 = arith.mulf %185, %207 : vector<4x64xf32>
    %209 = arith.addf %168, %208 : vector<4x64xf32>
    %210 = arith.mulf %185, %203 : vector<4x64xf32>
    %211 = vector.extract_strided_slice %210 {offsets = [0, 0], sizes = [1, 32], strides = [1, 1]} : vector<4x64xf32> to vector<1x32xf32>
    %c3 = arith.constant 3 : index
    %c0_42 = arith.constant 0 : index
    %212 = vector.load %arg12[%c3, %c0_42] : memref<16x64xf32, #tpu.memory_space<vmem>>, vector<1x32xf32>
    tpu.vector_store %arg12[%c3, %c0_42], %211 {strides = array<i32>} : memref<16x64xf32, #tpu.memory_space<vmem>>, vector<1x32xf32>,
    %213 = vector.extract_strided_slice %210 {offsets = [1, 0], sizes = [1, 32], strides = [1, 1]} : vector<4x64xf32> to vector<1x32xf32>
    %c11 = arith.constant 11 : index
    %c0_43 = arith.constant 0 : index
    %214 = vector.load %arg12[%c11, %c0_43] : memref<16x64xf32, #tpu.memory_space<vmem>>, vector<1x32xf32>
    tpu.vector_store %arg12[%c11, %c0_43], %213 {strides = array<i32>} : memref<16x64xf32, #tpu.memory_space<vmem>>, vector<1x32xf32>,
    %215 = vector.extract_strided_slice %210 {offsets = [2, 32], sizes = [1, 32], strides = [1, 1]} : vector<4x64xf32> to vector<1x32xf32>
    %c4 = arith.constant 4 : index
    %c32_44 = arith.constant 32 : index
    %216 = vector.load %arg12[%c4, %c32_44] : memref<16x64xf32, #tpu.memory_space<vmem>>, vector<1x32xf32>
    tpu.vector_store %arg12[%c4, %c32_44], %215 {strides = array<i32>} : memref<16x64xf32, #tpu.memory_space<vmem>>, vector<1x32xf32>,
    %217 = vector.extract_strided_slice %210 {offsets = [3, 32], sizes = [1, 32], strides = [1, 1]} : vector<4x64xf32> to vector<1x32xf32>
    %c12 = arith.constant 12 : index
    %c32_45 = arith.constant 32 : index
    %218 = vector.load %arg12[%c12, %c32_45] : memref<16x64xf32, #tpu.memory_space<vmem>>, vector<1x32xf32>
    tpu.vector_store %arg12[%c12, %c32_45], %217 {strides = array<i32>} : memref<16x64xf32, #tpu.memory_space<vmem>>, vector<1x32xf32>,
    %219 = vector.extract_strided_slice %52 {offsets = [4, 0], sizes = [1, 256], strides = [1, 1]} : vector<16x256xf32> to vector<1x256xf32>
    %220 = vector.extract_strided_slice %52 {offsets = [12, 0], sizes = [1, 256], strides = [1, 1]} : vector<16x256xf32> to vector<1x256xf32>
    %221 = vector.extract_strided_slice %52 {offsets = [3, 0], sizes = [1, 256], strides = [1, 1]} : vector<16x256xf32> to vector<1x256xf32>
    %222 = vector.extract_strided_slice %52 {offsets = [11, 0], sizes = [1, 256], strides = [1, 1]} : vector<16x256xf32> to vector<1x256xf32>
    %223 = tpu.concatenate %219, %220, %221, %222 in 0 : vector<1x256xf32>, vector<1x256xf32>, vector<1x256xf32>, vector<1x256xf32> -> vector<4x256xf32>
    %224 = vector.extract_strided_slice %37 {offsets = [0, 4], sizes = [4, 1], strides = [1, 1]} : vector<4x8xf32> to vector<4x1xf32>
    %225 = vector.shape_cast %224 : vector<4x1xf32> to vector<4x1xf32>
    %226 = vector.broadcast %225 : vector<4x1xf32> to vector<4x64xf32>
    %cst_46 = arith.constant dense<0.000000e+00> : vector<4x256xf32>
    %227 = tpu.matmul %209, %47, %cst_46 {dimension_numbers = #tpu.dot_dimension_numbers<[1], [0], [0], [1], [0, 0, 1, 1], [], []>} : vector<4x64xf32>, vector<64x256xf32>, vector<4x256xf32> -> vector<4x256xf32>
    %228 = arith.addf %223, %227 : vector<4x256xf32>
    %229 = arith.mulf %228, %46 : vector<4x256xf32>
    %230 = math.tanh %229 : vector<4x256xf32>
    %cst_47 = arith.constant 5.000000e-01 : f32
    %231 = vector.broadcast %cst_47 : f32 to vector<4x256xf32>
    %232 = arith.mulf %231, %230 : vector<4x256xf32>
    %cst_48 = arith.constant 5.000000e-01 : f32
    %233 = vector.broadcast %cst_48 : f32 to vector<4x256xf32>
    %234 = arith.addf %233, %232 : vector<4x256xf32>
    %235 = arith.select %43, %230, %234 : vector<4x256xi1>, vector<4x256xf32>
    %236 = vector.extract_strided_slice %235 {offsets = [0, 0], sizes = [4, 64], strides = [1, 1]} : vector<4x256xf32> to vector<4x64xf32>
    %237 = vector.extract_strided_slice %235 {offsets = [0, 64], sizes = [4, 64], strides = [1, 1]} : vector<4x256xf32> to vector<4x64xf32>
    %238 = vector.extract_strided_slice %235 {offsets = [0, 128], sizes = [4, 64], strides = [1, 1]} : vector<4x256xf32> to vector<4x64xf32>
    %239 = vector.extract_strided_slice %235 {offsets = [0, 192], sizes = [4, 64], strides = [1, 1]} : vector<4x256xf32> to vector<4x64xf32>
    %240 = arith.mulf %237, %206 : vector<4x64xf32>
    %241 = arith.mulf %236, %238 : vector<4x64xf32>
    %242 = arith.addf %240, %241 : vector<4x64xf32>
    %243 = math.tanh %242 : vector<4x64xf32>
    %244 = arith.mulf %239, %243 : vector<4x64xf32>
    %245 = arith.subf %242, %206 : vector<4x64xf32>
    %246 = arith.mulf %226, %245 : vector<4x64xf32>
    %247 = arith.addf %206, %246 : vector<4x64xf32>
    %248 = arith.subf %244, %209 : vector<4x64xf32>
    %249 = arith.mulf %226, %248 : vector<4x64xf32>
    %250 = arith.addf %209, %249 : vector<4x64xf32>
    %251 = arith.mulf %226, %244 : vector<4x64xf32>
    %252 = vector.extract_strided_slice %251 {offsets = [0, 0], sizes = [1, 32], strides = [1, 1]} : vector<4x64xf32> to vector<1x32xf32>
    %c4_49 = arith.constant 4 : index
    %c0_50 = arith.constant 0 : index
    %253 = vector.load %arg12[%c4_49, %c0_50] : memref<16x64xf32, #tpu.memory_space<vmem>>, vector<1x32xf32>
    tpu.vector_store %arg12[%c4_49, %c0_50], %252 {strides = array<i32>} : memref<16x64xf32, #tpu.memory_space<vmem>>, vector<1x32xf32>,
    %254 = vector.extract_strided_slice %251 {offsets = [1, 0], sizes = [1, 32], strides = [1, 1]} : vector<4x64xf32> to vector<1x32xf32>
    %c12_51 = arith.constant 12 : index
    %c0_52 = arith.constant 0 : index
    %255 = vector.load %arg12[%c12_51, %c0_52] : memref<16x64xf32, #tpu.memory_space<vmem>>, vector<1x32xf32>
    tpu.vector_store %arg12[%c12_51, %c0_52], %254 {strides = array<i32>} : memref<16x64xf32, #tpu.memory_space<vmem>>, vector<1x32xf32>,
    %256 = vector.extract_strided_slice %251 {offsets = [2, 32], sizes = [1, 32], strides = [1, 1]} : vector<4x64xf32> to vector<1x32xf32>
    %c3_53 = arith.constant 3 : index
    %c32_54 = arith.constant 32 : index
    %257 = vector.load %arg12[%c3_53, %c32_54] : memref<16x64xf32, #tpu.memory_space<vmem>>, vector<1x32xf32>
    tpu.vector_store %arg12[%c3_53, %c32_54], %256 {strides = array<i32>} : memref<16x64xf32, #tpu.memory_space<vmem>>, vector<1x32xf32>,
    %258 = vector.extract_strided_slice %251 {offsets = [3, 32], sizes = [1, 32], strides = [1, 1]} : vector<4x64xf32> to vector<1x32xf32>
    %c11_55 = arith.constant 11 : index
    %c32_56 = arith.constant 32 : index
    %259 = vector.load %arg12[%c11_55, %c32_56] : memref<16x64xf32, #tpu.memory_space<vmem>>, vector<1x32xf32>
    tpu.vector_store %arg12[%c11_55, %c32_56], %258 {strides = array<i32>} : memref<16x64xf32, #tpu.memory_space<vmem>>, vector<1x32xf32>,
    %260 = vector.extract_strided_slice %52 {offsets = [5, 0], sizes = [1, 256], strides = [1, 1]} : vector<16x256xf32> to vector<1x256xf32>
    %261 = vector.extract_strided_slice %52 {offsets = [13, 0], sizes = [1, 256], strides = [1, 1]} : vector<16x256xf32> to vector<1x256xf32>
    %262 = vector.extract_strided_slice %52 {offsets = [2, 0], sizes = [1, 256], strides = [1, 1]} : vector<16x256xf32> to vector<1x256xf32>
    %263 = vector.extract_strided_slice %52 {offsets = [10, 0], sizes = [1, 256], strides = [1, 1]} : vector<16x256xf32> to vector<1x256xf32>
    %264 = tpu.concatenate %260, %261, %262, %263 in 0 : vector<1x256xf32>, vector<1x256xf32>, vector<1x256xf32>, vector<1x256xf32> -> vector<4x256xf32>
    %265 = vector.extract_strided_slice %37 {offsets = [0, 5], sizes = [4, 1], strides = [1, 1]} : vector<4x8xf32> to vector<4x1xf32>
    %266 = vector.shape_cast %265 : vector<4x1xf32> to vector<4x1xf32>
    %267 = vector.broadcast %266 : vector<4x1xf32> to vector<4x64xf32>
    %cst_57 = arith.constant dense<0.000000e+00> : vector<4x256xf32>
    %268 = tpu.matmul %250, %47, %cst_57 {dimension_numbers = #tpu.dot_dimension_numbers<[1], [0], [0], [1], [0, 0, 1, 1], [], []>} : vector<4x64xf32>, vector<64x256xf32>, vector<4x256xf32> -> vector<4x256xf32>
    %269 = arith.addf %264, %268 : vector<4x256xf32>
    %270 = arith.mulf %269, %46 : vector<4x256xf32>
    %271 = math.tanh %270 : vector<4x256xf32>
    %cst_58 = arith.constant 5.000000e-01 : f32
    %272 = vector.broadcast %cst_58 : f32 to vector<4x256xf32>
    %273 = arith.mulf %272, %271 : vector<4x256xf32>
    %cst_59 = arith.constant 5.000000e-01 : f32
    %274 = vector.broadcast %cst_59 : f32 to vector<4x256xf32>
    %275 = arith.addf %274, %273 : vector<4x256xf32>
    %276 = arith.select %43, %271, %275 : vector<4x256xi1>, vector<4x256xf32>
    %277 = vector.extract_strided_slice %276 {offsets = [0, 0], sizes = [4, 64], strides = [1, 1]} : vector<4x256xf32> to vector<4x64xf32>
    %278 = vector.extract_strided_slice %276 {offsets = [0, 64], sizes = [4, 64], strides = [1, 1]} : vector<4x256xf32> to vector<4x64xf32>
    %279 = vector.extract_strided_slice %276 {offsets = [0, 128], sizes = [4, 64], strides = [1, 1]} : vector<4x256xf32> to vector<4x64xf32>
    %280 = vector.extract_strided_slice %276 {offsets = [0, 192], sizes = [4, 64], strides = [1, 1]} : vector<4x256xf32> to vector<4x64xf32>
    %281 = arith.mulf %278, %247 : vector<4x64xf32>
    %282 = arith.mulf %277, %279 : vector<4x64xf32>
    %283 = arith.addf %281, %282 : vector<4x64xf32>
    %284 = math.tanh %283 : vector<4x64xf32>
    %285 = arith.mulf %280, %284 : vector<4x64xf32>
    %286 = arith.subf %283, %247 : vector<4x64xf32>
    %287 = arith.mulf %267, %286 : vector<4x64xf32>
    %288 = arith.addf %247, %287 : vector<4x64xf32>
    %289 = arith.subf %285, %250 : vector<4x64xf32>
    %290 = arith.mulf %267, %289 : vector<4x64xf32>
    %291 = arith.addf %250, %290 : vector<4x64xf32>
    %292 = arith.mulf %267, %285 : vector<4x64xf32>
    %293 = vector.extract_strided_slice %292 {offsets = [0, 0], sizes = [1, 32], strides = [1, 1]} : vector<4x64xf32> to vector<1x32xf32>
    %c5_60 = arith.constant 5 : index
    %c0_61 = arith.constant 0 : index
    %294 = vector.load %arg12[%c5_60, %c0_61] : memref<16x64xf32, #tpu.memory_space<vmem>>, vector<1x32xf32>
    tpu.vector_store %arg12[%c5_60, %c0_61], %293 {strides = array<i32>} : memref<16x64xf32, #tpu.memory_space<vmem>>, vector<1x32xf32>,
    %295 = vector.extract_strided_slice %292 {offsets = [1, 0], sizes = [1, 32], strides = [1, 1]} : vector<4x64xf32> to vector<1x32xf32>
    %c13_62 = arith.constant 13 : index
    %c0_63 = arith.constant 0 : index
    %296 = vector.load %arg12[%c13_62, %c0_63] : memref<16x64xf32, #tpu.memory_space<vmem>>, vector<1x32xf32>
    tpu.vector_store %arg12[%c13_62, %c0_63], %295 {strides = array<i32>} : memref<16x64xf32, #tpu.memory_space<vmem>>, vector<1x32xf32>,
    %297 = vector.extract_strided_slice %292 {offsets = [2, 32], sizes = [1, 32], strides = [1, 1]} : vector<4x64xf32> to vector<1x32xf32>
    %c2_64 = arith.constant 2 : index
    %c32_65 = arith.constant 32 : index
    %298 = vector.load %arg12[%c2_64, %c32_65] : memref<16x64xf32, #tpu.memory_space<vmem>>, vector<1x32xf32>
    tpu.vector_store %arg12[%c2_64, %c32_65], %297 {strides = array<i32>} : memref<16x64xf32, #tpu.memory_space<vmem>>, vector<1x32xf32>,
    %299 = vector.extract_strided_slice %292 {offsets = [3, 32], sizes = [1, 32], strides = [1, 1]} : vector<4x64xf32> to vector<1x32xf32>
    %c10_66 = arith.constant 10 : index
    %c32_67 = arith.constant 32 : index
    %300 = vector.load %arg12[%c10_66, %c32_67] : memref<16x64xf32, #tpu.memory_space<vmem>>, vector<1x32xf32>
    tpu.vector_store %arg12[%c10_66, %c32_67], %299 {strides = array<i32>} : memref<16x64xf32, #tpu.memory_space<vmem>>, vector<1x32xf32>,
    %301 = vector.extract_strided_slice %52 {offsets = [6, 0], sizes = [1, 256], strides = [1, 1]} : vector<16x256xf32> to vector<1x256xf32>
    %302 = vector.extract_strided_slice %52 {offsets = [14, 0], sizes = [1, 256], strides = [1, 1]} : vector<16x256xf32> to vector<1x256xf32>
    %303 = vector.extract_strided_slice %52 {offsets = [1, 0], sizes = [1, 256], strides = [1, 1]} : vector<16x256xf32> to vector<1x256xf32>
    %304 = vector.extract_strided_slice %52 {offsets = [9, 0], sizes = [1, 256], strides = [1, 1]} : vector<16x256xf32> to vector<1x256xf32>
    %305 = tpu.concatenate %301, %302, %303, %304 in 0 : vector<1x256xf32>, vector<1x256xf32>, vector<1x256xf32>, vector<1x256xf32> -> vector<4x256xf32>
    %306 = vector.extract_strided_slice %37 {offsets = [0, 6], sizes = [4, 1], strides = [1, 1]} : vector<4x8xf32> to vector<4x1xf32>
    %307 = vector.shape_cast %306 : vector<4x1xf32> to vector<4x1xf32>
    %308 = vector.broadcast %307 : vector<4x1xf32> to vector<4x64xf32>
    %cst_68 = arith.constant dense<0.000000e+00> : vector<4x256xf32>
    %309 = tpu.matmul %291, %47, %cst_68 {dimension_numbers = #tpu.dot_dimension_numbers<[1], [0], [0], [1], [0, 0, 1, 1], [], []>} : vector<4x64xf32>, vector<64x256xf32>, vector<4x256xf32> -> vector<4x256xf32>
    %310 = arith.addf %305, %309 : vector<4x256xf32>
    %311 = arith.mulf %310, %46 : vector<4x256xf32>
    %312 = math.tanh %311 : vector<4x256xf32>
    %cst_69 = arith.constant 5.000000e-01 : f32
    %313 = vector.broadcast %cst_69 : f32 to vector<4x256xf32>
    %314 = arith.mulf %313, %312 : vector<4x256xf32>
    %cst_70 = arith.constant 5.000000e-01 : f32
    %315 = vector.broadcast %cst_70 : f32 to vector<4x256xf32>
    %316 = arith.addf %315, %314 : vector<4x256xf32>
    %317 = arith.select %43, %312, %316 : vector<4x256xi1>, vector<4x256xf32>
    %318 = vector.extract_strided_slice %317 {offsets = [0, 0], sizes = [4, 64], strides = [1, 1]} : vector<4x256xf32> to vector<4x64xf32>
    %319 = vector.extract_strided_slice %317 {offsets = [0, 64], sizes = [4, 64], strides = [1, 1]} : vector<4x256xf32> to vector<4x64xf32>
    %320 = vector.extract_strided_slice %317 {offsets = [0, 128], sizes = [4, 64], strides = [1, 1]} : vector<4x256xf32> to vector<4x64xf32>
    %321 = vector.extract_strided_slice %317 {offsets = [0, 192], sizes = [4, 64], strides = [1, 1]} : vector<4x256xf32> to vector<4x64xf32>
    %322 = arith.mulf %319, %288 : vector<4x64xf32>
    %323 = arith.mulf %318, %320 : vector<4x64xf32>
    %324 = arith.addf %322, %323 : vector<4x64xf32>
    %325 = math.tanh %324 : vector<4x64xf32>
    %326 = arith.mulf %321, %325 : vector<4x64xf32>
    %327 = arith.subf %324, %288 : vector<4x64xf32>
    %328 = arith.mulf %308, %327 : vector<4x64xf32>
    %329 = arith.addf %288, %328 : vector<4x64xf32>
    %330 = arith.subf %326, %291 : vector<4x64xf32>
    %331 = arith.mulf %308, %330 : vector<4x64xf32>
    %332 = arith.addf %291, %331 : vector<4x64xf32>
    %333 = arith.mulf %308, %326 : vector<4x64xf32>
    %334 = vector.extract_strided_slice %333 {offsets = [0, 0], sizes = [1, 32], strides = [1, 1]} : vector<4x64xf32> to vector<1x32xf32>
    %c6_71 = arith.constant 6 : index
    %c0_72 = arith.constant 0 : index
    %335 = vector.load %arg12[%c6_71, %c0_72] : memref<16x64xf32, #tpu.memory_space<vmem>>, vector<1x32xf32>
    tpu.vector_store %arg12[%c6_71, %c0_72], %334 {strides = array<i32>} : memref<16x64xf32, #tpu.memory_space<vmem>>, vector<1x32xf32>,
    %336 = vector.extract_strided_slice %333 {offsets = [1, 0], sizes = [1, 32], strides = [1, 1]} : vector<4x64xf32> to vector<1x32xf32>
    %c14_73 = arith.constant 14 : index
    %c0_74 = arith.constant 0 : index
    %337 = vector.load %arg12[%c14_73, %c0_74] : memref<16x64xf32, #tpu.memory_space<vmem>>, vector<1x32xf32>
    tpu.vector_store %arg12[%c14_73, %c0_74], %336 {strides = array<i32>} : memref<16x64xf32, #tpu.memory_space<vmem>>, vector<1x32xf32>,
    %338 = vector.extract_strided_slice %333 {offsets = [2, 32], sizes = [1, 32], strides = [1, 1]} : vector<4x64xf32> to vector<1x32xf32>
    %c1_75 = arith.constant 1 : index
    %c32_76 = arith.constant 32 : index
    %339 = vector.load %arg12[%c1_75, %c32_76] : memref<16x64xf32, #tpu.memory_space<vmem>>, vector<1x32xf32>
    tpu.vector_store %arg12[%c1_75, %c32_76], %338 {strides = array<i32>} : memref<16x64xf32, #tpu.memory_space<vmem>>, vector<1x32xf32>,
    %340 = vector.extract_strided_slice %333 {offsets = [3, 32], sizes = [1, 32], strides = [1, 1]} : vector<4x64xf32> to vector<1x32xf32>
    %c9_77 = arith.constant 9 : index
    %c32_78 = arith.constant 32 : index
    %341 = vector.load %arg12[%c9_77, %c32_78] : memref<16x64xf32, #tpu.memory_space<vmem>>, vector<1x32xf32>
    tpu.vector_store %arg12[%c9_77, %c32_78], %340 {strides = array<i32>} : memref<16x64xf32, #tpu.memory_space<vmem>>, vector<1x32xf32>,
    %342 = vector.extract_strided_slice %52 {offsets = [7, 0], sizes = [1, 256], strides = [1, 1]} : vector<16x256xf32> to vector<1x256xf32>
    %343 = vector.extract_strided_slice %52 {offsets = [15, 0], sizes = [1, 256], strides = [1, 1]} : vector<16x256xf32> to vector<1x256xf32>
    %344 = vector.extract_strided_slice %52 {offsets = [0, 0], sizes = [1, 256], strides = [1, 1]} : vector<16x256xf32> to vector<1x256xf32>
    %345 = vector.extract_strided_slice %52 {offsets = [8, 0], sizes = [1, 256], strides = [1, 1]} : vector<16x256xf32> to vector<1x256xf32>
    %346 = tpu.concatenate %342, %343, %344, %345 in 0 : vector<1x256xf32>, vector<1x256xf32>, vector<1x256xf32>, vector<1x256xf32> -> vector<4x256xf32>
    %347 = vector.extract_strided_slice %37 {offsets = [0, 7], sizes = [4, 1], strides = [1, 1]} : vector<4x8xf32> to vector<4x1xf32>
    %348 = vector.shape_cast %347 : vector<4x1xf32> to vector<4x1xf32>
    %349 = vector.broadcast %348 : vector<4x1xf32> to vector<4x64xf32>
    %cst_79 = arith.constant dense<0.000000e+00> : vector<4x256xf32>
    %350 = tpu.matmul %332, %47, %cst_79 {dimension_numbers = #tpu.dot_dimension_numbers<[1], [0], [0], [1], [0, 0, 1, 1], [], []>} : vector<4x64xf32>, vector<64x256xf32>, vector<4x256xf32> -> vector<4x256xf32>
    %351 = arith.addf %346, %350 : vector<4x256xf32>
    %352 = arith.mulf %351, %46 : vector<4x256xf32>
    %353 = math.tanh %352 : vector<4x256xf32>
    %cst_80 = arith.constant 5.000000e-01 : f32
    %354 = vector.broadcast %cst_80 : f32 to vector<4x256xf32>
    %355 = arith.mulf %354, %353 : vector<4x256xf32>
    %cst_81 = arith.constant 5.000000e-01 : f32
    %356 = vector.broadcast %cst_81 : f32 to vector<4x256xf32>
    %357 = arith.addf %356, %355 : vector<4x256xf32>
    %358 = arith.select %43, %353, %357 : vector<4x256xi1>, vector<4x256xf32>
    %359 = vector.extract_strided_slice %358 {offsets = [0, 0], sizes = [4, 64], strides = [1, 1]} : vector<4x256xf32> to vector<4x64xf32>
    %360 = vector.extract_strided_slice %358 {offsets = [0, 64], sizes = [4, 64], strides = [1, 1]} : vector<4x256xf32> to vector<4x64xf32>
    %361 = vector.extract_strided_slice %358 {offsets = [0, 128], sizes = [4, 64], strides = [1, 1]} : vector<4x256xf32> to vector<4x64xf32>
    %362 = vector.extract_strided_slice %358 {offsets = [0, 192], sizes = [4, 64], strides = [1, 1]} : vector<4x256xf32> to vector<4x64xf32>
    %363 = arith.mulf %360, %329 : vector<4x64xf32>
    %364 = arith.mulf %359, %361 : vector<4x64xf32>
    %365 = arith.addf %363, %364 : vector<4x64xf32>
    %366 = math.tanh %365 : vector<4x64xf32>
    %367 = arith.mulf %362, %366 : vector<4x64xf32>
    %368 = arith.mulf %349, %367 : vector<4x64xf32>
    %369 = vector.extract_strided_slice %368 {offsets = [0, 0], sizes = [1, 32], strides = [1, 1]} : vector<4x64xf32> to vector<1x32xf32>
    %c7_82 = arith.constant 7 : index
    %c0_83 = arith.constant 0 : index
    %370 = vector.load %arg12[%c7_82, %c0_83] : memref<16x64xf32, #tpu.memory_space<vmem>>, vector<1x32xf32>
    tpu.vector_store %arg12[%c7_82, %c0_83], %369 {strides = array<i32>} : memref<16x64xf32, #tpu.memory_space<vmem>>, vector<1x32xf32>,
    %371 = vector.extract_strided_slice %368 {offsets = [1, 0], sizes = [1, 32], strides = [1, 1]} : vector<4x64xf32> to vector<1x32xf32>
    %c15_84 = arith.constant 15 : index
    %c0_85 = arith.constant 0 : index
    %372 = vector.load %arg12[%c15_84, %c0_85] : memref<16x64xf32, #tpu.memory_space<vmem>>, vector<1x32xf32>
    tpu.vector_store %arg12[%c15_84, %c0_85], %371 {strides = array<i32>} : memref<16x64xf32, #tpu.memory_space<vmem>>, vector<1x32xf32>,
    %373 = vector.extract_strided_slice %368 {offsets = [2, 32], sizes = [1, 32], strides = [1, 1]} : vector<4x64xf32> to vector<1x32xf32>
    %c0_86 = arith.constant 0 : index
    %c32_87 = arith.constant 32 : index
    %374 = vector.load %arg12[%c0_86, %c32_87] : memref<16x64xf32, #tpu.memory_space<vmem>>, vector<1x32xf32>
    tpu.vector_store %arg12[%c0_86, %c32_87], %373 {strides = array<i32>} : memref<16x64xf32, #tpu.memory_space<vmem>>, vector<1x32xf32>,
    %375 = vector.extract_strided_slice %368 {offsets = [3, 32], sizes = [1, 32], strides = [1, 1]} : vector<4x64xf32> to vector<1x32xf32>
    %c8_88 = arith.constant 8 : index
    %c32_89 = arith.constant 32 : index
    %376 = vector.load %arg12[%c8_88, %c32_89] : memref<16x64xf32, #tpu.memory_space<vmem>>, vector<1x32xf32>
    tpu.vector_store %arg12[%c8_88, %c32_89], %375 {strides = array<i32>} : memref<16x64xf32, #tpu.memory_space<vmem>>, vector<1x32xf32>,
    %c0_90 = arith.constant 0 : index
    %c0_91 = arith.constant 0 : index
    %377 = vector.load %arg12[%c0_90, %c0_91] : memref<16x64xf32, #tpu.memory_space<vmem>>, vector<16x64xf32>
    %c0_92 = arith.constant 0 : index
    %c0_93 = arith.constant 0 : index
    %378 = vector.load %arg6[%c0_92, %c0_93] : memref<64x256xf32, #tpu.memory_space<vmem>>, vector<64x256xf32>
    %c0_94 = arith.constant 0 : index
    %c0_95 = arith.constant 0 : index
    %379 = vector.load %arg5[%c0_94, %c0_95] : memref<64x256xf32, #tpu.memory_space<vmem>>, vector<64x256xf32>
    %cst_96 = arith.constant dense<0.000000e+00> : vector<16x256xf32>
    %380 = tpu.matmul %377, %379, %cst_96 {dimension_numbers = #tpu.dot_dimension_numbers<[1], [0], [0], [1], [0, 0, 1, 1], [], []>} : vector<16x64xf32>, vector<64x256xf32>, vector<16x256xf32> -> vector<16x256xf32>
    %c0_97 = arith.constant 0 : index
    %c0_98 = arith.constant 0 : index
    %381 = vector.load %arg7[%c0_97, %c0_98] : memref<1x256xf32, #tpu.memory_space<vmem>>, vector<1x256xf32>
    %382 = vector.broadcast %381 : vector<1x256xf32> to vector<16x256xf32>
    %383 = arith.addf %380, %382 : vector<16x256xf32>
    %cst_99 = arith.constant 0.000000e+00 : f32
    %384 = vector.broadcast %cst_99 : f32 to vector<4x64xf32>
    %cst_100 = arith.constant 0.000000e+00 : f32
    %385 = vector.broadcast %cst_100 : f32 to vector<4x64xf32>
    %386 = vector.extract_strided_slice %383 {offsets = [0, 0], sizes = [1, 256], strides = [1, 1]} : vector<16x256xf32> to vector<1x256xf32>
    %387 = vector.extract_strided_slice %383 {offsets = [8, 0], sizes = [1, 256], strides = [1, 1]} : vector<16x256xf32> to vector<1x256xf32>
    %388 = vector.extract_strided_slice %383 {offsets = [7, 0], sizes = [1, 256], strides = [1, 1]} : vector<16x256xf32> to vector<1x256xf32>
    %389 = vector.extract_strided_slice %383 {offsets = [15, 0], sizes = [1, 256], strides = [1, 1]} : vector<16x256xf32> to vector<1x256xf32>
    %390 = tpu.concatenate %386, %387, %388, %389 in 0 : vector<1x256xf32>, vector<1x256xf32>, vector<1x256xf32>, vector<1x256xf32> -> vector<4x256xf32>
    %391 = vector.extract_strided_slice %37 {offsets = [0, 0], sizes = [4, 1], strides = [1, 1]} : vector<4x8xf32> to vector<4x1xf32>
    %392 = vector.shape_cast %391 : vector<4x1xf32> to vector<4x1xf32>
    %393 = vector.broadcast %392 : vector<4x1xf32> to vector<4x64xf32>
    %cst_101 = arith.constant dense<0.000000e+00> : vector<4x256xf32>
    %394 = tpu.matmul %384, %378, %cst_101 {dimension_numbers = #tpu.dot_dimension_numbers<[1], [0], [0], [1], [0, 0, 1, 1], [], []>} : vector<4x64xf32>, vector<64x256xf32>, vector<4x256xf32> -> vector<4x256xf32>
    %395 = arith.addf %390, %394 : vector<4x256xf32>
    %396 = arith.mulf %395, %46 : vector<4x256xf32>
    %397 = math.tanh %396 : vector<4x256xf32>
    %cst_102 = arith.constant 5.000000e-01 : f32
    %398 = vector.broadcast %cst_102 : f32 to vector<4x256xf32>
    %399 = arith.mulf %398, %397 : vector<4x256xf32>
    %cst_103 = arith.constant 5.000000e-01 : f32
    %400 = vector.broadcast %cst_103 : f32 to vector<4x256xf32>
    %401 = arith.addf %400, %399 : vector<4x256xf32>
    %402 = arith.select %43, %397, %401 : vector<4x256xi1>, vector<4x256xf32>
    %403 = vector.extract_strided_slice %402 {offsets = [0, 0], sizes = [4, 64], strides = [1, 1]} : vector<4x256xf32> to vector<4x64xf32>
    %404 = vector.extract_strided_slice %402 {offsets = [0, 64], sizes = [4, 64], strides = [1, 1]} : vector<4x256xf32> to vector<4x64xf32>
    %405 = vector.extract_strided_slice %402 {offsets = [0, 128], sizes = [4, 64], strides = [1, 1]} : vector<4x256xf32> to vector<4x64xf32>
    %406 = vector.extract_strided_slice %402 {offsets = [0, 192], sizes = [4, 64], strides = [1, 1]} : vector<4x256xf32> to vector<4x64xf32>
    %407 = arith.mulf %404, %385 : vector<4x64xf32>
    %408 = arith.mulf %403, %405 : vector<4x64xf32>
    %409 = arith.addf %407, %408 : vector<4x64xf32>
    %410 = math.tanh %409 : vector<4x64xf32>
    %411 = arith.mulf %406, %410 : vector<4x64xf32>
    %412 = arith.subf %409, %385 : vector<4x64xf32>
    %413 = arith.mulf %393, %412 : vector<4x64xf32>
    %414 = arith.addf %385, %413 : vector<4x64xf32>
    %415 = arith.subf %411, %384 : vector<4x64xf32>
    %416 = arith.mulf %393, %415 : vector<4x64xf32>
    %417 = arith.addf %384, %416 : vector<4x64xf32>
    %418 = arith.mulf %393, %411 : vector<4x64xf32>
    %419 = vector.extract_strided_slice %418 {offsets = [0, 0], sizes = [1, 32], strides = [1, 1]} : vector<4x64xf32> to vector<1x32xf32>
    %c0_104 = arith.constant 0 : index
    %c0_105 = arith.constant 0 : index
    %420 = vector.load %arg13[%c0_104, %c0_105] : memref<16x64xf32, #tpu.memory_space<vmem>>, vector<1x32xf32>
    tpu.vector_store %arg13[%c0_104, %c0_105], %419 {strides = array<i32>} : memref<16x64xf32, #tpu.memory_space<vmem>>, vector<1x32xf32>,
    %421 = vector.extract_strided_slice %418 {offsets = [1, 0], sizes = [1, 32], strides = [1, 1]} : vector<4x64xf32> to vector<1x32xf32>
    %c8_106 = arith.constant 8 : index
    %c0_107 = arith.constant 0 : index
    %422 = vector.load %arg13[%c8_106, %c0_107] : memref<16x64xf32, #tpu.memory_space<vmem>>, vector<1x32xf32>
    tpu.vector_store %arg13[%c8_106, %c0_107], %421 {strides = array<i32>} : memref<16x64xf32, #tpu.memory_space<vmem>>, vector<1x32xf32>,
    %423 = vector.extract_strided_slice %418 {offsets = [2, 32], sizes = [1, 32], strides = [1, 1]} : vector<4x64xf32> to vector<1x32xf32>
    %c7_108 = arith.constant 7 : index
    %c32_109 = arith.constant 32 : index
    %424 = vector.load %arg13[%c7_108, %c32_109] : memref<16x64xf32, #tpu.memory_space<vmem>>, vector<1x32xf32>
    tpu.vector_store %arg13[%c7_108, %c32_109], %423 {strides = array<i32>} : memref<16x64xf32, #tpu.memory_space<vmem>>, vector<1x32xf32>,
    %425 = vector.extract_strided_slice %418 {offsets = [3, 32], sizes = [1, 32], strides = [1, 1]} : vector<4x64xf32> to vector<1x32xf32>
    %c15_110 = arith.constant 15 : index
    %c32_111 = arith.constant 32 : index
    %426 = vector.load %arg13[%c15_110, %c32_111] : memref<16x64xf32, #tpu.memory_space<vmem>>, vector<1x32xf32>
    tpu.vector_store %arg13[%c15_110, %c32_111], %425 {strides = array<i32>} : memref<16x64xf32, #tpu.memory_space<vmem>>, vector<1x32xf32>,
    %427 = vector.extract_strided_slice %383 {offsets = [1, 0], sizes = [1, 256], strides = [1, 1]} : vector<16x256xf32> to vector<1x256xf32>
    %428 = vector.extract_strided_slice %383 {offsets = [9, 0], sizes = [1, 256], strides = [1, 1]} : vector<16x256xf32> to vector<1x256xf32>
    %429 = vector.extract_strided_slice %383 {offsets = [6, 0], sizes = [1, 256], strides = [1, 1]} : vector<16x256xf32> to vector<1x256xf32>
    %430 = vector.extract_strided_slice %383 {offsets = [14, 0], sizes = [1, 256], strides = [1, 1]} : vector<16x256xf32> to vector<1x256xf32>
    %431 = tpu.concatenate %427, %428, %429, %430 in 0 : vector<1x256xf32>, vector<1x256xf32>, vector<1x256xf32>, vector<1x256xf32> -> vector<4x256xf32>
    %432 = vector.extract_strided_slice %37 {offsets = [0, 1], sizes = [4, 1], strides = [1, 1]} : vector<4x8xf32> to vector<4x1xf32>
    %433 = vector.shape_cast %432 : vector<4x1xf32> to vector<4x1xf32>
    %434 = vector.broadcast %433 : vector<4x1xf32> to vector<4x64xf32>
    %cst_112 = arith.constant dense<0.000000e+00> : vector<4x256xf32>
    %435 = tpu.matmul %417, %378, %cst_112 {dimension_numbers = #tpu.dot_dimension_numbers<[1], [0], [0], [1], [0, 0, 1, 1], [], []>} : vector<4x64xf32>, vector<64x256xf32>, vector<4x256xf32> -> vector<4x256xf32>
    %436 = arith.addf %431, %435 : vector<4x256xf32>
    %437 = arith.mulf %436, %46 : vector<4x256xf32>
    %438 = math.tanh %437 : vector<4x256xf32>
    %cst_113 = arith.constant 5.000000e-01 : f32
    %439 = vector.broadcast %cst_113 : f32 to vector<4x256xf32>
    %440 = arith.mulf %439, %438 : vector<4x256xf32>
    %cst_114 = arith.constant 5.000000e-01 : f32
    %441 = vector.broadcast %cst_114 : f32 to vector<4x256xf32>
    %442 = arith.addf %441, %440 : vector<4x256xf32>
    %443 = arith.select %43, %438, %442 : vector<4x256xi1>, vector<4x256xf32>
    %444 = vector.extract_strided_slice %443 {offsets = [0, 0], sizes = [4, 64], strides = [1, 1]} : vector<4x256xf32> to vector<4x64xf32>
    %445 = vector.extract_strided_slice %443 {offsets = [0, 64], sizes = [4, 64], strides = [1, 1]} : vector<4x256xf32> to vector<4x64xf32>
    %446 = vector.extract_strided_slice %443 {offsets = [0, 128], sizes = [4, 64], strides = [1, 1]} : vector<4x256xf32> to vector<4x64xf32>
    %447 = vector.extract_strided_slice %443 {offsets = [0, 192], sizes = [4, 64], strides = [1, 1]} : vector<4x256xf32> to vector<4x64xf32>
    %448 = arith.mulf %445, %414 : vector<4x64xf32>
    %449 = arith.mulf %444, %446 : vector<4x64xf32>
    %450 = arith.addf %448, %449 : vector<4x64xf32>
    %451 = math.tanh %450 : vector<4x64xf32>
    %452 = arith.mulf %447, %451 : vector<4x64xf32>
    %453 = arith.subf %450, %414 : vector<4x64xf32>
    %454 = arith.mulf %434, %453 : vector<4x64xf32>
    %455 = arith.addf %414, %454 : vector<4x64xf32>
    %456 = arith.subf %452, %417 : vector<4x64xf32>
    %457 = arith.mulf %434, %456 : vector<4x64xf32>
    %458 = arith.addf %417, %457 : vector<4x64xf32>
    %459 = arith.mulf %434, %452 : vector<4x64xf32>
    %460 = vector.extract_strided_slice %459 {offsets = [0, 0], sizes = [1, 32], strides = [1, 1]} : vector<4x64xf32> to vector<1x32xf32>
    %c1_115 = arith.constant 1 : index
    %c0_116 = arith.constant 0 : index
    %461 = vector.load %arg13[%c1_115, %c0_116] : memref<16x64xf32, #tpu.memory_space<vmem>>, vector<1x32xf32>
    tpu.vector_store %arg13[%c1_115, %c0_116], %460 {strides = array<i32>} : memref<16x64xf32, #tpu.memory_space<vmem>>, vector<1x32xf32>,
    %462 = vector.extract_strided_slice %459 {offsets = [1, 0], sizes = [1, 32], strides = [1, 1]} : vector<4x64xf32> to vector<1x32xf32>
    %c9_117 = arith.constant 9 : index
    %c0_118 = arith.constant 0 : index
    %463 = vector.load %arg13[%c9_117, %c0_118] : memref<16x64xf32, #tpu.memory_space<vmem>>, vector<1x32xf32>
    tpu.vector_store %arg13[%c9_117, %c0_118], %462 {strides = array<i32>} : memref<16x64xf32, #tpu.memory_space<vmem>>, vector<1x32xf32>,
    %464 = vector.extract_strided_slice %459 {offsets = [2, 32], sizes = [1, 32], strides = [1, 1]} : vector<4x64xf32> to vector<1x32xf32>
    %c6_119 = arith.constant 6 : index
    %c32_120 = arith.constant 32 : index
    %465 = vector.load %arg13[%c6_119, %c32_120] : memref<16x64xf32, #tpu.memory_space<vmem>>, vector<1x32xf32>
    tpu.vector_store %arg13[%c6_119, %c32_120], %464 {strides = array<i32>} : memref<16x64xf32, #tpu.memory_space<vmem>>, vector<1x32xf32>,
    %466 = vector.extract_strided_slice %459 {offsets = [3, 32], sizes = [1, 32], strides = [1, 1]} : vector<4x64xf32> to vector<1x32xf32>
    %c14_121 = arith.constant 14 : index
    %c32_122 = arith.constant 32 : index
    %467 = vector.load %arg13[%c14_121, %c32_122] : memref<16x64xf32, #tpu.memory_space<vmem>>, vector<1x32xf32>
    tpu.vector_store %arg13[%c14_121, %c32_122], %466 {strides = array<i32>} : memref<16x64xf32, #tpu.memory_space<vmem>>, vector<1x32xf32>,
    %468 = vector.extract_strided_slice %383 {offsets = [2, 0], sizes = [1, 256], strides = [1, 1]} : vector<16x256xf32> to vector<1x256xf32>
    %469 = vector.extract_strided_slice %383 {offsets = [10, 0], sizes = [1, 256], strides = [1, 1]} : vector<16x256xf32> to vector<1x256xf32>
    %470 = vector.extract_strided_slice %383 {offsets = [5, 0], sizes = [1, 256], strides = [1, 1]} : vector<16x256xf32> to vector<1x256xf32>
    %471 = vector.extract_strided_slice %383 {offsets = [13, 0], sizes = [1, 256], strides = [1, 1]} : vector<16x256xf32> to vector<1x256xf32>
    %472 = tpu.concatenate %468, %469, %470, %471 in 0 : vector<1x256xf32>, vector<1x256xf32>, vector<1x256xf32>, vector<1x256xf32> -> vector<4x256xf32>
    %473 = vector.extract_strided_slice %37 {offsets = [0, 2], sizes = [4, 1], strides = [1, 1]} : vector<4x8xf32> to vector<4x1xf32>
    %474 = vector.shape_cast %473 : vector<4x1xf32> to vector<4x1xf32>
    %475 = vector.broadcast %474 : vector<4x1xf32> to vector<4x64xf32>
    %cst_123 = arith.constant dense<0.000000e+00> : vector<4x256xf32>
    %476 = tpu.matmul %458, %378, %cst_123 {dimension_numbers = #tpu.dot_dimension_numbers<[1], [0], [0], [1], [0, 0, 1, 1], [], []>} : vector<4x64xf32>, vector<64x256xf32>, vector<4x256xf32> -> vector<4x256xf32>
    %477 = arith.addf %472, %476 : vector<4x256xf32>
    %478 = arith.mulf %477, %46 : vector<4x256xf32>
    %479 = math.tanh %478 : vector<4x256xf32>
    %cst_124 = arith.constant 5.000000e-01 : f32
    %480 = vector.broadcast %cst_124 : f32 to vector<4x256xf32>
    %481 = arith.mulf %480, %479 : vector<4x256xf32>
    %cst_125 = arith.constant 5.000000e-01 : f32
    %482 = vector.broadcast %cst_125 : f32 to vector<4x256xf32>
    %483 = arith.addf %482, %481 : vector<4x256xf32>
    %484 = arith.select %43, %479, %483 : vector<4x256xi1>, vector<4x256xf32>
    %485 = vector.extract_strided_slice %484 {offsets = [0, 0], sizes = [4, 64], strides = [1, 1]} : vector<4x256xf32> to vector<4x64xf32>
    %486 = vector.extract_strided_slice %484 {offsets = [0, 64], sizes = [4, 64], strides = [1, 1]} : vector<4x256xf32> to vector<4x64xf32>
    %487 = vector.extract_strided_slice %484 {offsets = [0, 128], sizes = [4, 64], strides = [1, 1]} : vector<4x256xf32> to vector<4x64xf32>
    %488 = vector.extract_strided_slice %484 {offsets = [0, 192], sizes = [4, 64], strides = [1, 1]} : vector<4x256xf32> to vector<4x64xf32>
    %489 = arith.mulf %486, %455 : vector<4x64xf32>
    %490 = arith.mulf %485, %487 : vector<4x64xf32>
    %491 = arith.addf %489, %490 : vector<4x64xf32>
    %492 = math.tanh %491 : vector<4x64xf32>
    %493 = arith.mulf %488, %492 : vector<4x64xf32>
    %494 = arith.subf %491, %455 : vector<4x64xf32>
    %495 = arith.mulf %475, %494 : vector<4x64xf32>
    %496 = arith.addf %455, %495 : vector<4x64xf32>
    %497 = arith.subf %493, %458 : vector<4x64xf32>
    %498 = arith.mulf %475, %497 : vector<4x64xf32>
    %499 = arith.addf %458, %498 : vector<4x64xf32>
    %500 = arith.mulf %475, %493 : vector<4x64xf32>
    %501 = vector.extract_strided_slice %500 {offsets = [0, 0], sizes = [1, 32], strides = [1, 1]} : vector<4x64xf32> to vector<1x32xf32>
    %c2_126 = arith.constant 2 : index
    %c0_127 = arith.constant 0 : index
    %502 = vector.load %arg13[%c2_126, %c0_127] : memref<16x64xf32, #tpu.memory_space<vmem>>, vector<1x32xf32>
    tpu.vector_store %arg13[%c2_126, %c0_127], %501 {strides = array<i32>} : memref<16x64xf32, #tpu.memory_space<vmem>>, vector<1x32xf32>,
    %503 = vector.extract_strided_slice %500 {offsets = [1, 0], sizes = [1, 32], strides = [1, 1]} : vector<4x64xf32> to vector<1x32xf32>
    %c10_128 = arith.constant 10 : index
    %c0_129 = arith.constant 0 : index
    %504 = vector.load %arg13[%c10_128, %c0_129] : memref<16x64xf32, #tpu.memory_space<vmem>>, vector<1x32xf32>
    tpu.vector_store %arg13[%c10_128, %c0_129], %503 {strides = array<i32>} : memref<16x64xf32, #tpu.memory_space<vmem>>, vector<1x32xf32>,
    %505 = vector.extract_strided_slice %500 {offsets = [2, 32], sizes = [1, 32], strides = [1, 1]} : vector<4x64xf32> to vector<1x32xf32>
    %c5_130 = arith.constant 5 : index
    %c32_131 = arith.constant 32 : index
    %506 = vector.load %arg13[%c5_130, %c32_131] : memref<16x64xf32, #tpu.memory_space<vmem>>, vector<1x32xf32>
    tpu.vector_store %arg13[%c5_130, %c32_131], %505 {strides = array<i32>} : memref<16x64xf32, #tpu.memory_space<vmem>>, vector<1x32xf32>,
    %507 = vector.extract_strided_slice %500 {offsets = [3, 32], sizes = [1, 32], strides = [1, 1]} : vector<4x64xf32> to vector<1x32xf32>
    %c13_132 = arith.constant 13 : index
    %c32_133 = arith.constant 32 : index
    %508 = vector.load %arg13[%c13_132, %c32_133] : memref<16x64xf32, #tpu.memory_space<vmem>>, vector<1x32xf32>
    tpu.vector_store %arg13[%c13_132, %c32_133], %507 {strides = array<i32>} : memref<16x64xf32, #tpu.memory_space<vmem>>, vector<1x32xf32>,
    %509 = vector.extract_strided_slice %383 {offsets = [3, 0], sizes = [1, 256], strides = [1, 1]} : vector<16x256xf32> to vector<1x256xf32>
    %510 = vector.extract_strided_slice %383 {offsets = [11, 0], sizes = [1, 256], strides = [1, 1]} : vector<16x256xf32> to vector<1x256xf32>
    %511 = vector.extract_strided_slice %383 {offsets = [4, 0], sizes = [1, 256], strides = [1, 1]} : vector<16x256xf32> to vector<1x256xf32>
    %512 = vector.extract_strided_slice %383 {offsets = [12, 0], sizes = [1, 256], strides = [1, 1]} : vector<16x256xf32> to vector<1x256xf32>
    %513 = tpu.concatenate %509, %510, %511, %512 in 0 : vector<1x256xf32>, vector<1x256xf32>, vector<1x256xf32>, vector<1x256xf32> -> vector<4x256xf32>
    %514 = vector.extract_strided_slice %37 {offsets = [0, 3], sizes = [4, 1], strides = [1, 1]} : vector<4x8xf32> to vector<4x1xf32>
    %515 = vector.shape_cast %514 : vector<4x1xf32> to vector<4x1xf32>
    %516 = vector.broadcast %515 : vector<4x1xf32> to vector<4x64xf32>
    %cst_134 = arith.constant dense<0.000000e+00> : vector<4x256xf32>
    %517 = tpu.matmul %499, %378, %cst_134 {dimension_numbers = #tpu.dot_dimension_numbers<[1], [0], [0], [1], [0, 0, 1, 1], [], []>} : vector<4x64xf32>, vector<64x256xf32>, vector<4x256xf32> -> vector<4x256xf32>
    %518 = arith.addf %513, %517 : vector<4x256xf32>
    %519 = arith.mulf %518, %46 : vector<4x256xf32>
    %520 = math.tanh %519 : vector<4x256xf32>
    %cst_135 = arith.constant 5.000000e-01 : f32
    %521 = vector.broadcast %cst_135 : f32 to vector<4x256xf32>
    %522 = arith.mulf %521, %520 : vector<4x256xf32>
    %cst_136 = arith.constant 5.000000e-01 : f32
    %523 = vector.broadcast %cst_136 : f32 to vector<4x256xf32>
    %524 = arith.addf %523, %522 : vector<4x256xf32>
    %525 = arith.select %43, %520, %524 : vector<4x256xi1>, vector<4x256xf32>
    %526 = vector.extract_strided_slice %525 {offsets = [0, 0], sizes = [4, 64], strides = [1, 1]} : vector<4x256xf32> to vector<4x64xf32>
    %527 = vector.extract_strided_slice %525 {offsets = [0, 64], sizes = [4, 64], strides = [1, 1]} : vector<4x256xf32> to vector<4x64xf32>
    %528 = vector.extract_strided_slice %525 {offsets = [0, 128], sizes = [4, 64], strides = [1, 1]} : vector<4x256xf32> to vector<4x64xf32>
    %529 = vector.extract_strided_slice %525 {offsets = [0, 192], sizes = [4, 64], strides = [1, 1]} : vector<4x256xf32> to vector<4x64xf32>
    %530 = arith.mulf %527, %496 : vector<4x64xf32>
    %531 = arith.mulf %526, %528 : vector<4x64xf32>
    %532 = arith.addf %530, %531 : vector<4x64xf32>
    %533 = math.tanh %532 : vector<4x64xf32>
    %534 = arith.mulf %529, %533 : vector<4x64xf32>
    %535 = arith.subf %532, %496 : vector<4x64xf32>
    %536 = arith.mulf %516, %535 : vector<4x64xf32>
    %537 = arith.addf %496, %536 : vector<4x64xf32>
    %538 = arith.subf %534, %499 : vector<4x64xf32>
    %539 = arith.mulf %516, %538 : vector<4x64xf32>
    %540 = arith.addf %499, %539 : vector<4x64xf32>
    %541 = arith.mulf %516, %534 : vector<4x64xf32>
    %542 = vector.extract_strided_slice %541 {offsets = [0, 0], sizes = [1, 32], strides = [1, 1]} : vector<4x64xf32> to vector<1x32xf32>
    %c3_137 = arith.constant 3 : index
    %c0_138 = arith.constant 0 : index
    %543 = vector.load %arg13[%c3_137, %c0_138] : memref<16x64xf32, #tpu.memory_space<vmem>>, vector<1x32xf32>
    tpu.vector_store %arg13[%c3_137, %c0_138], %542 {strides = array<i32>} : memref<16x64xf32, #tpu.memory_space<vmem>>, vector<1x32xf32>,
    %544 = vector.extract_strided_slice %541 {offsets = [1, 0], sizes = [1, 32], strides = [1, 1]} : vector<4x64xf32> to vector<1x32xf32>
    %c11_139 = arith.constant 11 : index
    %c0_140 = arith.constant 0 : index
    %545 = vector.load %arg13[%c11_139, %c0_140] : memref<16x64xf32, #tpu.memory_space<vmem>>, vector<1x32xf32>
    tpu.vector_store %arg13[%c11_139, %c0_140], %544 {strides = array<i32>} : memref<16x64xf32, #tpu.memory_space<vmem>>, vector<1x32xf32>,
    %546 = vector.extract_strided_slice %541 {offsets = [2, 32], sizes = [1, 32], strides = [1, 1]} : vector<4x64xf32> to vector<1x32xf32>
    %c4_141 = arith.constant 4 : index
    %c32_142 = arith.constant 32 : index
    %547 = vector.load %arg13[%c4_141, %c32_142] : memref<16x64xf32, #tpu.memory_space<vmem>>, vector<1x32xf32>
    tpu.vector_store %arg13[%c4_141, %c32_142], %546 {strides = array<i32>} : memref<16x64xf32, #tpu.memory_space<vmem>>, vector<1x32xf32>,
    %548 = vector.extract_strided_slice %541 {offsets = [3, 32], sizes = [1, 32], strides = [1, 1]} : vector<4x64xf32> to vector<1x32xf32>
    %c12_143 = arith.constant 12 : index
    %c32_144 = arith.constant 32 : index
    %549 = vector.load %arg13[%c12_143, %c32_144] : memref<16x64xf32, #tpu.memory_space<vmem>>, vector<1x32xf32>
    tpu.vector_store %arg13[%c12_143, %c32_144], %548 {strides = array<i32>} : memref<16x64xf32, #tpu.memory_space<vmem>>, vector<1x32xf32>,
    %550 = vector.extract_strided_slice %383 {offsets = [4, 0], sizes = [1, 256], strides = [1, 1]} : vector<16x256xf32> to vector<1x256xf32>
    %551 = vector.extract_strided_slice %383 {offsets = [12, 0], sizes = [1, 256], strides = [1, 1]} : vector<16x256xf32> to vector<1x256xf32>
    %552 = vector.extract_strided_slice %383 {offsets = [3, 0], sizes = [1, 256], strides = [1, 1]} : vector<16x256xf32> to vector<1x256xf32>
    %553 = vector.extract_strided_slice %383 {offsets = [11, 0], sizes = [1, 256], strides = [1, 1]} : vector<16x256xf32> to vector<1x256xf32>
    %554 = tpu.concatenate %550, %551, %552, %553 in 0 : vector<1x256xf32>, vector<1x256xf32>, vector<1x256xf32>, vector<1x256xf32> -> vector<4x256xf32>
    %555 = vector.extract_strided_slice %37 {offsets = [0, 4], sizes = [4, 1], strides = [1, 1]} : vector<4x8xf32> to vector<4x1xf32>
    %556 = vector.shape_cast %555 : vector<4x1xf32> to vector<4x1xf32>
    %557 = vector.broadcast %556 : vector<4x1xf32> to vector<4x64xf32>
    %cst_145 = arith.constant dense<0.000000e+00> : vector<4x256xf32>
    %558 = tpu.matmul %540, %378, %cst_145 {dimension_numbers = #tpu.dot_dimension_numbers<[1], [0], [0], [1], [0, 0, 1, 1], [], []>} : vector<4x64xf32>, vector<64x256xf32>, vector<4x256xf32> -> vector<4x256xf32>
    %559 = arith.addf %554, %558 : vector<4x256xf32>
    %560 = arith.mulf %559, %46 : vector<4x256xf32>
    %561 = math.tanh %560 : vector<4x256xf32>
    %cst_146 = arith.constant 5.000000e-01 : f32
    %562 = vector.broadcast %cst_146 : f32 to vector<4x256xf32>
    %563 = arith.mulf %562, %561 : vector<4x256xf32>
    %cst_147 = arith.constant 5.000000e-01 : f32
    %564 = vector.broadcast %cst_147 : f32 to vector<4x256xf32>
    %565 = arith.addf %564, %563 : vector<4x256xf32>
    %566 = arith.select %43, %561, %565 : vector<4x256xi1>, vector<4x256xf32>
    %567 = vector.extract_strided_slice %566 {offsets = [0, 0], sizes = [4, 64], strides = [1, 1]} : vector<4x256xf32> to vector<4x64xf32>
    %568 = vector.extract_strided_slice %566 {offsets = [0, 64], sizes = [4, 64], strides = [1, 1]} : vector<4x256xf32> to vector<4x64xf32>
    %569 = vector.extract_strided_slice %566 {offsets = [0, 128], sizes = [4, 64], strides = [1, 1]} : vector<4x256xf32> to vector<4x64xf32>
    %570 = vector.extract_strided_slice %566 {offsets = [0, 192], sizes = [4, 64], strides = [1, 1]} : vector<4x256xf32> to vector<4x64xf32>
    %571 = arith.mulf %568, %537 : vector<4x64xf32>
    %572 = arith.mulf %567, %569 : vector<4x64xf32>
    %573 = arith.addf %571, %572 : vector<4x64xf32>
    %574 = math.tanh %573 : vector<4x64xf32>
    %575 = arith.mulf %570, %574 : vector<4x64xf32>
    %576 = arith.subf %573, %537 : vector<4x64xf32>
    %577 = arith.mulf %557, %576 : vector<4x64xf32>
    %578 = arith.addf %537, %577 : vector<4x64xf32>
    %579 = arith.subf %575, %540 : vector<4x64xf32>
    %580 = arith.mulf %557, %579 : vector<4x64xf32>
    %581 = arith.addf %540, %580 : vector<4x64xf32>
    %582 = arith.mulf %557, %575 : vector<4x64xf32>
    %583 = vector.extract_strided_slice %582 {offsets = [0, 0], sizes = [1, 32], strides = [1, 1]} : vector<4x64xf32> to vector<1x32xf32>
    %c4_148 = arith.constant 4 : index
    %c0_149 = arith.constant 0 : index
    %584 = vector.load %arg13[%c4_148, %c0_149] : memref<16x64xf32, #tpu.memory_space<vmem>>, vector<1x32xf32>
    tpu.vector_store %arg13[%c4_148, %c0_149], %583 {strides = array<i32>} : memref<16x64xf32, #tpu.memory_space<vmem>>, vector<1x32xf32>,
    %585 = vector.extract_strided_slice %582 {offsets = [1, 0], sizes = [1, 32], strides = [1, 1]} : vector<4x64xf32> to vector<1x32xf32>
    %c12_150 = arith.constant 12 : index
    %c0_151 = arith.constant 0 : index
    %586 = vector.load %arg13[%c12_150, %c0_151] : memref<16x64xf32, #tpu.memory_space<vmem>>, vector<1x32xf32>
    tpu.vector_store %arg13[%c12_150, %c0_151], %585 {strides = array<i32>} : memref<16x64xf32, #tpu.memory_space<vmem>>, vector<1x32xf32>,
    %587 = vector.extract_strided_slice %582 {offsets = [2, 32], sizes = [1, 32], strides = [1, 1]} : vector<4x64xf32> to vector<1x32xf32>
    %c3_152 = arith.constant 3 : index
    %c32_153 = arith.constant 32 : index
    %588 = vector.load %arg13[%c3_152, %c32_153] : memref<16x64xf32, #tpu.memory_space<vmem>>, vector<1x32xf32>
    tpu.vector_store %arg13[%c3_152, %c32_153], %587 {strides = array<i32>} : memref<16x64xf32, #tpu.memory_space<vmem>>, vector<1x32xf32>,
    %589 = vector.extract_strided_slice %582 {offsets = [3, 32], sizes = [1, 32], strides = [1, 1]} : vector<4x64xf32> to vector<1x32xf32>
    %c11_154 = arith.constant 11 : index
    %c32_155 = arith.constant 32 : index
    %590 = vector.load %arg13[%c11_154, %c32_155] : memref<16x64xf32, #tpu.memory_space<vmem>>, vector<1x32xf32>
    tpu.vector_store %arg13[%c11_154, %c32_155], %589 {strides = array<i32>} : memref<16x64xf32, #tpu.memory_space<vmem>>, vector<1x32xf32>,
    %591 = vector.extract_strided_slice %383 {offsets = [5, 0], sizes = [1, 256], strides = [1, 1]} : vector<16x256xf32> to vector<1x256xf32>
    %592 = vector.extract_strided_slice %383 {offsets = [13, 0], sizes = [1, 256], strides = [1, 1]} : vector<16x256xf32> to vector<1x256xf32>
    %593 = vector.extract_strided_slice %383 {offsets = [2, 0], sizes = [1, 256], strides = [1, 1]} : vector<16x256xf32> to vector<1x256xf32>
    %594 = vector.extract_strided_slice %383 {offsets = [10, 0], sizes = [1, 256], strides = [1, 1]} : vector<16x256xf32> to vector<1x256xf32>
    %595 = tpu.concatenate %591, %592, %593, %594 in 0 : vector<1x256xf32>, vector<1x256xf32>, vector<1x256xf32>, vector<1x256xf32> -> vector<4x256xf32>
    %596 = vector.extract_strided_slice %37 {offsets = [0, 5], sizes = [4, 1], strides = [1, 1]} : vector<4x8xf32> to vector<4x1xf32>
    %597 = vector.shape_cast %596 : vector<4x1xf32> to vector<4x1xf32>
    %598 = vector.broadcast %597 : vector<4x1xf32> to vector<4x64xf32>
    %cst_156 = arith.constant dense<0.000000e+00> : vector<4x256xf32>
    %599 = tpu.matmul %581, %378, %cst_156 {dimension_numbers = #tpu.dot_dimension_numbers<[1], [0], [0], [1], [0, 0, 1, 1], [], []>} : vector<4x64xf32>, vector<64x256xf32>, vector<4x256xf32> -> vector<4x256xf32>
    %600 = arith.addf %595, %599 : vector<4x256xf32>
    %601 = arith.mulf %600, %46 : vector<4x256xf32>
    %602 = math.tanh %601 : vector<4x256xf32>
    %cst_157 = arith.constant 5.000000e-01 : f32
    %603 = vector.broadcast %cst_157 : f32 to vector<4x256xf32>
    %604 = arith.mulf %603, %602 : vector<4x256xf32>
    %cst_158 = arith.constant 5.000000e-01 : f32
    %605 = vector.broadcast %cst_158 : f32 to vector<4x256xf32>
    %606 = arith.addf %605, %604 : vector<4x256xf32>
    %607 = arith.select %43, %602, %606 : vector<4x256xi1>, vector<4x256xf32>
    %608 = vector.extract_strided_slice %607 {offsets = [0, 0], sizes = [4, 64], strides = [1, 1]} : vector<4x256xf32> to vector<4x64xf32>
    %609 = vector.extract_strided_slice %607 {offsets = [0, 64], sizes = [4, 64], strides = [1, 1]} : vector<4x256xf32> to vector<4x64xf32>
    %610 = vector.extract_strided_slice %607 {offsets = [0, 128], sizes = [4, 64], strides = [1, 1]} : vector<4x256xf32> to vector<4x64xf32>
    %611 = vector.extract_strided_slice %607 {offsets = [0, 192], sizes = [4, 64], strides = [1, 1]} : vector<4x256xf32> to vector<4x64xf32>
    %612 = arith.mulf %609, %578 : vector<4x64xf32>
    %613 = arith.mulf %608, %610 : vector<4x64xf32>
    %614 = arith.addf %612, %613 : vector<4x64xf32>
    %615 = math.tanh %614 : vector<4x64xf32>
    %616 = arith.mulf %611, %615 : vector<4x64xf32>
    %617 = arith.subf %614, %578 : vector<4x64xf32>
    %618 = arith.mulf %598, %617 : vector<4x64xf32>
    %619 = arith.addf %578, %618 : vector<4x64xf32>
    %620 = arith.subf %616, %581 : vector<4x64xf32>
    %621 = arith.mulf %598, %620 : vector<4x64xf32>
    %622 = arith.addf %581, %621 : vector<4x64xf32>
    %623 = arith.mulf %598, %616 : vector<4x64xf32>
    %624 = vector.extract_strided_slice %623 {offsets = [0, 0], sizes = [1, 32], strides = [1, 1]} : vector<4x64xf32> to vector<1x32xf32>
    %c5_159 = arith.constant 5 : index
    %c0_160 = arith.constant 0 : index
    %625 = vector.load %arg13[%c5_159, %c0_160] : memref<16x64xf32, #tpu.memory_space<vmem>>, vector<1x32xf32>
    tpu.vector_store %arg13[%c5_159, %c0_160], %624 {strides = array<i32>} : memref<16x64xf32, #tpu.memory_space<vmem>>, vector<1x32xf32>,
    %626 = vector.extract_strided_slice %623 {offsets = [1, 0], sizes = [1, 32], strides = [1, 1]} : vector<4x64xf32> to vector<1x32xf32>
    %c13_161 = arith.constant 13 : index
    %c0_162 = arith.constant 0 : index
    %627 = vector.load %arg13[%c13_161, %c0_162] : memref<16x64xf32, #tpu.memory_space<vmem>>, vector<1x32xf32>
    tpu.vector_store %arg13[%c13_161, %c0_162], %626 {strides = array<i32>} : memref<16x64xf32, #tpu.memory_space<vmem>>, vector<1x32xf32>,
    %628 = vector.extract_strided_slice %623 {offsets = [2, 32], sizes = [1, 32], strides = [1, 1]} : vector<4x64xf32> to vector<1x32xf32>
    %c2_163 = arith.constant 2 : index
    %c32_164 = arith.constant 32 : index
    %629 = vector.load %arg13[%c2_163, %c32_164] : memref<16x64xf32, #tpu.memory_space<vmem>>, vector<1x32xf32>
    tpu.vector_store %arg13[%c2_163, %c32_164], %628 {strides = array<i32>} : memref<16x64xf32, #tpu.memory_space<vmem>>, vector<1x32xf32>,
    %630 = vector.extract_strided_slice %623 {offsets = [3, 32], sizes = [1, 32], strides = [1, 1]} : vector<4x64xf32> to vector<1x32xf32>
    %c10_165 = arith.constant 10 : index
    %c32_166 = arith.constant 32 : index
    %631 = vector.load %arg13[%c10_165, %c32_166] : memref<16x64xf32, #tpu.memory_space<vmem>>, vector<1x32xf32>
    tpu.vector_store %arg13[%c10_165, %c32_166], %630 {strides = array<i32>} : memref<16x64xf32, #tpu.memory_space<vmem>>, vector<1x32xf32>,
    %632 = vector.extract_strided_slice %383 {offsets = [6, 0], sizes = [1, 256], strides = [1, 1]} : vector<16x256xf32> to vector<1x256xf32>
    %633 = vector.extract_strided_slice %383 {offsets = [14, 0], sizes = [1, 256], strides = [1, 1]} : vector<16x256xf32> to vector<1x256xf32>
    %634 = vector.extract_strided_slice %383 {offsets = [1, 0], sizes = [1, 256], strides = [1, 1]} : vector<16x256xf32> to vector<1x256xf32>
    %635 = vector.extract_strided_slice %383 {offsets = [9, 0], sizes = [1, 256], strides = [1, 1]} : vector<16x256xf32> to vector<1x256xf32>
    %636 = tpu.concatenate %632, %633, %634, %635 in 0 : vector<1x256xf32>, vector<1x256xf32>, vector<1x256xf32>, vector<1x256xf32> -> vector<4x256xf32>
    %637 = vector.extract_strided_slice %37 {offsets = [0, 6], sizes = [4, 1], strides = [1, 1]} : vector<4x8xf32> to vector<4x1xf32>
    %638 = vector.shape_cast %637 : vector<4x1xf32> to vector<4x1xf32>
    %639 = vector.broadcast %638 : vector<4x1xf32> to vector<4x64xf32>
    %cst_167 = arith.constant dense<0.000000e+00> : vector<4x256xf32>
    %640 = tpu.matmul %622, %378, %cst_167 {dimension_numbers = #tpu.dot_dimension_numbers<[1], [0], [0], [1], [0, 0, 1, 1], [], []>} : vector<4x64xf32>, vector<64x256xf32>, vector<4x256xf32> -> vector<4x256xf32>
    %641 = arith.addf %636, %640 : vector<4x256xf32>
    %642 = arith.mulf %641, %46 : vector<4x256xf32>
    %643 = math.tanh %642 : vector<4x256xf32>
    %cst_168 = arith.constant 5.000000e-01 : f32
    %644 = vector.broadcast %cst_168 : f32 to vector<4x256xf32>
    %645 = arith.mulf %644, %643 : vector<4x256xf32>
    %cst_169 = arith.constant 5.000000e-01 : f32
    %646 = vector.broadcast %cst_169 : f32 to vector<4x256xf32>
    %647 = arith.addf %646, %645 : vector<4x256xf32>
    %648 = arith.select %43, %643, %647 : vector<4x256xi1>, vector<4x256xf32>
    %649 = vector.extract_strided_slice %648 {offsets = [0, 0], sizes = [4, 64], strides = [1, 1]} : vector<4x256xf32> to vector<4x64xf32>
    %650 = vector.extract_strided_slice %648 {offsets = [0, 64], sizes = [4, 64], strides = [1, 1]} : vector<4x256xf32> to vector<4x64xf32>
    %651 = vector.extract_strided_slice %648 {offsets = [0, 128], sizes = [4, 64], strides = [1, 1]} : vector<4x256xf32> to vector<4x64xf32>
    %652 = vector.extract_strided_slice %648 {offsets = [0, 192], sizes = [4, 64], strides = [1, 1]} : vector<4x256xf32> to vector<4x64xf32>
    %653 = arith.mulf %650, %619 : vector<4x64xf32>
    %654 = arith.mulf %649, %651 : vector<4x64xf32>
    %655 = arith.addf %653, %654 : vector<4x64xf32>
    %656 = math.tanh %655 : vector<4x64xf32>
    %657 = arith.mulf %652, %656 : vector<4x64xf32>
    %658 = arith.subf %655, %619 : vector<4x64xf32>
    %659 = arith.mulf %639, %658 : vector<4x64xf32>
    %660 = arith.addf %619, %659 : vector<4x64xf32>
    %661 = arith.subf %657, %622 : vector<4x64xf32>
    %662 = arith.mulf %639, %661 : vector<4x64xf32>
    %663 = arith.addf %622, %662 : vector<4x64xf32>
    %664 = arith.mulf %639, %657 : vector<4x64xf32>
    %665 = vector.extract_strided_slice %664 {offsets = [0, 0], sizes = [1, 32], strides = [1, 1]} : vector<4x64xf32> to vector<1x32xf32>
    %c6_170 = arith.constant 6 : index
    %c0_171 = arith.constant 0 : index
    %666 = vector.load %arg13[%c6_170, %c0_171] : memref<16x64xf32, #tpu.memory_space<vmem>>, vector<1x32xf32>
    tpu.vector_store %arg13[%c6_170, %c0_171], %665 {strides = array<i32>} : memref<16x64xf32, #tpu.memory_space<vmem>>, vector<1x32xf32>,
    %667 = vector.extract_strided_slice %664 {offsets = [1, 0], sizes = [1, 32], strides = [1, 1]} : vector<4x64xf32> to vector<1x32xf32>
    %c14_172 = arith.constant 14 : index
    %c0_173 = arith.constant 0 : index
    %668 = vector.load %arg13[%c14_172, %c0_173] : memref<16x64xf32, #tpu.memory_space<vmem>>, vector<1x32xf32>
    tpu.vector_store %arg13[%c14_172, %c0_173], %667 {strides = array<i32>} : memref<16x64xf32, #tpu.memory_space<vmem>>, vector<1x32xf32>,
    %669 = vector.extract_strided_slice %664 {offsets = [2, 32], sizes = [1, 32], strides = [1, 1]} : vector<4x64xf32> to vector<1x32xf32>
    %c1_174 = arith.constant 1 : index
    %c32_175 = arith.constant 32 : index
    %670 = vector.load %arg13[%c1_174, %c32_175] : memref<16x64xf32, #tpu.memory_space<vmem>>, vector<1x32xf32>
    tpu.vector_store %arg13[%c1_174, %c32_175], %669 {strides = array<i32>} : memref<16x64xf32, #tpu.memory_space<vmem>>, vector<1x32xf32>,
    %671 = vector.extract_strided_slice %664 {offsets = [3, 32], sizes = [1, 32], strides = [1, 1]} : vector<4x64xf32> to vector<1x32xf32>
    %c9_176 = arith.constant 9 : index
    %c32_177 = arith.constant 32 : index
    %672 = vector.load %arg13[%c9_176, %c32_177] : memref<16x64xf32, #tpu.memory_space<vmem>>, vector<1x32xf32>
    tpu.vector_store %arg13[%c9_176, %c32_177], %671 {strides = array<i32>} : memref<16x64xf32, #tpu.memory_space<vmem>>, vector<1x32xf32>,
    %673 = vector.extract_strided_slice %383 {offsets = [7, 0], sizes = [1, 256], strides = [1, 1]} : vector<16x256xf32> to vector<1x256xf32>
    %674 = vector.extract_strided_slice %383 {offsets = [15, 0], sizes = [1, 256], strides = [1, 1]} : vector<16x256xf32> to vector<1x256xf32>
    %675 = vector.extract_strided_slice %383 {offsets = [0, 0], sizes = [1, 256], strides = [1, 1]} : vector<16x256xf32> to vector<1x256xf32>
    %676 = vector.extract_strided_slice %383 {offsets = [8, 0], sizes = [1, 256], strides = [1, 1]} : vector<16x256xf32> to vector<1x256xf32>
    %677 = tpu.concatenate %673, %674, %675, %676 in 0 : vector<1x256xf32>, vector<1x256xf32>, vector<1x256xf32>, vector<1x256xf32> -> vector<4x256xf32>
    %678 = vector.extract_strided_slice %37 {offsets = [0, 7], sizes = [4, 1], strides = [1, 1]} : vector<4x8xf32> to vector<4x1xf32>
    %679 = vector.shape_cast %678 : vector<4x1xf32> to vector<4x1xf32>
    %680 = vector.broadcast %679 : vector<4x1xf32> to vector<4x64xf32>
    %cst_178 = arith.constant dense<0.000000e+00> : vector<4x256xf32>
    %681 = tpu.matmul %663, %378, %cst_178 {dimension_numbers = #tpu.dot_dimension_numbers<[1], [0], [0], [1], [0, 0, 1, 1], [], []>} : vector<4x64xf32>, vector<64x256xf32>, vector<4x256xf32> -> vector<4x256xf32>
    %682 = arith.addf %677, %681 : vector<4x256xf32>
    %683 = arith.mulf %682, %46 : vector<4x256xf32>
    %684 = math.tanh %683 : vector<4x256xf32>
    %cst_179 = arith.constant 5.000000e-01 : f32
    %685 = vector.broadcast %cst_179 : f32 to vector<4x256xf32>
    %686 = arith.mulf %685, %684 : vector<4x256xf32>
    %cst_180 = arith.constant 5.000000e-01 : f32
    %687 = vector.broadcast %cst_180 : f32 to vector<4x256xf32>
    %688 = arith.addf %687, %686 : vector<4x256xf32>
    %689 = arith.select %43, %684, %688 : vector<4x256xi1>, vector<4x256xf32>
    %690 = vector.extract_strided_slice %689 {offsets = [0, 0], sizes = [4, 64], strides = [1, 1]} : vector<4x256xf32> to vector<4x64xf32>
    %691 = vector.extract_strided_slice %689 {offsets = [0, 64], sizes = [4, 64], strides = [1, 1]} : vector<4x256xf32> to vector<4x64xf32>
    %692 = vector.extract_strided_slice %689 {offsets = [0, 128], sizes = [4, 64], strides = [1, 1]} : vector<4x256xf32> to vector<4x64xf32>
    %693 = vector.extract_strided_slice %689 {offsets = [0, 192], sizes = [4, 64], strides = [1, 1]} : vector<4x256xf32> to vector<4x64xf32>
    %694 = arith.mulf %691, %660 : vector<4x64xf32>
    %695 = arith.mulf %690, %692 : vector<4x64xf32>
    %696 = arith.addf %694, %695 : vector<4x64xf32>
    %697 = math.tanh %696 : vector<4x64xf32>
    %698 = arith.mulf %693, %697 : vector<4x64xf32>
    %699 = arith.mulf %680, %698 : vector<4x64xf32>
    %700 = vector.extract_strided_slice %699 {offsets = [0, 0], sizes = [1, 32], strides = [1, 1]} : vector<4x64xf32> to vector<1x32xf32>
    %c7_181 = arith.constant 7 : index
    %c0_182 = arith.constant 0 : index
    %701 = vector.load %arg13[%c7_181, %c0_182] : memref<16x64xf32, #tpu.memory_space<vmem>>, vector<1x32xf32>
    tpu.vector_store %arg13[%c7_181, %c0_182], %700 {strides = array<i32>} : memref<16x64xf32, #tpu.memory_space<vmem>>, vector<1x32xf32>,
    %702 = vector.extract_strided_slice %699 {offsets = [1, 0], sizes = [1, 32], strides = [1, 1]} : vector<4x64xf32> to vector<1x32xf32>
    %c15_183 = arith.constant 15 : index
    %c0_184 = arith.constant 0 : index
    %703 = vector.load %arg13[%c15_183, %c0_184] : memref<16x64xf32, #tpu.memory_space<vmem>>, vector<1x32xf32>
    tpu.vector_store %arg13[%c15_183, %c0_184], %702 {strides = array<i32>} : memref<16x64xf32, #tpu.memory_space<vmem>>, vector<1x32xf32>,
    %704 = vector.extract_strided_slice %699 {offsets = [2, 32], sizes = [1, 32], strides = [1, 1]} : vector<4x64xf32> to vector<1x32xf32>
    %c0_185 = arith.constant 0 : index
    %c32_186 = arith.constant 32 : index
    %705 = vector.load %arg13[%c0_185, %c32_186] : memref<16x64xf32, #tpu.memory_space<vmem>>, vector<1x32xf32>
    tpu.vector_store %arg13[%c0_185, %c32_186], %704 {strides = array<i32>} : memref<16x64xf32, #tpu.memory_space<vmem>>, vector<1x32xf32>,
    %706 = vector.extract_strided_slice %699 {offsets = [3, 32], sizes = [1, 32], strides = [1, 1]} : vector<4x64xf32> to vector<1x32xf32>
    %c8_187 = arith.constant 8 : index
    %c32_188 = arith.constant 32 : index
    %707 = vector.load %arg13[%c8_187, %c32_188] : memref<16x64xf32, #tpu.memory_space<vmem>>, vector<1x32xf32>
    tpu.vector_store %arg13[%c8_187, %c32_188], %706 {strides = array<i32>} : memref<16x64xf32, #tpu.memory_space<vmem>>, vector<1x32xf32>,
    %c0_189 = arith.constant 0 : index
    %c0_190 = arith.constant 0 : index
    %708 = vector.load %arg13[%c0_189, %c0_190] : memref<16x64xf32, #tpu.memory_space<vmem>>, vector<16x64xf32>
    %c0_191 = arith.constant 0 : index
    %c0_192 = arith.constant 0 : index
    %709 = vector.load %arg8[%c0_191, %c0_192] : memref<64x128xf32, #tpu.memory_space<vmem>>, vector<64x128xf32>
    %cst_193 = arith.constant dense<0.000000e+00> : vector<16x128xf32>
    %710 = tpu.matmul %708, %709, %cst_193 {dimension_numbers = #tpu.dot_dimension_numbers<[1], [0], [0], [1], [0, 0, 1, 1], [], []>} : vector<16x64xf32>, vector<64x128xf32>, vector<16x128xf32> -> vector<16x128xf32>
    %c0_194 = arith.constant 0 : index
    %c0_195 = arith.constant 0 : index
    %711 = vector.load %arg9[%c0_194, %c0_195] : memref<1x128xf32, #tpu.memory_space<vmem>>, vector<1x128xf32>
    %712 = vector.broadcast %711 : vector<1x128xf32> to vector<16x128xf32>
    %713 = arith.addf %710, %712 : vector<16x128xf32>
    %c0_196 = arith.constant 0 : index
    %c0_197 = arith.constant 0 : index
    %714 = vector.load %arg11[%c0_196, %c0_197] : memref<16x128xf32, #tpu.memory_space<vmem>>, vector<16x128xf32>
    tpu.vector_store %arg11[%c0_196, %c0_197], %713 {strides = array<i32>} : memref<16x128xf32, #tpu.memory_space<vmem>>, vector<16x128xf32>,
    return
  }
}

</mosaic_0001>

<llo_original>
// kernel: tpu_custom_call.1
$region0: #{tpu_custom_call.1}
  #allocation0 [shape = 'u32[]', space=smem, size = 0x4, offset = 0x4, fixed_abs, tag = 'smem constant byte address 0x4 - core index']
  #allocation1 [shape = 'u32[144,128]{1,0:T(1,128)}', space=vmem, size = 0x12000, scoped, tag = 'internal scratch']
  #allocation2 [shape = 'f32[16,64]{1,0:T(8,128)}', space=vmem, size = 0x2000, scoped, tag = 'scratch operand']
  #allocation3 [shape = 'f32[16,64]{1,0:T(8,128)}', space=vmem, size = 0x2000, scoped, tag = 'scratch operand']
  %s0 = inlined_call_operand.hbm [shape: s32[1,16], index: 0, kind: input, shape index: {}]
  %s1 = inlined_call_operand.hbm [shape: f32[16,32], index: 1, kind: input, shape index: {}]
  %s2 = inlined_call_operand.hbm [shape: f32[32,256], index: 2, kind: input, shape index: {}]
  %s3 = inlined_call_operand.hbm [shape: f32[64,256], index: 3, kind: input, shape index: {}]
  %s4 = inlined_call_operand.vmem [shape: f32[1,256], index: 4, kind: input, shape index: {}]
  %s5 = inlined_call_operand.hbm [shape: f32[64,256], index: 5, kind: input, shape index: {}]
  %s6 = inlined_call_operand.hbm [shape: f32[64,256], index: 6, kind: input, shape index: {}]
  %s7 = inlined_call_operand.vmem [shape: f32[1,256], index: 7, kind: input, shape index: {}]
  %s8 = inlined_call_operand.hbm [shape: f32[64,128], index: 8, kind: input, shape index: {}]
  %s9 = inlined_call_operand.vmem [shape: f32[1,128], index: 9, kind: input, shape index: {}]
  %s10 = inlined_call_operand.hbm [shape: f32[16,32], index: 10, kind: output, shape index: {0}]
  %s11 = inlined_call_operand.hbm [shape: f32[16,128], index: 11, kind: output, shape index: {1}]
  %12 = xla_tuple %s10, %s11
  %s13 = sld [smem:[#allocation0]]
  $region86: #{tpu_custom_call.1} parent=0
    _
  %s15 = ssub.s32 1, %s13
  %s16 = scalar_select 0, %s15, %s13
  $region1: #{tpu_custom_call.1} parent=0
    #allocation4 [shape = 'u8[512]{0}', space=vmem, size = 0x400, scoped, tag = 'input window, operand 0, single buffered']
    #allocation5 [shape = 's32[1]{0}', space=sflag, size = 0x4, scoped, tag = 'scoped memory for tpu_custom_call.1']
    #allocation6 [shape = 's32[1]{0}', space=sflag, size = 0x4, scoped, tag = 'scoped memory for tpu_custom_call.1']
    #allocation7 [shape = 'u8[8192]{0}', space=vmem, size = 0x2000, scoped, tag = 'input window, operand 1, single buffered']
    #allocation8 [shape = 's32[1]{0}', space=sflag, size = 0x4, scoped, tag = 'scoped memory for tpu_custom_call.1']
    #allocation9 [shape = 'u8[32768]{0}', space=vmem, size = 0x8000, scoped, tag = 'input window, operand 2, single buffered']
    #allocation10 [shape = 'u8[65536]{0}', space=vmem, size = 0x10000, scoped, tag = 'input window, operand 3, single buffered']
    #allocation11 [shape = 's32[1]{0}', space=sflag, size = 0x4, scoped, tag = 'scoped memory for tpu_custom_call.1']
    #allocation12 [shape = 'u8[65536]{0}', space=vmem, size = 0x10000, scoped, tag = 'input window, operand 5, single buffered']
    #allocation13 [shape = 'u8[65536]{0}', space=vmem, size = 0x10000, scoped, tag = 'input window, operand 6, single buffered']
    #allocation14 [shape = 's32[1]{0}', space=sflag, size = 0x4, scoped, tag = 'scoped memory for tpu_custom_call.1']
    #allocation15 [shape = 'u8[32768]{0}', space=vmem, size = 0x8000, scoped, tag = 'input window, operand 8, single buffered']
    #allocation16 [shape = 'u8[8192]{0}', space=vmem, size = 0x2000, scoped, tag = 'output window, operand 0, single buffered']
    #allocation17 [shape = 'u8[8192]{0}', space=vmem, size = 0x2000, scoped, tag = 'output window, operand 1, single buffered']
    #allocation18 [shape = 's32[1]{0}', space=sflag, size = 0x4, scoped, tag = 'scoped memory for tpu_custom_call.1']
    %17 = vsyncpa [#allocation5], 0
    %18 = vsyncpa [#allocation8], 0
    %19 = vsyncpa [#allocation11], 0
    %20 = vsyncpa [#allocation14], 0
    %21 = vsyncpa [#allocation6], 0
    %22 = vsyncpa [#allocation18], 0
    // Predicated region
    $region2: #{tpu_custom_call.1} parent=1 // pred_check
      _
    $region3: #{tpu_custom_call.1} parent=1 // pred_check_branch
      %24 = sbr.rel (0) target = $region5
    $region4: #{tpu_custom_call.1} parent=1 // pred_region
      %s26 = ssub.s32 16, 16
      %27 = vsyncadd [#allocation5], %s26
      %s29 = sshll.u32 [#allocation4], 4
      %s30 = int_to_ptr.vmem [resolvable:$true] %s29
      %32 = dma.hbm_to_vmem [thread:$0]  %s0, 16, %s30, [#allocation5]
    $region5: #{tpu_custom_call.1} parent=1 // pred_fallthru
      _
    // Predicated region
    $region6: #{tpu_custom_call.1} parent=1 // pred_check
      _
    $region7: #{tpu_custom_call.1} parent=1 // pred_check_branch
      %34 = sbr.rel (0) target = $region9
    $region8: #{tpu_custom_call.1} parent=1 // pred_region
      %s36 = ssub.s32 256, 256
      %37 = vsyncadd [#allocation8], %s36
      %s38 = sshll.u32 [#allocation7], 4
      %s39 = int_to_ptr.vmem [resolvable:$true] %s38
      %44 = dma.hbm_to_vmem [thread:$0]  %s1, 256, %s39, [#allocation8], 128, 128, 8
    $region9: #{tpu_custom_call.1} parent=1 // pred_fallthru
      _
    // Predicated region
    $region10: #{tpu_custom_call.1} parent=1 // pred_check
      _
    $region11: #{tpu_custom_call.1} parent=1 // pred_check_branch
      %46 = sbr.rel (0) target = $region13
    $region12: #{tpu_custom_call.1} parent=1 // pred_region
      %s48 = ssub.s32 1024, 1024
      %49 = vsyncadd [#allocation8], %s48
      %s50 = sshll.u32 [#allocation9], 4
      %s51 = int_to_ptr.vmem [resolvable:$true] %s50
      %56 = dma.hbm_to_vmem [thread:$0]  %s2, 1024, %s51, [#allocation8], 256, 256, 16
    $region13: #{tpu_custom_call.1} parent=1 // pred_fallthru
      _
    // Predicated region
    $region14: #{tpu_custom_call.1} parent=1 // pred_check
      _
    $region15: #{tpu_custom_call.1} parent=1 // pred_check_branch
      %58 = sbr.rel (0) target = $region17
    $region16: #{tpu_custom_call.1} parent=1 // pred_region
      %s60 = ssub.s32 2048, 2048
      %61 = vsyncadd [#allocation11], %s60
      %s62 = sshll.u32 [#allocation10], 4
      %s63 = int_to_ptr.vmem [resolvable:$true] %s62
      %68 = dma.hbm_to_vmem [thread:$0]  %s3, 2048, %s63, [#allocation11], 256, 256, 16
    $region17: #{tpu_custom_call.1} parent=1 // pred_fallthru
      _
    // Predicated region
    $region18: #{tpu_custom_call.1} parent=1 // pred_check
      _
    $region19: #{tpu_custom_call.1} parent=1 // pred_check_branch
      %70 = sbr.rel (0) target = $region21
    $region20: #{tpu_custom_call.1} parent=1 // pred_region
      _
    $region21: #{tpu_custom_call.1} parent=1 // pred_fallthru
      _
    // Predicated region
    $region22: #{tpu_custom_call.1} parent=1 // pred_check
      _
    $region23: #{tpu_custom_call.1} parent=1 // pred_check_branch
      %72 = sbr.rel (0) target = $region25
    $region24: #{tpu_custom_call.1} parent=1 // pred_region
      %s74 = ssub.s32 2048, 2048
      %75 = vsyncadd [#allocation11], %s74
      %s76 = sshll.u32 [#allocation12], 4
      %s77 = int_to_ptr.vmem [resolvable:$true] %s76
      %82 = dma.hbm_to_vmem [thread:$0]  %s5, 2048, %s77, [#allocation11], 256, 256, 16
    $region25: #{tpu_custom_call.1} parent=1 // pred_fallthru
      _
    // Predicated region
    $region26: #{tpu_custom_call.1} parent=1 // pred_check
      _
    $region27: #{tpu_custom_call.1} parent=1 // pred_check_branch
      %84 = sbr.rel (0) target = $region29
    $region28: #{tpu_custom_call.1} parent=1 // pred_region
      %s86 = ssub.s32 2048, 2048
      %87 = vsyncadd [#allocation14], %s86
      %s88 = sshll.u32 [#allocation13], 4
      %s89 = int_to_ptr.vmem [resolvable:$true] %s88
      %94 = dma.hbm_to_vmem [thread:$0]  %s6, 2048, %s89, [#allocation14], 256, 256, 16
    $region29: #{tpu_custom_call.1} parent=1 // pred_fallthru
      _
    // Predicated region
    $region30: #{tpu_custom_call.1} parent=1 // pred_check
      _
    $region31: #{tpu_custom_call.1} parent=1 // pred_check_branch
      %96 = sbr.rel (0) target = $region33
    $region32: #{tpu_custom_call.1} parent=1 // pred_region
      _
    $region33: #{tpu_custom_call.1} parent=1 // pred_fallthru
      _
    // Predicated region
    $region34: #{tpu_custom_call.1} parent=1 // pred_check
      _
    $region35: #{tpu_custom_call.1} parent=1 // pred_check_branch
      %98 = sbr.rel (0) target = $region37
    $region36: #{tpu_custom_call.1} parent=1 // pred_region
      %s100 = ssub.s32 1024, 1024
      %101 = vsyncadd [#allocation14], %s100
      %s102 = sshll.u32 [#allocation15], 4
      %s103 = int_to_ptr.vmem [resolvable:$true] %s102
      %108 = dma.hbm_to_vmem [thread:$0]  %s8, 1024, %s103, [#allocation14], 128, 128, 8
    $region37: #{tpu_custom_call.1} parent=1 // pred_fallthru
      _
    // Predicated region
    $region38: #{tpu_custom_call.1} parent=1 // pred_check
      _
    $region39: #{tpu_custom_call.1} parent=1 // pred_check_branch
      %110 = sbr.rel (0) target = $region41
    $region40: #{tpu_custom_call.1} parent=1 // pred_region
      _
    $region41: #{tpu_custom_call.1} parent=1 // pred_fallthru
      _
    // Predicated region
    $region42: #{tpu_custom_call.1} parent=1 // pred_check
      _
    $region43: #{tpu_custom_call.1} parent=1 // pred_check_branch
      %112 = sbr.rel (0) target = $region45
    $region44: #{tpu_custom_call.1} parent=1 // pred_region
      %113 = dma.done [#allocation5], 16
    $region45: #{tpu_custom_call.1} parent=1 // pred_fallthru
      _
    // Predicated region
    $region46: #{tpu_custom_call.1} parent=1 // pred_check
      _
    $region47: #{tpu_custom_call.1} parent=1 // pred_check_branch
      %115 = sbr.rel (0) target = $region49
    $region48: #{tpu_custom_call.1} parent=1 // pred_region
      %116 = dma.done [#allocation8], 256
    $region49: #{tpu_custom_call.1} parent=1 // pred_fallthru
      _
    // Predicated region
    $region50: #{tpu_custom_call.1} parent=1 // pred_check
      _
    $region51: #{tpu_custom_call.1} parent=1 // pred_check_branch
      %118 = sbr.rel (0) target = $region53
    $region52: #{tpu_custom_call.1} parent=1 // pred_region
      %119 = dma.done [#allocation8], 1024
    $region53: #{tpu_custom_call.1} parent=1 // pred_fallthru
      _
    // Predicated region
    $region54: #{tpu_custom_call.1} parent=1 // pred_check
      _
    $region55: #{tpu_custom_call.1} parent=1 // pred_check_branch
      %121 = sbr.rel (0) target = $region57
    $region56: #{tpu_custom_call.1} parent=1 // pred_region
      %122 = dma.done [#allocation11], 2048
    $region57: #{tpu_custom_call.1} parent=1 // pred_fallthru
      _
    // Predicated region
    $region58: #{tpu_custom_call.1} parent=1 // pred_check
      _
    $region59: #{tpu_custom_call.1} parent=1 // pred_check_branch
      %124 = sbr.rel (0) target = $region61
    $region60: #{tpu_custom_call.1} parent=1 // pred_region
      %125 = dma.done [#allocation11], 2048
    $region61: #{tpu_custom_call.1} parent=1 // pred_fallthru
      _
    // Predicated region
    $region62: #{tpu_custom_call.1} parent=1 // pred_check
      _
    $region63: #{tpu_custom_call.1} parent=1 // pred_check_branch
      %127 = sbr.rel (0) target = $region65
    $region64: #{tpu_custom_call.1} parent=1 // pred_region
      %128 = dma.done [#allocation14], 2048
    $region65: #{tpu_custom_call.1} parent=1 // pred_fallthru
      _
    // Predicated region
    $region66: #{tpu_custom_call.1} parent=1 // pred_check
      _
    $region67: #{tpu_custom_call.1} parent=1 // pred_check_branch
      %130 = sbr.rel (0) target = $region69
    $region68: #{tpu_custom_call.1} parent=1 // pred_region
      %131 = dma.done [#allocation14], 1024
    $region69: #{tpu_custom_call.1} parent=1 // pred_fallthru
      _
    %v132 = vld [vmem:[#allocation4] sm:$0x1]
    %v133 = vlaneseq
    %v134 = vshrl.u32 %v133, 7
    %v135 = vadd.s32 %v134, 8
    %v136 = vlaneseq
    %v137 = vshrl.u32 %v136, 7
    %v138 = vsub.s32 0, %v137
    %v139 = vrot.slane %v132, %v138
    %vm140 = vcmp.eq.s32.totalorder %v134, %v139
    %vm141 = vcmp.eq.s32.totalorder %v135, %v139
    %v142 = vsel %vm140, 1, 0
    %v143 = vsel %vm141, 1, 0
    %v144 = vcvt.s32.f32 %v142
    %v145 = vcvt.s32.f32 %v143
    %v146 = vld [vmem:[#allocation7] sm:$0xff]
    %v147 = vld [vmem:[#allocation7 + $0x8] sm:$0xff]
    %148 = vxpose.xlu0.b32.start [1/16] %v144, 128
    %149 = vxpose.xlu0.b32.cont [2/16] %v145, 128
    %150 = vxpose.xlu0.b32.cont [3/16] 0.0, 128
    %151 = vxpose.xlu0.b32.cont [4/16] 0.0, 128
    %152 = vxpose.xlu0.b32.cont [5/16] 0.0, 128
    %153 = vxpose.xlu0.b32.cont [6/16] 0.0, 128
    %154 = vxpose.xlu0.b32.cont [7/16] 0.0, 128
    %155 = vxpose.xlu0.b32.cont [8/16] 0.0, 128
    %156 = vxpose.xlu0.b32.cont [9/16] 0.0, 128
    %157 = vxpose.xlu0.b32.cont [10/16] 0.0, 128
    %158 = vxpose.xlu0.b32.cont [11/16] 0.0, 128
    %159 = vxpose.xlu0.b32.cont [12/16] 0.0, 128
    %160 = vxpose.xlu0.b32.cont [13/16] 0.0, 128
    %161 = vxpose.xlu0.b32.cont [14/16] 0.0, 128
    %162 = vxpose.xlu0.b32.cont [15/16] 0.0, 128
    %163 = vxpose.xlu0.b32.end [16/16] 0.0, 128
    %v164 = vpop.trf.xlu0
    %v165 = vpop.trf.xlu0
    %v166 = vpop.trf.xlu0
    %v167 = vpop.trf.xlu0
    %v168 = vpop.trf.xlu0
    %v169 = vpop.trf.xlu0
    %v170 = vpop.trf.xlu0
    %v171 = vpop.trf.xlu0
    %v172 = vpop.trf.xlu0
    %v173 = vpop.trf.xlu0
    %v174 = vpop.trf.xlu0
    %v175 = vpop.trf.xlu0
    %v176 = vpop.trf.xlu0
    %v177 = vpop.trf.xlu0
    %v178 = vpop.trf.xlu0
    %v179 = vpop.trf.xlu0
    %vm180 = vcmask 130048
    %v182 = vsel %vm180, %v164, 0
    %v185 = vsel %vm180, %v165, 0
    %187 = vmatprep.subr.mxu0 0.0
    %188 = vmatpush1.msra.mxu0 %v146
    %189 = vmatprep.subr.mxu0 0.0
    %190 = vmatpush1.msra.mxu0 %v147
    %191 = vmatprep.subr.mxu0 0.0
    %192 = vmatpush1.msra.mxu0 0.0
    %193 = vmatprep.subr.mxu0 0.0
    %194 = vmatpush1.msra.mxu0 0.0
    %195 = vmatprep.subr.mxu0 0.0
    %196 = vmatpush1.msra.mxu0 0.0
    %197 = vmatprep.subr.mxu0 0.0
    %198 = vmatpush1.msra.mxu0 0.0
    %199 = vmatprep.subr.mxu0 0.0
    %200 = vmatpush1.msra.mxu0 0.0
    %201 = vmatprep.subr.mxu0 0.0
    %202 = vmatpush1.msra.mxu0 0.0
    %203 = vmatprep.subr.mxu0 0.0
    %204 = vmatpush1.msra.mxu0 0.0
    %205 = vmatprep.subr.mxu0 0.0
    %206 = vmatpush1.msra.mxu0 0.0
    %207 = vmatprep.subr.mxu0 0.0
    %208 = vmatpush1.msra.mxu0 0.0
    %209 = vmatprep.subr.mxu0 0.0
    %210 = vmatpush1.msra.mxu0 0.0
    %211 = vmatprep.subr.mxu0 0.0
    %212 = vmatpush1.msra.mxu0 0.0
    %213 = vmatprep.subr.mxu0 0.0
    %214 = vmatpush1.msra.mxu0 0.0
    %215 = vmatprep.subr.mxu0 0.0
    %216 = vmatpush1.msra.mxu0 0.0
    %217 = vmatprep.subr.mxu0 0.0
    %218 = vmatpush1.msra.mxu0 0.0
    %219 = vmatprep.subr.mxu0 0.0
    %220 = vmatpush1.msra.mxu0 0.0
    %221 = vmatprep.subr.mxu0 0.0
    %222 = vmatpush1.msra.mxu0 0.0
    %223 = vmatprep.subr.mxu0 0.0
    %224 = vmatpush1.msra.mxu0 0.0
    %225 = vmatprep.subr.mxu0 0.0
    %226 = vmatpush1.msra.mxu0 0.0
    %227 = vmatprep.subr.mxu0 0.0
    %228 = vmatpush1.msra.mxu0 0.0
    %229 = vmatprep.subr.mxu0 0.0
    %230 = vmatpush1.msra.mxu0 0.0
    %231 = vmatprep.subr.mxu0 0.0
    %232 = vmatpush1.msra.mxu0 0.0
    %233 = vmatprep.subr.mxu0 0.0
    %234 = vmatpush1.msra.mxu0 0.0
    %235 = vmatprep.subr.mxu0 0.0
    %236 = vmatpush1.msra.mxu0 0.0
    %237 = vmatprep.subr.mxu0 0.0
    %238 = vmatpush1.msra.mxu0 0.0
    %239 = vmatprep.subr.mxu0 0.0
    %240 = vmatpush1.msra.mxu0 0.0
    %241 = vmatprep.subr.mxu0 0.0
    %242 = vmatpush1.msra.mxu0 0.0
    %243 = vmatprep.subr.mxu0 0.0
    %244 = vmatpush1.msra.mxu0 0.0
    %245 = vmatprep.subr.mxu0 0.0
    %246 = vmatpush1.msra.mxu0 0.0
    %247 = vmatprep.subr.mxu0 0.0
    %248 = vmatpush1.msra.mxu0 0.0
    %249 = vmatprep.subr.mxu0 0.0
    %250 = vmatpush1.msra.mxu0 0.0
    %251 = vmatprep.mubr.f32.mxu0 0.0
    %252 = vmatmul.mubr.f32.gmra.mrb[0].mxu0 %v182
    %v253 = vpop.f32.mrb[0].mxu0
    %v254 = vadd.f32 0.0, %v253
    %v255 = vpop.f32.mrb[0].mxu0
    %256 = vmatprep.mubr.f32.mxu0 0.0
    %257 = vmatmul.mubr.f32.gmra.mrb[0].mxu0 %v185
    %v258 = vpop.f32.mrb[0].mxu0
    %v259 = vadd.f32 0.0, %v258
    %v260 = vpop.f32.mrb[0].mxu0
    %261 = vdwg.mxu0
    %vm262 = vcmask 261120
    %263 = vst.msk [vmem:[#allocation16] sm:$0xff] %vm262, %v254
    %264 = vst.msk [vmem:[#allocation16 + $0x8] sm:$0xff] %vm262, %v259
    %vm265 = vcmp.ne.s32.totalorder %v132, 0
    %v266 = vsel %vm265, 1, 0
    %vm267 = vcmask 57344
    %v268 = vsel %vm267, %v266, 0
    %v269 = vand.u32 %v268, 65535
    %v270 = vshrl.u32 %v268, 16
    %v271 = vcvt.s32.f32 %v269
    %v272 = vcvt.s32.f32 %v270
    %273 = vadd.xlane.f32.xlu0 %v271
    %v274 = vpop.xlane.xlu0 %273
    %275 = vadd.xlane.f32.xlu0 %v272
    %v276 = vpop.xlane.xlu0 %275
    %v277 = vcvt.f32.s32 %v274
    %v278 = vcvt.f32.s32 %v276
    %v279 = vshll.u32 %v278, 16
    %v280 = vadd.s32 %v279, %v277
    %vm281 = vcmask 122944
    %v282 = vsel %vm281, %v266, 0
    %v283 = vand.u32 %v282, 65535
    %v284 = vshrl.u32 %v282, 16
    %v285 = vcvt.s32.f32 %v283
    %v286 = vcvt.s32.f32 %v284
    %287 = vadd.xlane.f32.xlu0 %v285
    %v288 = vpop.xlane.xlu0 %287
    %289 = vadd.xlane.f32.xlu0 %v286
    %v290 = vpop.xlane.xlu0 %289
    %v291 = vcvt.f32.s32 %v288
    %v292 = vcvt.f32.s32 %v290
    %v293 = vshll.u32 %v292, 16
    %v294 = vadd.s32 %v293, %v291
    %v295 = vlaneseq
    %v296 = vand.u32 %v295, 127
    %v297 = vsub.s32 7, %v296
    %vm298 = vcmp.lt.s32.totalorder %v296, %v280
    %v299 = vsel %vm298, 1, 0
    %v300 = vcvt.s32.f32 %v299
    %vm301 = vcmp.lt.s32.totalorder %v296, %v294
    %v302 = vsel %vm301, 1, 0
    %v303 = vcvt.s32.f32 %v302
    %vm304 = vcmp.lt.s32.totalorder %v297, %v280
    %v305 = vsel %vm304, 1, 0
    %v306 = vcvt.s32.f32 %v305
    %vm307 = vcmp.lt.s32.totalorder %v297, %v294
    %v308 = vsel %vm307, 1, 0
    %v309 = vcvt.s32.f32 %v308
    %v311 = vrot.slane %v303, 7
    %v314 = vrot.slane %v306, 6
    %v317 = vrot.slane %v309, 5
    %vm319 = vcmask 1040384
    %v320 = vsel %vm319, %v300, %v311
    %vm321 = vcmask 1041408
    %v322 = vsel %vm321, %v320, %v314
    %vm323 = vcmask 1042432
    %v324 = vsel %vm323, %v322, %v317
    %v325 = vadd.s32 %v296, 128
    %vm326 = vcmp.ge.s32.totalorder %v296, 128
    %vm327 = vcmp.ge.s32.totalorder %v325, 128
    %vm328 = vcmp.lt.s32.totalorder %v296, 192
    %vm329 = vcmp.lt.s32.totalorder %v325, 192
    %vm330 = vmand %vm326, %vm328
    %vm331 = vmand %vm327, %vm329
    %v332 = vsel %vm330, 1.0, 0.5
    %v333 = vsel %vm331, 1.0, 0.5
    %v334 = vld [vmem:[#allocation10] sm:$0xff]
    %v335 = vld [vmem:[#allocation10 + $0x8] sm:$0xff]
    %v336 = vld [vmem:[#allocation10 + $0x10] sm:$0xff]
    %v337 = vld [vmem:[#allocation10 + $0x18] sm:$0xff]
    %v338 = vld [vmem:[#allocation10 + $0x20] sm:$0xff]
    %v339 = vld [vmem:[#allocation10 + $0x28] sm:$0xff]
    %v340 = vld [vmem:[#allocation10 + $0x30] sm:$0xff]
    %v341 = vld [vmem:[#allocation10 + $0x38] sm:$0xff]
    %v342 = vld [vmem:[#allocation10 + $0x40] sm:$0xff]
    %v343 = vld [vmem:[#allocation10 + $0x48] sm:$0xff]
    %v344 = vld [vmem:[#allocation10 + $0x50] sm:$0xff]
    %v345 = vld [vmem:[#allocation10 + $0x58] sm:$0xff]
    %v346 = vld [vmem:[#allocation10 + $0x60] sm:$0xff]
    %v347 = vld [vmem:[#allocation10 + $0x68] sm:$0xff]
    %v348 = vld [vmem:[#allocation10 + $0x70] sm:$0xff]
    %v349 = vld [vmem:[#allocation10 + $0x78] sm:$0xff]
    %v350 = vld [vmem:[#allocation9] sm:$0xff]
    %v351 = vld [vmem:[#allocation9 + $0x8] sm:$0xff]
    %v352 = vld [vmem:[#allocation9 + $0x10] sm:$0xff]
    %v353 = vld [vmem:[#allocation9 + $0x18] sm:$0xff]
    %v354 = vld [vmem:[#allocation9 + $0x20] sm:$0xff]
    %v355 = vld [vmem:[#allocation9 + $0x28] sm:$0xff]
    %v356 = vld [vmem:[#allocation9 + $0x30] sm:$0xff]
    %v357 = vld [vmem:[#allocation9 + $0x38] sm:$0xff]
    %v358 = vld [vmem:[%s4] sm:$0x3]
    %v360 = vlaneseq
    %v361 = vshrl.u32 %v360, 7
    %v362 = vsub.s32 0, %v361
    %v363 = vrot.slane %v358, %v362
    %v364 = vlaneseq
    %v365 = vshrl.u32 %v364, 7
    %v366 = vsub.s32 1, %v365
    %v367 = vrot.slane %v358, %v366
    %v371 = vsel %vm262, %v254, 0
    %v374 = vsel %vm262, %v259, 0
    %376 = vmatprep.subr.mxu0 %v351
    %377 = vmatpush1.msra.mxu0 %v350
    %378 = vmatprep.subr.mxu0 %v353
    %379 = vmatpush1.msra.mxu0 %v352
    %380 = vmatprep.subr.mxu0 %v355
    %381 = vmatpush1.msra.mxu0 %v354
    %382 = vmatprep.subr.mxu0 %v357
    %383 = vmatpush1.msra.mxu0 %v356
    %384 = vmatprep.subr.mxu0 0.0
    %385 = vmatpush1.msra.mxu0 0.0
    %386 = vmatprep.subr.mxu0 0.0
    %387 = vmatpush1.msra.mxu0 0.0
    %388 = vmatprep.subr.mxu0 0.0
    %389 = vmatpush1.msra.mxu0 0.0
    %390 = vmatprep.subr.mxu0 0.0
    %391 = vmatpush1.msra.mxu0 0.0
    %392 = vmatprep.subr.mxu0 0.0
    %393 = vmatpush1.msra.mxu0 0.0
    %394 = vmatprep.subr.mxu0 0.0
    %395 = vmatpush1.msra.mxu0 0.0
    %396 = vmatprep.subr.mxu0 0.0
    %397 = vmatpush1.msra.mxu0 0.0
    %398 = vmatprep.subr.mxu0 0.0
    %399 = vmatpush1.msra.mxu0 0.0
    %400 = vmatprep.subr.mxu0 0.0
    %401 = vmatpush1.msra.mxu0 0.0
    %402 = vmatprep.subr.mxu0 0.0
    %403 = vmatpush1.msra.mxu0 0.0
    %404 = vmatprep.subr.mxu0 0.0
    %405 = vmatpush1.msra.mxu0 0.0
    %406 = vmatprep.subr.mxu0 0.0
    %407 = vmatpush1.msra.mxu0 0.0
    %408 = vmatprep.subr.mxu0 0.0
    %409 = vmatpush1.msra.mxu0 0.0
    %410 = vmatprep.subr.mxu0 0.0
    %411 = vmatpush1.msra.mxu0 0.0
    %412 = vmatprep.subr.mxu0 0.0
    %413 = vmatpush1.msra.mxu0 0.0
    %414 = vmatprep.subr.mxu0 0.0
    %415 = vmatpush1.msra.mxu0 0.0
    %416 = vmatprep.subr.mxu0 0.0
    %417 = vmatpush1.msra.mxu0 0.0
    %418 = vmatprep.subr.mxu0 0.0
    %419 = vmatpush1.msra.mxu0 0.0
    %420 = vmatprep.subr.mxu0 0.0
    %421 = vmatpush1.msra.mxu0 0.0
    %422 = vmatprep.subr.mxu0 0.0
    %423 = vmatpush1.msra.mxu0 0.0
    %424 = vmatprep.subr.mxu0 0.0
    %425 = vmatpush1.msra.mxu0 0.0
    %426 = vmatprep.subr.mxu0 0.0
    %427 = vmatpush1.msra.mxu0 0.0
    %428 = vmatprep.subr.mxu0 0.0
    %429 = vmatpush1.msra.mxu0 0.0
    %430 = vmatprep.subr.mxu0 0.0
    %431 = vmatpush1.msra.mxu0 0.0
    %432 = vmatprep.subr.mxu0 0.0
    %433 = vmatpush1.msra.mxu0 0.0
    %434 = vmatprep.subr.mxu0 0.0
    %435 = vmatpush1.msra.mxu0 0.0
    %436 = vmatprep.subr.mxu0 0.0
    %437 = vmatpush1.msra.mxu0 0.0
    %438 = vmatprep.subr.mxu0 0.0
    %439 = vmatpush1.msra.mxu0 0.0
    %440 = vmatprep.mubr.f32.mxu0 0.0
    %441 = vmatmul.mubr.f32.gmra.mrb[0].mxu0 %v371
    %v442 = vpop.f32.mrb[0].mxu0
    %v443 = vadd.f32 %v363, %v442
    %v444 = vpop.f32.mrb[0].mxu0
    %v445 = vadd.f32 %v367, %v444
    %446 = vmatprep.mubr.f32.mxu0 0.0
    %447 = vmatmul.mubr.f32.gmra.mrb[0].mxu0 %v374
    %v448 = vpop.f32.mrb[0].mxu0
    %v449 = vadd.f32 %v363, %v448
    %v450 = vpop.f32.mrb[0].mxu0
    %v451 = vadd.f32 %v367, %v450
    %452 = vdwg.mxu0
    %v455 = vrot.slane %v449, 7
    %v456 = vrot.slane %v451, 7
    %v461 = vrot.slane %v443, 5
    %v462 = vrot.slane %v445, 5
    %v465 = vrot.slane %v449, 4
    %v466 = vrot.slane %v451, 4
    %v469 = vsel %vm319, %v443, %v455
    %v470 = vsel %vm319, %v445, %v456
    %v471 = vsel %vm321, %v469, %v461
    %v472 = vsel %vm321, %v470, %v462
    %v473 = vsel %vm323, %v471, %v465
    %v474 = vsel %vm323, %v472, %v466
    %476 = vset.pattern.permute.xlu0 0
    %477 = vperm.xlu0 %476, %v324
    %v478 = vpop.permute.xlu0 %477
    %vm480 = vcmask 523264
    %v482 = vsel %vm480, 0.0, 0
    %484 = vmatprep.subr.mxu0 %v335
    %485 = vmatpush1.msra.mxu0 %v334
    %486 = vmatprep.subr.mxu0 %v337
    %487 = vmatpush1.msra.mxu0 %v336
    %488 = vmatprep.subr.mxu0 %v339
    %489 = vmatpush1.msra.mxu0 %v338
    %490 = vmatprep.subr.mxu0 %v341
    %491 = vmatpush1.msra.mxu0 %v340
    %492 = vmatprep.subr.mxu0 %v343
    %493 = vmatpush1.msra.mxu0 %v342
    %494 = vmatprep.subr.mxu0 %v345
    %495 = vmatpush1.msra.mxu0 %v344
    %496 = vmatprep.subr.mxu0 %v347
    %497 = vmatpush1.msra.mxu0 %v346
    %498 = vmatprep.subr.mxu0 %v349
    %499 = vmatpush1.msra.mxu0 %v348
    %500 = vmatprep.subr.mxu0 0.0
    %501 = vmatpush1.msra.mxu0 0.0
    %502 = vmatprep.subr.mxu0 0.0
    %503 = vmatpush1.msra.mxu0 0.0
    %504 = vmatprep.subr.mxu0 0.0
    %505 = vmatpush1.msra.mxu0 0.0
    %506 = vmatprep.subr.mxu0 0.0
    %507 = vmatpush1.msra.mxu0 0.0
    %508 = vmatprep.subr.mxu0 0.0
    %509 = vmatpush1.msra.mxu0 0.0
    %510 = vmatprep.subr.mxu0 0.0
    %511 = vmatpush1.msra.mxu0 0.0
    %512 = vmatprep.subr.mxu0 0.0
    %513 = vmatpush1.msra.mxu0 0.0
    %514 = vmatprep.subr.mxu0 0.0
    %515 = vmatpush1.msra.mxu0 0.0
    %516 = vmatprep.subr.mxu0 0.0
    %517 = vmatpush1.msra.mxu0 0.0
    %518 = vmatprep.subr.mxu0 0.0
    %519 = vmatpush1.msra.mxu0 0.0
    %520 = vmatprep.subr.mxu0 0.0
    %521 = vmatpush1.msra.mxu0 0.0
    %522 = vmatprep.subr.mxu0 0.0
    %523 = vmatpush1.msra.mxu0 0.0
    %524 = vmatprep.subr.mxu0 0.0
    %525 = vmatpush1.msra.mxu0 0.0
    %526 = vmatprep.subr.mxu0 0.0
    %527 = vmatpush1.msra.mxu0 0.0
    %528 = vmatprep.subr.mxu0 0.0
    %529 = vmatpush1.msra.mxu0 0.0
    %530 = vmatprep.subr.mxu0 0.0
    %531 = vmatpush1.msra.mxu0 0.0
    %532 = vmatprep.subr.mxu0 0.0
    %533 = vmatpush1.msra.mxu0 0.0
    %534 = vmatprep.subr.mxu0 0.0
    %535 = vmatpush1.msra.mxu0 0.0
    %536 = vmatprep.subr.mxu0 0.0
    %537 = vmatpush1.msra.mxu0 0.0
    %538 = vmatprep.subr.mxu0 0.0
    %539 = vmatpush1.msra.mxu0 0.0
    %540 = vmatprep.subr.mxu0 0.0
    %541 = vmatpush1.msra.mxu0 0.0
    %542 = vmatprep.subr.mxu0 0.0
    %543 = vmatpush1.msra.mxu0 0.0
    %544 = vmatprep.subr.mxu0 0.0
    %545 = vmatpush1.msra.mxu0 0.0
    %546 = vmatprep.subr.mxu0 0.0
    %547 = vmatpush1.msra.mxu0 0.0
    %548 = vmatprep.mubr.f32.mxu0 0.0
    %549 = vmatmul.mubr.f32.gmra.mrb[0].mxu0 %v482
    %v550 = vpop.f32.mrb[0].mxu0
    %v551 = vadd.f32 0.0, %v550
    %v552 = vpop.f32.mrb[0].mxu0
    %v553 = vadd.f32 0.0, %v552
    %554 = vdwg.mxu0
    %v555 = vadd.f32 %v473, %v551
    %v556 = vadd.f32 %v474, %v553
    %v557 = vmul.f32 %v555, %v332
    %v558 = vmul.f32 %v556, %v333
    %v559 = vtanh.pop %v557
    %v560 = vtanh.pop %v558
    %v561 = vmul.f32 %v559, 0.5
    %v562 = vmul.f32 %v560, 0.5
    %v563 = vadd.f32 %v561, 0.5
    %v564 = vadd.f32 %v562, 0.5
    %v565 = vsel %vm330, %v559, %v563
    %v566 = vsel %vm331, %v560, %v564
    %v567 = vmul.f32 %v565, 0.0
    %v568 = vmul.f32 %v565, %v566
    %570 = vrot.lane.b32.xlu0 %v568, 64
    %v571 = vpop.permute.xlu0 %570
    %v573 = vadd.f32 %v567, %v571
    %v574 = vtanh.pop %v573
    %v575 = vmul.f32 %v566, %v574
    %v576 = vmul.f32 %v478, %v573
    %v577 = vadd.f32 %v576, 0.0
    %v578 = vmul.f32 %v478, %v575
    %v579 = vadd.f32 %v578, 0.0
    %581 = vrot.lane.b32.xlu0 %v578, 64
    %v582 = vpop.permute.xlu0 %581
    %vm584 = vcmask 253952
    %585 = vst.msk [vmem:[#allocation2] sm:$0x1] %vm584, %v582
    %vm586 = vcmask 254977
    %587 = vst.msk [vmem:[#allocation2 + $0x7] sm:$0x2] %vm586, %v582
    %vm588 = vcmask 518402
    %589 = vst.msk [vmem:[#allocation2 + $0x5] sm:$0x4] %vm588, %v582
    %vm590 = vcmask 519427
    %591 = vst.msk [vmem:[#allocation2 + $0xc] sm:$0x8] %vm590, %v582
    %v592 = vrot.slane %v443, 1
    %v593 = vrot.slane %v445, 1
    %v596 = vrot.slane %v443, 4
    %v597 = vrot.slane %v445, 4
    %v600 = vrot.slane %v449, 3
    %v601 = vrot.slane %v451, 3
    %v604 = vsel %vm319, %v592, %v449
    %v605 = vsel %vm319, %v593, %v451
    %v606 = vsel %vm321, %v604, %v596
    %v607 = vsel %vm321, %v605, %v597
    %v608 = vsel %vm323, %v606, %v600
    %v609 = vsel %vm323, %v607, %v601
    %610 = vset.pattern.permute.xlu0 1
    %611 = vperm.xlu0 %610, %v324
    %v612 = vpop.permute.xlu0 %611
    %615 = vrot.lane.b32.xlu0 %v579, 64
    %v616 = vpop.permute.xlu0 %615
    %v617 = vsel %vm480, %v616, 0
    %619 = vmatprep.subr.mxu0 %v335
    %620 = vmatpush1.msra.mxu0 %v334
    %621 = vmatprep.subr.mxu0 %v337
    %622 = vmatpush1.msra.mxu0 %v336
    %623 = vmatprep.subr.mxu0 %v339
    %624 = vmatpush1.msra.mxu0 %v338
    %625 = vmatprep.subr.mxu0 %v341
    %626 = vmatpush1.msra.mxu0 %v340
    %627 = vmatprep.subr.mxu0 %v343
    %628 = vmatpush1.msra.mxu0 %v342
    %629 = vmatprep.subr.mxu0 %v345
    %630 = vmatpush1.msra.mxu0 %v344
    %631 = vmatprep.subr.mxu0 %v347
    %632 = vmatpush1.msra.mxu0 %v346
    %633 = vmatprep.subr.mxu0 %v349
    %634 = vmatpush1.msra.mxu0 %v348
    %635 = vmatprep.subr.mxu0 0.0
    %636 = vmatpush1.msra.mxu0 0.0
    %637 = vmatprep.subr.mxu0 0.0
    %638 = vmatpush1.msra.mxu0 0.0
    %639 = vmatprep.subr.mxu0 0.0
    %640 = vmatpush1.msra.mxu0 0.0
    %641 = vmatprep.subr.mxu0 0.0
    %642 = vmatpush1.msra.mxu0 0.0
    %643 = vmatprep.subr.mxu0 0.0
    %644 = vmatpush1.msra.mxu0 0.0
    %645 = vmatprep.subr.mxu0 0.0
    %646 = vmatpush1.msra.mxu0 0.0
    %647 = vmatprep.subr.mxu0 0.0
    %648 = vmatpush1.msra.mxu0 0.0
    %649 = vmatprep.subr.mxu0 0.0
    %650 = vmatpush1.msra.mxu0 0.0
    %651 = vmatprep.subr.mxu0 0.0
    %652 = vmatpush1.msra.mxu0 0.0
    %653 = vmatprep.subr.mxu0 0.0
    %654 = vmatpush1.msra.mxu0 0.0
    %655 = vmatprep.subr.mxu0 0.0
    %656 = vmatpush1.msra.mxu0 0.0
    %657 = vmatprep.subr.mxu0 0.0
    %658 = vmatpush1.msra.mxu0 0.0
    %659 = vmatprep.subr.mxu0 0.0
    %660 = vmatpush1.msra.mxu0 0.0
    %661 = vmatprep.subr.mxu0 0.0
    %662 = vmatpush1.msra.mxu0 0.0
    %663 = vmatprep.subr.mxu0 0.0
    %664 = vmatpush1.msra.mxu0 0.0
    %665 = vmatprep.subr.mxu0 0.0
    %666 = vmatpush1.msra.mxu0 0.0
    %667 = vmatprep.subr.mxu0 0.0
    %668 = vmatpush1.msra.mxu0 0.0
    %669 = vmatprep.subr.mxu0 0.0
    %670 = vmatpush1.msra.mxu0 0.0
    %671 = vmatprep.subr.mxu0 0.0
    %672 = vmatpush1.msra.mxu0 0.0
    %673 = vmatprep.subr.mxu0 0.0
    %674 = vmatpush1.msra.mxu0 0.0
    %675 = vmatprep.subr.mxu0 0.0
    %676 = vmatpush1.msra.mxu0 0.0
    %677 = vmatprep.subr.mxu0 0.0
    %678 = vmatpush1.msra.mxu0 0.0
    %679 = vmatprep.subr.mxu0 0.0
    %680 = vmatpush1.msra.mxu0 0.0
    %681 = vmatprep.subr.mxu0 0.0
    %682 = vmatpush1.msra.mxu0 0.0
    %683 = vmatprep.mubr.f32.mxu0 0.0
    %684 = vmatmul.mubr.f32.gmra.mrb[0].mxu0 %v617
    %v685 = vpop.f32.mrb[0].mxu0
    %v686 = vadd.f32 0.0, %v685
    %v687 = vpop.f32.mrb[0].mxu0
    %v688 = vadd.f32 0.0, %v687
    %689 = vdwg.mxu0
    %v690 = vadd.f32 %v608, %v686
    %v691 = vadd.f32 %v609, %v688
    %v692 = vmul.f32 %v690, %v332
    %v693 = vmul.f32 %v691, %v333
    %v694 = vtanh.pop %v692
    %v695 = vtanh.pop %v693
    %v696 = vmul.f32 %v694, 0.5
    %v697 = vmul.f32 %v695, 0.5
    %v698 = vadd.f32 %v696, 0.5
    %v699 = vadd.f32 %v697, 0.5
    %v700 = vsel %vm330, %v694, %v698
    %v701 = vsel %vm331, %v695, %v699
    %v702 = vmul.f32 %v700, %v577
    %v703 = vmul.f32 %v700, %v701
    %705 = vrot.lane.b32.xlu0 %v703, 64
    %v706 = vpop.permute.xlu0 %705
    %v708 = vadd.f32 %v702, %v706
    %v709 = vtanh.pop %v708
    %v710 = vmul.f32 %v701, %v709
    %v711 = vsub.f32 %v708, %v577
    %v712 = vmul.f32 %v612, %v711
    %v713 = vadd.f32 %v577, %v712
    %v714 = vsub.f32 %v710, %v579
    %v715 = vmul.f32 %v612, %v714
    %v716 = vadd.f32 %v579, %v715
    %v717 = vmul.f32 %v612, %v710
    %719 = vrot.lane.b32.xlu0 %v717, 64
    %v720 = vpop.permute.xlu0 %719
    %722 = vst.msk [vmem:[#allocation2 + $0x1] sm:$0x1] %vm584, %v720
    %723 = vst.msk [vmem:[#allocation2 + $0x8] sm:$0x2] %vm586, %v720
    %724 = vst.msk [vmem:[#allocation2 + $0x4] sm:$0x4] %vm588, %v720
    %725 = vst.msk [vmem:[#allocation2 + $0xb] sm:$0x8] %vm590, %v720
    %v726 = vrot.slane %v443, 2
    %v727 = vrot.slane %v445, 2
    %v730 = vrot.slane %v449, 1
    %v731 = vrot.slane %v451, 1
    %v734 = vrot.slane %v443, 3
    %v735 = vrot.slane %v445, 3
    %v738 = vrot.slane %v449, 2
    %v739 = vrot.slane %v451, 2
    %v742 = vsel %vm319, %v726, %v730
    %v743 = vsel %vm319, %v727, %v731
    %v744 = vsel %vm321, %v742, %v734
    %v745 = vsel %vm321, %v743, %v735
    %v746 = vsel %vm323, %v744, %v738
    %v747 = vsel %vm323, %v745, %v739
    %748 = vset.pattern.permute.xlu0 2
    %749 = vperm.xlu0 %748, %v324
    %v750 = vpop.permute.xlu0 %749
    %753 = vrot.lane.b32.xlu0 %v716, 64
    %v754 = vpop.permute.xlu0 %753
    %v755 = vsel %vm480, %v754, 0
    %757 = vmatprep.subr.mxu0 %v335
    %758 = vmatpush1.msra.mxu0 %v334
    %759 = vmatprep.subr.mxu0 %v337
    %760 = vmatpush1.msra.mxu0 %v336
    %761 = vmatprep.subr.mxu0 %v339
    %762 = vmatpush1.msra.mxu0 %v338
    %763 = vmatprep.subr.mxu0 %v341
    %764 = vmatpush1.msra.mxu0 %v340
    %765 = vmatprep.subr.mxu0 %v343
    %766 = vmatpush1.msra.mxu0 %v342
    %767 = vmatprep.subr.mxu0 %v345
    %768 = vmatpush1.msra.mxu0 %v344
    %769 = vmatprep.subr.mxu0 %v347
    %770 = vmatpush1.msra.mxu0 %v346
    %771 = vmatprep.subr.mxu0 %v349
    %772 = vmatpush1.msra.mxu0 %v348
    %773 = vmatprep.subr.mxu0 0.0
    %774 = vmatpush1.msra.mxu0 0.0
    %775 = vmatprep.subr.mxu0 0.0
    %776 = vmatpush1.msra.mxu0 0.0
    %777 = vmatprep.subr.mxu0 0.0
    %778 = vmatpush1.msra.mxu0 0.0
    %779 = vmatprep.subr.mxu0 0.0
    %780 = vmatpush1.msra.mxu0 0.0
    %781 = vmatprep.subr.mxu0 0.0
    %782 = vmatpush1.msra.mxu0 0.0
    %783 = vmatprep.subr.mxu0 0.0
    %784 = vmatpush1.msra.mxu0 0.0
    %785 = vmatprep.subr.mxu0 0.0
    %786 = vmatpush1.msra.mxu0 0.0
    %787 = vmatprep.subr.mxu0 0.0
    %788 = vmatpush1.msra.mxu0 0.0
    %789 = vmatprep.subr.mxu0 0.0
    %790 = vmatpush1.msra.mxu0 0.0
    %791 = vmatprep.subr.mxu0 0.0
    %792 = vmatpush1.msra.mxu0 0.0
    %793 = vmatprep.subr.mxu0 0.0
    %794 = vmatpush1.msra.mxu0 0.0
    %795 = vmatprep.subr.mxu0 0.0
    %796 = vmatpush1.msra.mxu0 0.0
    %797 = vmatprep.subr.mxu0 0.0
    %798 = vmatpush1.msra.mxu0 0.0
    %799 = vmatprep.subr.mxu0 0.0
    %800 = vmatpush1.msra.mxu0 0.0
    %801 = vmatprep.subr.mxu0 0.0
    %802 = vmatpush1.msra.mxu0 0.0
    %803 = vmatprep.subr.mxu0 0.0
    %804 = vmatpush1.msra.mxu0 0.0
    %805 = vmatprep.subr.mxu0 0.0
    %806 = vmatpush1.msra.mxu0 0.0
    %807 = vmatprep.subr.mxu0 0.0
    %808 = vmatpush1.msra.mxu0 0.0
    %809 = vmatprep.subr.mxu0 0.0
    %810 = vmatpush1.msra.mxu0 0.0
    %811 = vmatprep.subr.mxu0 0.0
    %812 = vmatpush1.msra.mxu0 0.0
    %813 = vmatprep.subr.mxu0 0.0
    %814 = vmatpush1.msra.mxu0 0.0
    %815 = vmatprep.subr.mxu0 0.0
    %816 = vmatpush1.msra.mxu0 0.0
    %817 = vmatprep.subr.mxu0 0.0
    %818 = vmatpush1.msra.mxu0 0.0
    %819 = vmatprep.subr.mxu0 0.0
    %820 = vmatpush1.msra.mxu0 0.0
    %821 = vmatprep.mubr.f32.mxu0 0.0
    %822 = vmatmul.mubr.f32.gmra.mrb[0].mxu0 %v755
    %v823 = vpop.f32.mrb[0].mxu0
    %v824 = vadd.f32 0.0, %v823
    %v825 = vpop.f32.mrb[0].mxu0
    %v826 = vadd.f32 0.0, %v825
    %827 = vdwg.mxu0
    %v828 = vadd.f32 %v746, %v824
    %v829 = vadd.f32 %v747, %v826
    %v830 = vmul.f32 %v828, %v332
    %v831 = vmul.f32 %v829, %v333
    %v832 = vtanh.pop %v830
    %v833 = vtanh.pop %v831
    %v834 = vmul.f32 %v832, 0.5
    %v835 = vmul.f32 %v833, 0.5
    %v836 = vadd.f32 %v834, 0.5
    %v837 = vadd.f32 %v835, 0.5
    %v838 = vsel %vm330, %v832, %v836
    %v839 = vsel %vm331, %v833, %v837
    %v840 = vmul.f32 %v838, %v713
    %v841 = vmul.f32 %v838, %v839
    %843 = vrot.lane.b32.xlu0 %v841, 64
    %v844 = vpop.permute.xlu0 %843
    %v846 = vadd.f32 %v840, %v844
    %v847 = vtanh.pop %v846
    %v848 = vmul.f32 %v839, %v847
    %v849 = vsub.f32 %v846, %v713
    %v850 = vmul.f32 %v750, %v849
    %v851 = vadd.f32 %v713, %v850
    %v852 = vsub.f32 %v848, %v716
    %v853 = vmul.f32 %v750, %v852
    %v854 = vadd.f32 %v716, %v853
    %v855 = vmul.f32 %v750, %v848
    %857 = vrot.lane.b32.xlu0 %v855, 64
    %v858 = vpop.permute.xlu0 %857
    %860 = vst.msk [vmem:[#allocation2 + $0x2] sm:$0x1] %vm584, %v858
    %861 = vst.msk [vmem:[#allocation2 + $0x9] sm:$0x2] %vm586, %v858
    %862 = vst.msk [vmem:[#allocation2 + $0x3] sm:$0x4] %vm588, %v858
    %863 = vst.msk [vmem:[#allocation2 + $0xa] sm:$0x8] %vm590, %v858
    %v864 = vsel %vm319, %v734, %v738
    %v865 = vsel %vm319, %v735, %v739
    %v866 = vsel %vm321, %v864, %v726
    %v867 = vsel %vm321, %v865, %v727
    %v868 = vsel %vm323, %v866, %v730
    %v869 = vsel %vm323, %v867, %v731
    %870 = vset.pattern.permute.xlu0 3
    %871 = vperm.xlu0 %870, %v324
    %v872 = vpop.permute.xlu0 %871
    %875 = vrot.lane.b32.xlu0 %v854, 64
    %v876 = vpop.permute.xlu0 %875
    %v877 = vsel %vm480, %v876, 0
    %879 = vmatprep.subr.mxu0 %v335
    %880 = vmatpush1.msra.mxu0 %v334
    %881 = vmatprep.subr.mxu0 %v337
    %882 = vmatpush1.msra.mxu0 %v336
    %883 = vmatprep.subr.mxu0 %v339
    %884 = vmatpush1.msra.mxu0 %v338
    %885 = vmatprep.subr.mxu0 %v341
    %886 = vmatpush1.msra.mxu0 %v340
    %887 = vmatprep.subr.mxu0 %v343
    %888 = vmatpush1.msra.mxu0 %v342
    %889 = vmatprep.subr.mxu0 %v345
    %890 = vmatpush1.msra.mxu0 %v344
    %891 = vmatprep.subr.mxu0 %v347
    %892 = vmatpush1.msra.mxu0 %v346
    %893 = vmatprep.subr.mxu0 %v349
    %894 = vmatpush1.msra.mxu0 %v348
    %895 = vmatprep.subr.mxu0 0.0
    %896 = vmatpush1.msra.mxu0 0.0
    %897 = vmatprep.subr.mxu0 0.0
    %898 = vmatpush1.msra.mxu0 0.0
    %899 = vmatprep.subr.mxu0 0.0
    %900 = vmatpush1.msra.mxu0 0.0
    %901 = vmatprep.subr.mxu0 0.0
    %902 = vmatpush1.msra.mxu0 0.0
    %903 = vmatprep.subr.mxu0 0.0
    %904 = vmatpush1.msra.mxu0 0.0
    %905 = vmatprep.subr.mxu0 0.0
    %906 = vmatpush1.msra.mxu0 0.0
    %907 = vmatprep.subr.mxu0 0.0
    %908 = vmatpush1.msra.mxu0 0.0
    %909 = vmatprep.subr.mxu0 0.0
    %910 = vmatpush1.msra.mxu0 0.0
    %911 = vmatprep.subr.mxu0 0.0
    %912 = vmatpush1.msra.mxu0 0.0
    %913 = vmatprep.subr.mxu0 0.0
    %914 = vmatpush1.msra.mxu0 0.0
    %915 = vmatprep.subr.mxu0 0.0
    %916 = vmatpush1.msra.mxu0 0.0
    %917 = vmatprep.subr.mxu0 0.0
    %918 = vmatpush1.msra.mxu0 0.0
    %919 = vmatprep.subr.mxu0 0.0
    %920 = vmatpush1.msra.mxu0 0.0
    %921 = vmatprep.subr.mxu0 0.0
    %922 = vmatpush1.msra.mxu0 0.0
    %923 = vmatprep.subr.mxu0 0.0
    %924 = vmatpush1.msra.mxu0 0.0
    %925 = vmatprep.subr.mxu0 0.0
    %926 = vmatpush1.msra.mxu0 0.0
    %927 = vmatprep.subr.mxu0 0.0
    %928 = vmatpush1.msra.mxu0 0.0
    %929 = vmatprep.subr.mxu0 0.0
    %930 = vmatpush1.msra.mxu0 0.0
    %931 = vmatprep.subr.mxu0 0.0
    %932 = vmatpush1.msra.mxu0 0.0
    %933 = vmatprep.subr.mxu0 0.0
    %934 = vmatpush1.msra.mxu0 0.0
    %935 = vmatprep.subr.mxu0 0.0
    %936 = vmatpush1.msra.mxu0 0.0
    %937 = vmatprep.subr.mxu0 0.0
    %938 = vmatpush1.msra.mxu0 0.0
    %939 = vmatprep.subr.mxu0 0.0
    %940 = vmatpush1.msra.mxu0 0.0
    %941 = vmatprep.subr.mxu0 0.0
    %942 = vmatpush1.msra.mxu0 0.0
    %943 = vmatprep.mubr.f32.mxu0 0.0
    %944 = vmatmul.mubr.f32.gmra.mrb[0].mxu0 %v877
    %v945 = vpop.f32.mrb[0].mxu0
    %v946 = vadd.f32 0.0, %v945
    %v947 = vpop.f32.mrb[0].mxu0
    %v948 = vadd.f32 0.0, %v947
    %949 = vdwg.mxu0
    %v950 = vadd.f32 %v868, %v946
    %v951 = vadd.f32 %v869, %v948
    %v952 = vmul.f32 %v950, %v332
    %v953 = vmul.f32 %v951, %v333
    %v954 = vtanh.pop %v952
    %v955 = vtanh.pop %v953
    %v956 = vmul.f32 %v954, 0.5
    %v957 = vmul.f32 %v955, 0.5
    %v958 = vadd.f32 %v956, 0.5
    %v959 = vadd.f32 %v957, 0.5
    %v960 = vsel %vm330, %v954, %v958
    %v961 = vsel %vm331, %v955, %v959
    %v962 = vmul.f32 %v960, %v851
    %v963 = vmul.f32 %v960, %v961
    %965 = vrot.lane.b32.xlu0 %v963, 64
    %v966 = vpop.permute.xlu0 %965
    %v968 = vadd.f32 %v962, %v966
    %v969 = vtanh.pop %v968
    %v970 = vmul.f32 %v961, %v969
    %v971 = vsub.f32 %v968, %v851
    %v972 = vmul.f32 %v872, %v971
    %v973 = vadd.f32 %v851, %v972
    %v974 = vsub.f32 %v970, %v854
    %v975 = vmul.f32 %v872, %v974
    %v976 = vadd.f32 %v854, %v975
    %v977 = vmul.f32 %v872, %v970
    %979 = vrot.lane.b32.xlu0 %v977, 64
    %v980 = vpop.permute.xlu0 %979
    %982 = vst.msk [vmem:[#allocation2 + $0x3] sm:$0x1] %vm584, %v980
    %983 = vst.msk [vmem:[#allocation2 + $0xa] sm:$0x2] %vm586, %v980
    %984 = vst.msk [vmem:[#allocation2 + $0x2] sm:$0x4] %vm588, %v980
    %985 = vst.msk [vmem:[#allocation2 + $0x9] sm:$0x8] %vm590, %v980
    %v986 = vsel %vm319, %v596, %v600
    %v987 = vsel %vm319, %v597, %v601
    %v988 = vsel %vm321, %v986, %v592
    %v989 = vsel %vm321, %v987, %v593
    %v990 = vsel %vm323, %v988, %v449
    %v991 = vsel %vm323, %v989, %v451
    %992 = vset.pattern.permute.xlu0 4
    %993 = vperm.xlu0 %992, %v324
    %v994 = vpop.permute.xlu0 %993
    %997 = vrot.lane.b32.xlu0 %v976, 64
    %v998 = vpop.permute.xlu0 %997
    %v999 = vsel %vm480, %v998, 0
    %1001 = vmatprep.subr.mxu0 %v335
    %1002 = vmatpush1.msra.mxu0 %v334
    %1003 = vmatprep.subr.mxu0 %v337
    %1004 = vmatpush1.msra.mxu0 %v336
    %1005 = vmatprep.subr.mxu0 %v339
    %1006 = vmatpush1.msra.mxu0 %v338
    %1007 = vmatprep.subr.mxu0 %v341
    %1008 = vmatpush1.msra.mxu0 %v340
    %1009 = vmatprep.subr.mxu0 %v343
    %1010 = vmatpush1.msra.mxu0 %v342
    %1011 = vmatprep.subr.mxu0 %v345
    %1012 = vmatpush1.msra.mxu0 %v344
    %1013 = vmatprep.subr.mxu0 %v347
    %1014 = vmatpush1.msra.mxu0 %v346
    %1015 = vmatprep.subr.mxu0 %v349
    %1016 = vmatpush1.msra.mxu0 %v348
    %1017 = vmatprep.subr.mxu0 0.0
    %1018 = vmatpush1.msra.mxu0 0.0
    %1019 = vmatprep.subr.mxu0 0.0
    %1020 = vmatpush1.msra.mxu0 0.0
    %1021 = vmatprep.subr.mxu0 0.0
    %1022 = vmatpush1.msra.mxu0 0.0
    %1023 = vmatprep.subr.mxu0 0.0
    %1024 = vmatpush1.msra.mxu0 0.0
    %1025 = vmatprep.subr.mxu0 0.0
    %1026 = vmatpush1.msra.mxu0 0.0
    %1027 = vmatprep.subr.mxu0 0.0
    %1028 = vmatpush1.msra.mxu0 0.0
    %1029 = vmatprep.subr.mxu0 0.0
    %1030 = vmatpush1.msra.mxu0 0.0
    %1031 = vmatprep.subr.mxu0 0.0
    %1032 = vmatpush1.msra.mxu0 0.0
    %1033 = vmatprep.subr.mxu0 0.0
    %1034 = vmatpush1.msra.mxu0 0.0
    %1035 = vmatprep.subr.mxu0 0.0
    %1036 = vmatpush1.msra.mxu0 0.0
    %1037 = vmatprep.subr.mxu0 0.0
    %1038 = vmatpush1.msra.mxu0 0.0
    %1039 = vmatprep.subr.mxu0 0.0
    %1040 = vmatpush1.msra.mxu0 0.0
    %1041 = vmatprep.subr.mxu0 0.0
    %1042 = vmatpush1.msra.mxu0 0.0
    %1043 = vmatprep.subr.mxu0 0.0
    %1044 = vmatpush1.msra.mxu0 0.0
    %1045 = vmatprep.subr.mxu0 0.0
    %1046 = vmatpush1.msra.mxu0 0.0
    %1047 = vmatprep.subr.mxu0 0.0
    %1048 = vmatpush1.msra.mxu0 0.0
    %1049 = vmatprep.subr.mxu0 0.0
    %1050 = vmatpush1.msra.mxu0 0.0
    %1051 = vmatprep.subr.mxu0 0.0
    %1052 = vmatpush1.msra.mxu0 0.0
    %1053 = vmatprep.subr.mxu0 0.0
    %1054 = vmatpush1.msra.mxu0 0.0
    %1055 = vmatprep.subr.mxu0 0.0
    %1056 = vmatpush1.msra.mxu0 0.0
    %1057 = vmatprep.subr.mxu0 0.0
    %1058 = vmatpush1.msra.mxu0 0.0
    %1059 = vmatprep.subr.mxu0 0.0
    %1060 = vmatpush1.msra.mxu0 0.0
    %1061 = vmatprep.subr.mxu0 0.0
    %1062 = vmatpush1.msra.mxu0 0.0
    %1063 = vmatprep.subr.mxu0 0.0
    %1064 = vmatpush1.msra.mxu0 0.0
    %1065 = vmatprep.mubr.f32.mxu0 0.0
    %1066 = vmatmul.mubr.f32.gmra.mrb[0].mxu0 %v999
    %v1067 = vpop.f32.mrb[0].mxu0
    %v1068 = vadd.f32 0.0, %v1067
    %v1069 = vpop.f32.mrb[0].mxu0
    %v1070 = vadd.f32 0.0, %v1069
    %1071 = vdwg.mxu0
    %v1072 = vadd.f32 %v990, %v1068
    %v1073 = vadd.f32 %v991, %v1070
    %v1074 = vmul.f32 %v1072, %v332
    %v1075 = vmul.f32 %v1073, %v333
    %v1076 = vtanh.pop %v1074
    %v1077 = vtanh.pop %v1075
    %v1078 = vmul.f32 %v1076, 0.5
    %v1079 = vmul.f32 %v1077, 0.5
    %v1080 = vadd.f32 %v1078, 0.5
    %v1081 = vadd.f32 %v1079, 0.5
    %v1082 = vsel %vm330, %v1076, %v1080
    %v1083 = vsel %vm331, %v1077, %v1081
    %v1084 = vmul.f32 %v1082, %v973
    %v1085 = vmul.f32 %v1082, %v1083
    %1087 = vrot.lane.b32.xlu0 %v1085, 64
    %v1088 = vpop.permute.xlu0 %1087
    %v1090 = vadd.f32 %v1084, %v1088
    %v1091 = vtanh.pop %v1090
    %v1092 = vmul.f32 %v1083, %v1091
    %v1093 = vsub.f32 %v1090, %v973
    %v1094 = vmul.f32 %v994, %v1093
    %v1095 = vadd.f32 %v973, %v1094
    %v1096 = vsub.f32 %v1092, %v976
    %v1097 = vmul.f32 %v994, %v1096
    %v1098 = vadd.f32 %v976, %v1097
    %v1099 = vmul.f32 %v994, %v1092
    %1101 = vrot.lane.b32.xlu0 %v1099, 64
    %v1102 = vpop.permute.xlu0 %1101
    %1104 = vst.msk [vmem:[#allocation2 + $0x4] sm:$0x1] %vm584, %v1102
    %1105 = vst.msk [vmem:[#allocation2 + $0xb] sm:$0x2] %vm586, %v1102
    %1106 = vst.msk [vmem:[#allocation2 + $0x1] sm:$0x4] %vm588, %v1102
    %1107 = vst.msk [vmem:[#allocation2 + $0x8] sm:$0x8] %vm590, %v1102
    %v1108 = vsel %vm319, %v461, %v465
    %v1109 = vsel %vm319, %v462, %v466
    %v1110 = vsel %vm321, %v1108, %v443
    %v1111 = vsel %vm321, %v1109, %v445
    %v1112 = vsel %vm323, %v1110, %v455
    %v1113 = vsel %vm323, %v1111, %v456
    %1114 = vset.pattern.permute.xlu0 5
    %1115 = vperm.xlu0 %1114, %v324
    %v1116 = vpop.permute.xlu0 %1115
    %1119 = vrot.lane.b32.xlu0 %v1098, 64
    %v1120 = vpop.permute.xlu0 %1119
    %v1121 = vsel %vm480, %v1120, 0
    %1123 = vmatprep.subr.mxu0 %v335
    %1124 = vmatpush1.msra.mxu0 %v334
    %1125 = vmatprep.subr.mxu0 %v337
    %1126 = vmatpush1.msra.mxu0 %v336
    %1127 = vmatprep.subr.mxu0 %v339
    %1128 = vmatpush1.msra.mxu0 %v338
    %1129 = vmatprep.subr.mxu0 %v341
    %1130 = vmatpush1.msra.mxu0 %v340
    %1131 = vmatprep.subr.mxu0 %v343
    %1132 = vmatpush1.msra.mxu0 %v342
    %1133 = vmatprep.subr.mxu0 %v345
    %1134 = vmatpush1.msra.mxu0 %v344
    %1135 = vmatprep.subr.mxu0 %v347
    %1136 = vmatpush1.msra.mxu0 %v346
    %1137 = vmatprep.subr.mxu0 %v349
    %1138 = vmatpush1.msra.mxu0 %v348
    %1139 = vmatprep.subr.mxu0 0.0
    %1140 = vmatpush1.msra.mxu0 0.0
    %1141 = vmatprep.subr.mxu0 0.0
    %1142 = vmatpush1.msra.mxu0 0.0
    %1143 = vmatprep.subr.mxu0 0.0
    %1144 = vmatpush1.msra.mxu0 0.0
    %1145 = vmatprep.subr.mxu0 0.0
    %1146 = vmatpush1.msra.mxu0 0.0
    %1147 = vmatprep.subr.mxu0 0.0
    %1148 = vmatpush1.msra.mxu0 0.0
    %1149 = vmatprep.subr.mxu0 0.0
    %1150 = vmatpush1.msra.mxu0 0.0
    %1151 = vmatprep.subr.mxu0 0.0
    %1152 = vmatpush1.msra.mxu0 0.0
    %1153 = vmatprep.subr.mxu0 0.0
    %1154 = vmatpush1.msra.mxu0 0.0
    %1155 = vmatprep.subr.mxu0 0.0
    %1156 = vmatpush1.msra.mxu0 0.0
    %1157 = vmatprep.subr.mxu0 0.0
    %1158 = vmatpush1.msra.mxu0 0.0
    %1159 = vmatprep.subr.mxu0 0.0
    %1160 = vmatpush1.msra.mxu0 0.0
    %1161 = vmatprep.subr.mxu0 0.0
    %1162 = vmatpush1.msra.mxu0 0.0
    %1163 = vmatprep.subr.mxu0 0.0
    %1164 = vmatpush1.msra.mxu0 0.0
    %1165 = vmatprep.subr.mxu0 0.0
    %1166 = vmatpush1.msra.mxu0 0.0
    %1167 = vmatprep.subr.mxu0 0.0
    %1168 = vmatpush1.msra.mxu0 0.0
    %1169 = vmatprep.subr.mxu0 0.0
    %1170 = vmatpush1.msra.mxu0 0.0
    %1171 = vmatprep.subr.mxu0 0.0
    %1172 = vmatpush1.msra.mxu0 0.0
    %1173 = vmatprep.subr.mxu0 0.0
    %1174 = vmatpush1.msra.mxu0 0.0
    %1175 = vmatprep.subr.mxu0 0.0
    %1176 = vmatpush1.msra.mxu0 0.0
    %1177 = vmatprep.subr.mxu0 0.0
    %1178 = vmatpush1.msra.mxu0 0.0
    %1179 = vmatprep.subr.mxu0 0.0
    %1180 = vmatpush1.msra.mxu0 0.0
    %1181 = vmatprep.subr.mxu0 0.0
    %1182 = vmatpush1.msra.mxu0 0.0
    %1183 = vmatprep.subr.mxu0 0.0
    %1184 = vmatpush1.msra.mxu0 0.0
    %1185 = vmatprep.subr.mxu0 0.0
    %1186 = vmatpush1.msra.mxu0 0.0
    %1187 = vmatprep.mubr.f32.mxu0 0.0
    %1188 = vmatmul.mubr.f32.gmra.mrb[0].mxu0 %v1121
    %v1189 = vpop.f32.mrb[0].mxu0
    %v1190 = vadd.f32 0.0, %v1189
    %v1191 = vpop.f32.mrb[0].mxu0
    %v1192 = vadd.f32 0.0, %v1191
    %1193 = vdwg.mxu0
    %v1194 = vadd.f32 %v1112, %v1190
    %v1195 = vadd.f32 %v1113, %v1192
    %v1196 = vmul.f32 %v1194, %v332
    %v1197 = vmul.f32 %v1195, %v333
    %v1198 = vtanh.pop %v1196
    %v1199 = vtanh.pop %v1197
    %v1200 = vmul.f32 %v1198, 0.5
    %v1201 = vmul.f32 %v1199, 0.5
    %v1202 = vadd.f32 %v1200, 0.5
    %v1203 = vadd.f32 %v1201, 0.5
    %v1204 = vsel %vm330, %v1198, %v1202
    %v1205 = vsel %vm331, %v1199, %v1203
    %v1206 = vmul.f32 %v1204, %v1095
    %v1207 = vmul.f32 %v1204, %v1205
    %1209 = vrot.lane.b32.xlu0 %v1207, 64
    %v1210 = vpop.permute.xlu0 %1209
    %v1212 = vadd.f32 %v1206, %v1210
    %v1213 = vtanh.pop %v1212
    %v1214 = vmul.f32 %v1205, %v1213
    %v1215 = vsub.f32 %v1212, %v1095
    %v1216 = vmul.f32 %v1116, %v1215
    %v1217 = vadd.f32 %v1095, %v1216
    %v1218 = vsub.f32 %v1214, %v1098
    %v1219 = vmul.f32 %v1116, %v1218
    %v1220 = vadd.f32 %v1098, %v1219
    %v1221 = vmul.f32 %v1116, %v1214
    %1223 = vrot.lane.b32.xlu0 %v1221, 64
    %v1224 = vpop.permute.xlu0 %1223
    %1226 = vst.msk [vmem:[#allocation2 + $0x5] sm:$0x1] %vm584, %v1224
    %1227 = vst.msk [vmem:[#allocation2 + $0xc] sm:$0x2] %vm586, %v1224
    %1228 = vst.msk [vmem:[#allocation2] sm:$0x4] %vm588, %v1224
    %1229 = vst.msk [vmem:[#allocation2 + $0x7] sm:$0x8] %vm590, %v1224
    %v1230 = vrot.slane %v443, 6
    %v1231 = vrot.slane %v445, 6
    %v1234 = vrot.slane %v449, 5
    %v1235 = vrot.slane %v451, 5
    %v1238 = vrot.slane %v443, 7
    %v1239 = vrot.slane %v445, 7
    %v1242 = vrot.slane %v449, 6
    %v1243 = vrot.slane %v451, 6
    %v1246 = vsel %vm319, %v1230, %v1234
    %v1247 = vsel %vm319, %v1231, %v1235
    %v1248 = vsel %vm321, %v1246, %v1238
    %v1249 = vsel %vm321, %v1247, %v1239
    %v1250 = vsel %vm323, %v1248, %v1242
    %v1251 = vsel %vm323, %v1249, %v1243
    %1252 = vset.pattern.permute.xlu0 6
    %1253 = vperm.xlu0 %1252, %v324
    %v1254 = vpop.permute.xlu0 %1253
    %1257 = vrot.lane.b32.xlu0 %v1220, 64
    %v1258 = vpop.permute.xlu0 %1257
    %v1259 = vsel %vm480, %v1258, 0
    %1261 = vmatprep.subr.mxu0 %v335
    %1262 = vmatpush1.msra.mxu0 %v334
    %1263 = vmatprep.subr.mxu0 %v337
    %1264 = vmatpush1.msra.mxu0 %v336
    %1265 = vmatprep.subr.mxu0 %v339
    %1266 = vmatpush1.msra.mxu0 %v338
    %1267 = vmatprep.subr.mxu0 %v341
    %1268 = vmatpush1.msra.mxu0 %v340
    %1269 = vmatprep.subr.mxu0 %v343
    %1270 = vmatpush1.msra.mxu0 %v342
    %1271 = vmatprep.subr.mxu0 %v345
    %1272 = vmatpush1.msra.mxu0 %v344
    %1273 = vmatprep.subr.mxu0 %v347
    %1274 = vmatpush1.msra.mxu0 %v346
    %1275 = vmatprep.subr.mxu0 %v349
    %1276 = vmatpush1.msra.mxu0 %v348
    %1277 = vmatprep.subr.mxu0 0.0
    %1278 = vmatpush1.msra.mxu0 0.0
    %1279 = vmatprep.subr.mxu0 0.0
    %1280 = vmatpush1.msra.mxu0 0.0
    %1281 = vmatprep.subr.mxu0 0.0
    %1282 = vmatpush1.msra.mxu0 0.0
    %1283 = vmatprep.subr.mxu0 0.0
    %1284 = vmatpush1.msra.mxu0 0.0
    %1285 = vmatprep.subr.mxu0 0.0
    %1286 = vmatpush1.msra.mxu0 0.0
    %1287 = vmatprep.subr.mxu0 0.0
    %1288 = vmatpush1.msra.mxu0 0.0
    %1289 = vmatprep.subr.mxu0 0.0
    %1290 = vmatpush1.msra.mxu0 0.0
    %1291 = vmatprep.subr.mxu0 0.0
    %1292 = vmatpush1.msra.mxu0 0.0
    %1293 = vmatprep.subr.mxu0 0.0
    %1294 = vmatpush1.msra.mxu0 0.0
    %1295 = vmatprep.subr.mxu0 0.0
    %1296 = vmatpush1.msra.mxu0 0.0
    %1297 = vmatprep.subr.mxu0 0.0
    %1298 = vmatpush1.msra.mxu0 0.0
    %1299 = vmatprep.subr.mxu0 0.0
    %1300 = vmatpush1.msra.mxu0 0.0
    %1301 = vmatprep.subr.mxu0 0.0
    %1302 = vmatpush1.msra.mxu0 0.0
    %1303 = vmatprep.subr.mxu0 0.0
    %1304 = vmatpush1.msra.mxu0 0.0
    %1305 = vmatprep.subr.mxu0 0.0
    %1306 = vmatpush1.msra.mxu0 0.0
    %1307 = vmatprep.subr.mxu0 0.0
    %1308 = vmatpush1.msra.mxu0 0.0
    %1309 = vmatprep.subr.mxu0 0.0
    %1310 = vmatpush1.msra.mxu0 0.0
    %1311 = vmatprep.subr.mxu0 0.0
    %1312 = vmatpush1.msra.mxu0 0.0
    %1313 = vmatprep.subr.mxu0 0.0
    %1314 = vmatpush1.msra.mxu0 0.0
    %1315 = vmatprep.subr.mxu0 0.0
    %1316 = vmatpush1.msra.mxu0 0.0
    %1317 = vmatprep.subr.mxu0 0.0
    %1318 = vmatpush1.msra.mxu0 0.0
    %1319 = vmatprep.subr.mxu0 0.0
    %1320 = vmatpush1.msra.mxu0 0.0
    %1321 = vmatprep.subr.mxu0 0.0
    %1322 = vmatpush1.msra.mxu0 0.0
    %1323 = vmatprep.subr.mxu0 0.0
    %1324 = vmatpush1.msra.mxu0 0.0
    %1325 = vmatprep.mubr.f32.mxu0 0.0
    %1326 = vmatmul.mubr.f32.gmra.mrb[0].mxu0 %v1259
    %v1327 = vpop.f32.mrb[0].mxu0
    %v1328 = vadd.f32 0.0, %v1327
    %v1329 = vpop.f32.mrb[0].mxu0
    %v1330 = vadd.f32 0.0, %v1329
    %1331 = vdwg.mxu0
    %v1332 = vadd.f32 %v1250, %v1328
    %v1333 = vadd.f32 %v1251, %v1330
    %v1334 = vmul.f32 %v1332, %v332
    %v1335 = vmul.f32 %v1333, %v333
    %v1336 = vtanh.pop %v1334
    %v1337 = vtanh.pop %v1335
    %v1338 = vmul.f32 %v1336, 0.5
    %v1339 = vmul.f32 %v1337, 0.5
    %v1340 = vadd.f32 %v1338, 0.5
    %v1341 = vadd.f32 %v1339, 0.5
    %v1342 = vsel %vm330, %v1336, %v1340
    %v1343 = vsel %vm331, %v1337, %v1341
    %v1344 = vmul.f32 %v1342, %v1217
    %v1345 = vmul.f32 %v1342, %v1343
    %1347 = vrot.lane.b32.xlu0 %v1345, 64
    %v1348 = vpop.permute.xlu0 %1347
    %v1350 = vadd.f32 %v1344, %v1348
    %v1351 = vtanh.pop %v1350
    %v1352 = vmul.f32 %v1343, %v1351
    %v1353 = vsub.f32 %v1350, %v1217
    %v1354 = vmul.f32 %v1254, %v1353
    %v1355 = vadd.f32 %v1217, %v1354
    %v1356 = vsub.f32 %v1352, %v1220
    %v1357 = vmul.f32 %v1254, %v1356
    %v1358 = vadd.f32 %v1220, %v1357
    %v1359 = vmul.f32 %v1254, %v1352
    %1361 = vrot.lane.b32.xlu0 %v1359, 64
    %v1362 = vpop.permute.xlu0 %1361
    %1364 = vst.msk [vmem:[#allocation2 + $0x6] sm:$0x1] %vm584, %v1362
    %1365 = vst.msk [vmem:[#allocation2 + $0xd] sm:$0x2] %vm586, %v1362
    %1366 = vst.msk [vmem:[#allocation2 - $0x1] sm:$0x4] %vm588, %v1362
    %1367 = vst.msk [vmem:[#allocation2 + $0x6] sm:$0x8] %vm590, %v1362
    %v1368 = vsel %vm319, %v1238, %v1242
    %v1369 = vsel %vm319, %v1239, %v1243
    %v1370 = vsel %vm321, %v1368, %v1230
    %v1371 = vsel %vm321, %v1369, %v1231
    %v1372 = vsel %vm323, %v1370, %v1234
    %v1373 = vsel %vm323, %v1371, %v1235
    %1374 = vset.pattern.permute.xlu0 7
    %1375 = vperm.xlu0 %1374, %v324
    %v1376 = vpop.permute.xlu0 %1375
    %1379 = vrot.lane.b32.xlu0 %v1358, 64
    %v1380 = vpop.permute.xlu0 %1379
    %v1381 = vsel %vm480, %v1380, 0
    %1383 = vmatprep.subr.mxu0 %v335
    %1384 = vmatpush1.msra.mxu0 %v334
    %1385 = vmatprep.subr.mxu0 %v337
    %1386 = vmatpush1.msra.mxu0 %v336
    %1387 = vmatprep.subr.mxu0 %v339
    %1388 = vmatpush1.msra.mxu0 %v338
    %1389 = vmatprep.subr.mxu0 %v341
    %1390 = vmatpush1.msra.mxu0 %v340
    %1391 = vmatprep.subr.mxu0 %v343
    %1392 = vmatpush1.msra.mxu0 %v342
    %1393 = vmatprep.subr.mxu0 %v345
    %1394 = vmatpush1.msra.mxu0 %v344
    %1395 = vmatprep.subr.mxu0 %v347
    %1396 = vmatpush1.msra.mxu0 %v346
    %1397 = vmatprep.subr.mxu0 %v349
    %1398 = vmatpush1.msra.mxu0 %v348
    %1399 = vmatprep.subr.mxu0 0.0
    %1400 = vmatpush1.msra.mxu0 0.0
    %1401 = vmatprep.subr.mxu0 0.0
    %1402 = vmatpush1.msra.mxu0 0.0
    %1403 = vmatprep.subr.mxu0 0.0
    %1404 = vmatpush1.msra.mxu0 0.0
    %1405 = vmatprep.subr.mxu0 0.0
    %1406 = vmatpush1.msra.mxu0 0.0
    %1407 = vmatprep.subr.mxu0 0.0
    %1408 = vmatpush1.msra.mxu0 0.0
    %1409 = vmatprep.subr.mxu0 0.0
    %1410 = vmatpush1.msra.mxu0 0.0
    %1411 = vmatprep.subr.mxu0 0.0
    %1412 = vmatpush1.msra.mxu0 0.0
    %1413 = vmatprep.subr.mxu0 0.0
    %1414 = vmatpush1.msra.mxu0 0.0
    %1415 = vmatprep.subr.mxu0 0.0
    %1416 = vmatpush1.msra.mxu0 0.0
    %1417 = vmatprep.subr.mxu0 0.0
    %1418 = vmatpush1.msra.mxu0 0.0
    %1419 = vmatprep.subr.mxu0 0.0
    %1420 = vmatpush1.msra.mxu0 0.0
    %1421 = vmatprep.subr.mxu0 0.0
    %1422 = vmatpush1.msra.mxu0 0.0
    %1423 = vmatprep.subr.mxu0 0.0
    %1424 = vmatpush1.msra.mxu0 0.0
    %1425 = vmatprep.subr.mxu0 0.0
    %1426 = vmatpush1.msra.mxu0 0.0
    %1427 = vmatprep.subr.mxu0 0.0
    %1428 = vmatpush1.msra.mxu0 0.0
    %1429 = vmatprep.subr.mxu0 0.0
    %1430 = vmatpush1.msra.mxu0 0.0
    %1431 = vmatprep.subr.mxu0 0.0
    %1432 = vmatpush1.msra.mxu0 0.0
    %1433 = vmatprep.subr.mxu0 0.0
    %1434 = vmatpush1.msra.mxu0 0.0
    %1435 = vmatprep.subr.mxu0 0.0
    %1436 = vmatpush1.msra.mxu0 0.0
    %1437 = vmatprep.subr.mxu0 0.0
    %1438 = vmatpush1.msra.mxu0 0.0
    %1439 = vmatprep.subr.mxu0 0.0
    %1440 = vmatpush1.msra.mxu0 0.0
    %1441 = vmatprep.subr.mxu0 0.0
    %1442 = vmatpush1.msra.mxu0 0.0
    %1443 = vmatprep.subr.mxu0 0.0
    %1444 = vmatpush1.msra.mxu0 0.0
    %1445 = vmatprep.subr.mxu0 0.0
    %1446 = vmatpush1.msra.mxu0 0.0
    %1447 = vmatprep.mubr.f32.mxu0 0.0
    %1448 = vmatmul.mubr.f32.gmra.mrb[0].mxu0 %v1381
    %v1449 = vpop.f32.mrb[0].mxu0
    %v1450 = vadd.f32 0.0, %v1449
    %v1451 = vpop.f32.mrb[0].mxu0
    %v1452 = vadd.f32 0.0, %v1451
    %1453 = vdwg.mxu0
    %v1454 = vadd.f32 %v1372, %v1450
    %v1455 = vadd.f32 %v1373, %v1452
    %v1456 = vmul.f32 %v1454, %v332
    %v1457 = vmul.f32 %v1455, %v333
    %v1458 = vtanh.pop %v1456
    %v1459 = vtanh.pop %v1457
    %v1460 = vmul.f32 %v1458, 0.5
    %v1461 = vmul.f32 %v1459, 0.5
    %v1462 = vadd.f32 %v1460, 0.5
    %v1463 = vadd.f32 %v1461, 0.5
    %v1464 = vsel %vm330, %v1458, %v1462
    %v1465 = vsel %vm331, %v1459, %v1463
    %v1466 = vmul.f32 %v1464, %v1355
    %v1467 = vmul.f32 %v1464, %v1465
    %1469 = vrot.lane.b32.xlu0 %v1467, 64
    %v1470 = vpop.permute.xlu0 %1469
    %v1472 = vadd.f32 %v1466, %v1470
    %v1473 = vtanh.pop %v1472
    %v1474 = vmul.f32 %v1465, %v1473
    %v1475 = vmul.f32 %v1376, %v1474
    %1477 = vrot.lane.b32.xlu0 %v1475, 64
    %v1478 = vpop.permute.xlu0 %1477
    %1480 = vst.msk [vmem:[#allocation2 + $0x7] sm:$0x1] %vm584, %v1478
    %1481 = vst.msk [vmem:[#allocation2 + $0xe] sm:$0x2] %vm586, %v1478
    %1482 = vst.msk [vmem:[#allocation2 - $0x2] sm:$0x4] %vm588, %v1478
    %1483 = vst.msk [vmem:[#allocation2 + $0x5] sm:$0x8] %vm590, %v1478
    %v1484 = vld [vmem:[#allocation2] sm:$0xff]
    %v1485 = vld [vmem:[#allocation2 + $0x8] sm:$0xff]
    %v1486 = vld [vmem:[#allocation13] sm:$0xff]
    %v1487 = vld [vmem:[#allocation13 + $0x8] sm:$0xff]
    %v1488 = vld [vmem:[#allocation13 + $0x10] sm:$0xff]
    %v1489 = vld [vmem:[#allocation13 + $0x18] sm:$0xff]
    %v1490 = vld [vmem:[#allocation13 + $0x20] sm:$0xff]
    %v1491 = vld [vmem:[#allocation13 + $0x28] sm:$0xff]
    %v1492 = vld [vmem:[#allocation13 + $0x30] sm:$0xff]
    %v1493 = vld [vmem:[#allocation13 + $0x38] sm:$0xff]
    %v1494 = vld [vmem:[#allocation13 + $0x40] sm:$0xff]
    %v1495 = vld [vmem:[#allocation13 + $0x48] sm:$0xff]
    %v1496 = vld [vmem:[#allocation13 + $0x50] sm:$0xff]
    %v1497 = vld [vmem:[#allocation13 + $0x58] sm:$0xff]
    %v1498 = vld [vmem:[#allocation13 + $0x60] sm:$0xff]
    %v1499 = vld [vmem:[#allocation13 + $0x68] sm:$0xff]
    %v1500 = vld [vmem:[#allocation13 + $0x70] sm:$0xff]
    %v1501 = vld [vmem:[#allocation13 + $0x78] sm:$0xff]
    %v1502 = vld [vmem:[#allocation12] sm:$0xff]
    %v1503 = vld [vmem:[#allocation12 + $0x8] sm:$0xff]
    %v1504 = vld [vmem:[#allocation12 + $0x10] sm:$0xff]
    %v1505 = vld [vmem:[#allocation12 + $0x18] sm:$0xff]
    %v1506 = vld [vmem:[#allocation12 + $0x20] sm:$0xff]
    %v1507 = vld [vmem:[#allocation12 + $0x28] sm:$0xff]
    %v1508 = vld [vmem:[#allocation12 + $0x30] sm:$0xff]
    %v1509 = vld [vmem:[#allocation12 + $0x38] sm:$0xff]
    %v1510 = vld [vmem:[#allocation12 + $0x40] sm:$0xff]
    %v1511 = vld [vmem:[#allocation12 + $0x48] sm:$0xff]
    %v1512 = vld [vmem:[#allocation12 + $0x50] sm:$0xff]
    %v1513 = vld [vmem:[#allocation12 + $0x58] sm:$0xff]
    %v1514 = vld [vmem:[#allocation12 + $0x60] sm:$0xff]
    %v1515 = vld [vmem:[#allocation12 + $0x68] sm:$0xff]
    %v1516 = vld [vmem:[#allocation12 + $0x70] sm:$0xff]
    %v1517 = vld [vmem:[#allocation12 + $0x78] sm:$0xff]
    %v1518 = vld [vmem:[%s7] sm:$0x3]
    %v1520 = vlaneseq
    %v1521 = vshrl.u32 %v1520, 7
    %v1522 = vsub.s32 0, %v1521
    %v1523 = vrot.slane %v1518, %v1522
    %v1524 = vlaneseq
    %v1525 = vshrl.u32 %v1524, 7
    %v1526 = vsub.s32 1, %v1525
    %v1527 = vrot.slane %v1518, %v1526
    %v1531 = vsel %vm480, %v1484, 0
    %v1534 = vsel %vm480, %v1485, 0
    %1536 = vmatprep.subr.mxu0 %v1503
    %1537 = vmatpush1.msra.mxu0 %v1502
    %1538 = vmatprep.subr.mxu0 %v1505
    %1539 = vmatpush1.msra.mxu0 %v1504
    %1540 = vmatprep.subr.mxu0 %v1507
    %1541 = vmatpush1.msra.mxu0 %v1506
    %1542 = vmatprep.subr.mxu0 %v1509
    %1543 = vmatpush1.msra.mxu0 %v1508
    %1544 = vmatprep.subr.mxu0 %v1511
    %1545 = vmatpush1.msra.mxu0 %v1510
    %1546 = vmatprep.subr.mxu0 %v1513
    %1547 = vmatpush1.msra.mxu0 %v1512
    %1548 = vmatprep.subr.mxu0 %v1515
    %1549 = vmatpush1.msra.mxu0 %v1514
    %1550 = vmatprep.subr.mxu0 %v1517
    %1551 = vmatpush1.msra.mxu0 %v1516
    %1552 = vmatprep.subr.mxu0 0.0
    %1553 = vmatpush1.msra.mxu0 0.0
    %1554 = vmatprep.subr.mxu0 0.0
    %1555 = vmatpush1.msra.mxu0 0.0
    %1556 = vmatprep.subr.mxu0 0.0
    %1557 = vmatpush1.msra.mxu0 0.0
    %1558 = vmatprep.subr.mxu0 0.0
    %1559 = vmatpush1.msra.mxu0 0.0
    %1560 = vmatprep.subr.mxu0 0.0
    %1561 = vmatpush1.msra.mxu0 0.0
    %1562 = vmatprep.subr.mxu0 0.0
    %1563 = vmatpush1.msra.mxu0 0.0
    %1564 = vmatprep.subr.mxu0 0.0
    %1565 = vmatpush1.msra.mxu0 0.0
    %1566 = vmatprep.subr.mxu0 0.0
    %1567 = vmatpush1.msra.mxu0 0.0
    %1568 = vmatprep.subr.mxu0 0.0
    %1569 = vmatpush1.msra.mxu0 0.0
    %1570 = vmatprep.subr.mxu0 0.0
    %1571 = vmatpush1.msra.mxu0 0.0
    %1572 = vmatprep.subr.mxu0 0.0
    %1573 = vmatpush1.msra.mxu0 0.0
    %1574 = vmatprep.subr.mxu0 0.0
    %1575 = vmatpush1.msra.mxu0 0.0
    %1576 = vmatprep.subr.mxu0 0.0
    %1577 = vmatpush1.msra.mxu0 0.0
    %1578 = vmatprep.subr.mxu0 0.0
    %1579 = vmatpush1.msra.mxu0 0.0
    %1580 = vmatprep.subr.mxu0 0.0
    %1581 = vmatpush1.msra.mxu0 0.0
    %1582 = vmatprep.subr.mxu0 0.0
    %1583 = vmatpush1.msra.mxu0 0.0
    %1584 = vmatprep.subr.mxu0 0.0
    %1585 = vmatpush1.msra.mxu0 0.0
    %1586 = vmatprep.subr.mxu0 0.0
    %1587 = vmatpush1.msra.mxu0 0.0
    %1588 = vmatprep.subr.mxu0 0.0
    %1589 = vmatpush1.msra.mxu0 0.0
    %1590 = vmatprep.subr.mxu0 0.0
    %1591 = vmatpush1.msra.mxu0 0.0
    %1592 = vmatprep.subr.mxu0 0.0
    %1593 = vmatpush1.msra.mxu0 0.0
    %1594 = vmatprep.subr.mxu0 0.0
    %1595 = vmatpush1.msra.mxu0 0.0
    %1596 = vmatprep.subr.mxu0 0.0
    %1597 = vmatpush1.msra.mxu0 0.0
    %1598 = vmatprep.subr.mxu0 0.0
    %1599 = vmatpush1.msra.mxu0 0.0
    %1600 = vmatprep.mubr.f32.mxu0 0.0
    %1601 = vmatmul.mubr.f32.gmra.mrb[0].mxu0 %v1531
    %v1602 = vpop.f32.mrb[0].mxu0
    %v1603 = vadd.f32 %v1523, %v1602
    %v1604 = vpop.f32.mrb[0].mxu0
    %v1605 = vadd.f32 %v1527, %v1604
    %1606 = vmatprep.mubr.f32.mxu0 0.0
    %1607 = vmatmul.mubr.f32.gmra.mrb[0].mxu0 %v1534
    %v1608 = vpop.f32.mrb[0].mxu0
    %v1609 = vadd.f32 %v1523, %v1608
    %v1610 = vpop.f32.mrb[0].mxu0
    %v1611 = vadd.f32 %v1527, %v1610
    %1612 = vdwg.mxu0
    %v1615 = vrot.slane %v1609, 7
    %v1616 = vrot.slane %v1611, 7
    %v1621 = vrot.slane %v1603, 5
    %v1622 = vrot.slane %v1605, 5
    %v1625 = vrot.slane %v1609, 4
    %v1626 = vrot.slane %v1611, 4
    %v1629 = vsel %vm319, %v1603, %v1615
    %v1630 = vsel %vm319, %v1605, %v1616
    %v1631 = vsel %vm321, %v1629, %v1621
    %v1632 = vsel %vm321, %v1630, %v1622
    %v1633 = vsel %vm323, %v1631, %v1625
    %v1634 = vsel %vm323, %v1632, %v1626
    %1635 = vmatprep.subr.mxu0 %v1487
    %1636 = vmatpush1.msra.mxu0 %v1486
    %1637 = vmatprep.subr.mxu0 %v1489
    %1638 = vmatpush1.msra.mxu0 %v1488
    %1639 = vmatprep.subr.mxu0 %v1491
    %1640 = vmatpush1.msra.mxu0 %v1490
    %1641 = vmatprep.subr.mxu0 %v1493
    %1642 = vmatpush1.msra.mxu0 %v1492
    %1643 = vmatprep.subr.mxu0 %v1495
    %1644 = vmatpush1.msra.mxu0 %v1494
    %1645 = vmatprep.subr.mxu0 %v1497
    %1646 = vmatpush1.msra.mxu0 %v1496
    %1647 = vmatprep.subr.mxu0 %v1499
    %1648 = vmatpush1.msra.mxu0 %v1498
    %1649 = vmatprep.subr.mxu0 %v1501
    %1650 = vmatpush1.msra.mxu0 %v1500
    %1651 = vmatprep.subr.mxu0 0.0
    %1652 = vmatpush1.msra.mxu0 0.0
    %1653 = vmatprep.subr.mxu0 0.0
    %1654 = vmatpush1.msra.mxu0 0.0
    %1655 = vmatprep.subr.mxu0 0.0
    %1656 = vmatpush1.msra.mxu0 0.0
    %1657 = vmatprep.subr.mxu0 0.0
    %1658 = vmatpush1.msra.mxu0 0.0
    %1659 = vmatprep.subr.mxu0 0.0
    %1660 = vmatpush1.msra.mxu0 0.0
    %1661 = vmatprep.subr.mxu0 0.0
    %1662 = vmatpush1.msra.mxu0 0.0
    %1663 = vmatprep.subr.mxu0 0.0
    %1664 = vmatpush1.msra.mxu0 0.0
    %1665 = vmatprep.subr.mxu0 0.0
    %1666 = vmatpush1.msra.mxu0 0.0
    %1667 = vmatprep.subr.mxu0 0.0
    %1668 = vmatpush1.msra.mxu0 0.0
    %1669 = vmatprep.subr.mxu0 0.0
    %1670 = vmatpush1.msra.mxu0 0.0
    %1671 = vmatprep.subr.mxu0 0.0
    %1672 = vmatpush1.msra.mxu0 0.0
    %1673 = vmatprep.subr.mxu0 0.0
    %1674 = vmatpush1.msra.mxu0 0.0
    %1675 = vmatprep.subr.mxu0 0.0
    %1676 = vmatpush1.msra.mxu0 0.0
    %1677 = vmatprep.subr.mxu0 0.0
    %1678 = vmatpush1.msra.mxu0 0.0
    %1679 = vmatprep.subr.mxu0 0.0
    %1680 = vmatpush1.msra.mxu0 0.0
    %1681 = vmatprep.subr.mxu0 0.0
    %1682 = vmatpush1.msra.mxu0 0.0
    %1683 = vmatprep.subr.mxu0 0.0
    %1684 = vmatpush1.msra.mxu0 0.0
    %1685 = vmatprep.subr.mxu0 0.0
    %1686 = vmatpush1.msra.mxu0 0.0
    %1687 = vmatprep.subr.mxu0 0.0
    %1688 = vmatpush1.msra.mxu0 0.0
    %1689 = vmatprep.subr.mxu0 0.0
    %1690 = vmatpush1.msra.mxu0 0.0
    %1691 = vmatprep.subr.mxu0 0.0
    %1692 = vmatpush1.msra.mxu0 0.0
    %1693 = vmatprep.subr.mxu0 0.0
    %1694 = vmatpush1.msra.mxu0 0.0
    %1695 = vmatprep.subr.mxu0 0.0
    %1696 = vmatpush1.msra.mxu0 0.0
    %1697 = vmatprep.subr.mxu0 0.0
    %1698 = vmatpush1.msra.mxu0 0.0
    %1699 = vmatprep.mubr.f32.mxu0 0.0
    %1700 = vmatmul.mubr.f32.gmra.mrb[0].mxu0 %v482
    %v1701 = vpop.f32.mrb[0].mxu0
    %v1702 = vadd.f32 0.0, %v1701
    %v1703 = vpop.f32.mrb[0].mxu0
    %v1704 = vadd.f32 0.0, %v1703
    %1705 = vdwg.mxu0
    %v1706 = vadd.f32 %v1633, %v1702
    %v1707 = vadd.f32 %v1634, %v1704
    %v1708 = vmul.f32 %v1706, %v332
    %v1709 = vmul.f32 %v1707, %v333
    %v1710 = vtanh.pop %v1708
    %v1711 = vtanh.pop %v1709
    %v1712 = vmul.f32 %v1710, 0.5
    %v1713 = vmul.f32 %v1711, 0.5
    %v1714 = vadd.f32 %v1712, 0.5
    %v1715 = vadd.f32 %v1713, 0.5
    %v1716 = vsel %vm330, %v1710, %v1714
    %v1717 = vsel %vm331, %v1711, %v1715
    %v1718 = vmul.f32 %v1716, 0.0
    %v1719 = vmul.f32 %v1716, %v1717
    %1721 = vrot.lane.b32.xlu0 %v1719, 64
    %v1722 = vpop.permute.xlu0 %1721
    %v1724 = vadd.f32 %v1718, %v1722
    %v1725 = vtanh.pop %v1724
    %v1726 = vmul.f32 %v1717, %v1725
    %v1727 = vmul.f32 %v478, %v1724
    %v1728 = vadd.f32 %v1727, 0.0
    %v1729 = vmul.f32 %v478, %v1726
    %v1730 = vadd.f32 %v1729, 0.0
    %1732 = vrot.lane.b32.xlu0 %v1729, 64
    %v1733 = vpop.permute.xlu0 %1732
    %1735 = vst.msk [vmem:[#allocation3] sm:$0x1] %vm584, %v1733
    %1736 = vst.msk [vmem:[#allocation3 + $0x7] sm:$0x2] %vm586, %v1733
    %1737 = vst.msk [vmem:[#allocation3 + $0x5] sm:$0x4] %vm588, %v1733
    %1738 = vst.msk [vmem:[#allocation3 + $0xc] sm:$0x8] %vm590, %v1733
    %v1739 = vrot.slane %v1603, 1
    %v1740 = vrot.slane %v1605, 1
    %v1743 = vrot.slane %v1603, 4
    %v1744 = vrot.slane %v1605, 4
    %v1747 = vrot.slane %v1609, 3
    %v1748 = vrot.slane %v1611, 3
    %v1751 = vsel %vm319, %v1739, %v1609
    %v1752 = vsel %vm319, %v1740, %v1611
    %v1753 = vsel %vm321, %v1751, %v1743
    %v1754 = vsel %vm321, %v1752, %v1744
    %v1755 = vsel %vm323, %v1753, %v1747
    %v1756 = vsel %vm323, %v1754, %v1748
    %1758 = vrot.lane.b32.xlu0 %v1730, 64
    %v1759 = vpop.permute.xlu0 %1758
    %v1760 = vsel %vm480, %v1759, 0
    %1762 = vmatprep.subr.mxu0 %v1487
    %1763 = vmatpush1.msra.mxu0 %v1486
    %1764 = vmatprep.subr.mxu0 %v1489
    %1765 = vmatpush1.msra.mxu0 %v1488
    %1766 = vmatprep.subr.mxu0 %v1491
    %1767 = vmatpush1.msra.mxu0 %v1490
    %1768 = vmatprep.subr.mxu0 %v1493
    %1769 = vmatpush1.msra.mxu0 %v1492
    %1770 = vmatprep.subr.mxu0 %v1495
    %1771 = vmatpush1.msra.mxu0 %v1494
    %1772 = vmatprep.subr.mxu0 %v1497
    %1773 = vmatpush1.msra.mxu0 %v1496
    %1774 = vmatprep.subr.mxu0 %v1499
    %1775 = vmatpush1.msra.mxu0 %v1498
    %1776 = vmatprep.subr.mxu0 %v1501
    %1777 = vmatpush1.msra.mxu0 %v1500
    %1778 = vmatprep.subr.mxu0 0.0
    %1779 = vmatpush1.msra.mxu0 0.0
    %1780 = vmatprep.subr.mxu0 0.0
    %1781 = vmatpush1.msra.mxu0 0.0
    %1782 = vmatprep.subr.mxu0 0.0
    %1783 = vmatpush1.msra.mxu0 0.0
    %1784 = vmatprep.subr.mxu0 0.0
    %1785 = vmatpush1.msra.mxu0 0.0
    %1786 = vmatprep.subr.mxu0 0.0
    %1787 = vmatpush1.msra.mxu0 0.0
    %1788 = vmatprep.subr.mxu0 0.0
    %1789 = vmatpush1.msra.mxu0 0.0
    %1790 = vmatprep.subr.mxu0 0.0
    %1791 = vmatpush1.msra.mxu0 0.0
    %1792 = vmatprep.subr.mxu0 0.0
    %1793 = vmatpush1.msra.mxu0 0.0
    %1794 = vmatprep.subr.mxu0 0.0
    %1795 = vmatpush1.msra.mxu0 0.0
    %1796 = vmatprep.subr.mxu0 0.0
    %1797 = vmatpush1.msra.mxu0 0.0
    %1798 = vmatprep.subr.mxu0 0.0
    %1799 = vmatpush1.msra.mxu0 0.0
    %1800 = vmatprep.subr.mxu0 0.0
    %1801 = vmatpush1.msra.mxu0 0.0
    %1802 = vmatprep.subr.mxu0 0.0
    %1803 = vmatpush1.msra.mxu0 0.0
    %1804 = vmatprep.subr.mxu0 0.0
    %1805 = vmatpush1.msra.mxu0 0.0
    %1806 = vmatprep.subr.mxu0 0.0
    %1807 = vmatpush1.msra.mxu0 0.0
    %1808 = vmatprep.subr.mxu0 0.0
    %1809 = vmatpush1.msra.mxu0 0.0
    %1810 = vmatprep.subr.mxu0 0.0
    %1811 = vmatpush1.msra.mxu0 0.0
    %1812 = vmatprep.subr.mxu0 0.0
    %1813 = vmatpush1.msra.mxu0 0.0
    %1814 = vmatprep.subr.mxu0 0.0
    %1815 = vmatpush1.msra.mxu0 0.0
    %1816 = vmatprep.subr.mxu0 0.0
    %1817 = vmatpush1.msra.mxu0 0.0
    %1818 = vmatprep.subr.mxu0 0.0
    %1819 = vmatpush1.msra.mxu0 0.0
    %1820 = vmatprep.subr.mxu0 0.0
    %1821 = vmatpush1.msra.mxu0 0.0
    %1822 = vmatprep.subr.mxu0 0.0
    %1823 = vmatpush1.msra.mxu0 0.0
    %1824 = vmatprep.subr.mxu0 0.0
    %1825 = vmatpush1.msra.mxu0 0.0
    %1826 = vmatprep.mubr.f32.mxu0 0.0
    %1827 = vmatmul.mubr.f32.gmra.mrb[0].mxu0 %v1760
    %v1828 = vpop.f32.mrb[0].mxu0
    %v1829 = vadd.f32 0.0, %v1828
    %v1830 = vpop.f32.mrb[0].mxu0
    %v1831 = vadd.f32 0.0, %v1830
    %1832 = vdwg.mxu0
    %v1833 = vadd.f32 %v1755, %v1829
    %v1834 = vadd.f32 %v1756, %v1831
    %v1835 = vmul.f32 %v1833, %v332
    %v1836 = vmul.f32 %v1834, %v333
    %v1837 = vtanh.pop %v1835
    %v1838 = vtanh.pop %v1836
    %v1839 = vmul.f32 %v1837, 0.5
    %v1840 = vmul.f32 %v1838, 0.5
    %v1841 = vadd.f32 %v1839, 0.5
    %v1842 = vadd.f32 %v1840, 0.5
    %v1843 = vsel %vm330, %v1837, %v1841
    %v1844 = vsel %vm331, %v1838, %v1842
    %v1845 = vmul.f32 %v1843, %v1728
    %v1846 = vmul.f32 %v1843, %v1844
    %1848 = vrot.lane.b32.xlu0 %v1846, 64
    %v1849 = vpop.permute.xlu0 %1848
    %v1851 = vadd.f32 %v1845, %v1849
    %v1852 = vtanh.pop %v1851
    %v1853 = vmul.f32 %v1844, %v1852
    %v1854 = vsub.f32 %v1851, %v1728
    %v1855 = vmul.f32 %v612, %v1854
    %v1856 = vadd.f32 %v1728, %v1855
    %v1857 = vsub.f32 %v1853, %v1730
    %v1858 = vmul.f32 %v612, %v1857
    %v1859 = vadd.f32 %v1730, %v1858
    %v1860 = vmul.f32 %v612, %v1853
    %1862 = vrot.lane.b32.xlu0 %v1860, 64
    %v1863 = vpop.permute.xlu0 %1862
    %1865 = vst.msk [vmem:[#allocation3 + $0x1] sm:$0x1] %vm584, %v1863
    %1866 = vst.msk [vmem:[#allocation3 + $0x8] sm:$0x2] %vm586, %v1863
    %1867 = vst.msk [vmem:[#allocation3 + $0x4] sm:$0x4] %vm588, %v1863
    %1868 = vst.msk [vmem:[#allocation3 + $0xb] sm:$0x8] %vm590, %v1863
    %v1869 = vrot.slane %v1603, 2
    %v1870 = vrot.slane %v1605, 2
    %v1873 = vrot.slane %v1609, 1
    %v1874 = vrot.slane %v1611, 1
    %v1877 = vrot.slane %v1603, 3
    %v1878 = vrot.slane %v1605, 3
    %v1881 = vrot.slane %v1609, 2
    %v1882 = vrot.slane %v1611, 2
    %v1885 = vsel %vm319, %v1869, %v1873
    %v1886 = vsel %vm319, %v1870, %v1874
    %v1887 = vsel %vm321, %v1885, %v1877
    %v1888 = vsel %vm321, %v1886, %v1878
    %v1889 = vsel %vm323, %v1887, %v1881
    %v1890 = vsel %vm323, %v1888, %v1882
    %1892 = vrot.lane.b32.xlu0 %v1859, 64
    %v1893 = vpop.permute.xlu0 %1892
    %v1894 = vsel %vm480, %v1893, 0
    %1896 = vmatprep.subr.mxu0 %v1487
    %1897 = vmatpush1.msra.mxu0 %v1486
    %1898 = vmatprep.subr.mxu0 %v1489
    %1899 = vmatpush1.msra.mxu0 %v1488
    %1900 = vmatprep.subr.mxu0 %v1491
    %1901 = vmatpush1.msra.mxu0 %v1490
    %1902 = vmatprep.subr.mxu0 %v1493
    %1903 = vmatpush1.msra.mxu0 %v1492
    %1904 = vmatprep.subr.mxu0 %v1495
    %1905 = vmatpush1.msra.mxu0 %v1494
    %1906 = vmatprep.subr.mxu0 %v1497
    %1907 = vmatpush1.msra.mxu0 %v1496
    %1908 = vmatprep.subr.mxu0 %v1499
    %1909 = vmatpush1.msra.mxu0 %v1498
    %1910 = vmatprep.subr.mxu0 %v1501
    %1911 = vmatpush1.msra.mxu0 %v1500
    %1912 = vmatprep.subr.mxu0 0.0
    %1913 = vmatpush1.msra.mxu0 0.0
    %1914 = vmatprep.subr.mxu0 0.0
    %1915 = vmatpush1.msra.mxu0 0.0
    %1916 = vmatprep.subr.mxu0 0.0
    %1917 = vmatpush1.msra.mxu0 0.0
    %1918 = vmatprep.subr.mxu0 0.0
    %1919 = vmatpush1.msra.mxu0 0.0
    %1920 = vmatprep.subr.mxu0 0.0
    %1921 = vmatpush1.msra.mxu0 0.0
    %1922 = vmatprep.subr.mxu0 0.0
    %1923 = vmatpush1.msra.mxu0 0.0
    %1924 = vmatprep.subr.mxu0 0.0
    %1925 = vmatpush1.msra.mxu0 0.0
    %1926 = vmatprep.subr.mxu0 0.0
    %1927 = vmatpush1.msra.mxu0 0.0
    %1928 = vmatprep.subr.mxu0 0.0
    %1929 = vmatpush1.msra.mxu0 0.0
    %1930 = vmatprep.subr.mxu0 0.0
    %1931 = vmatpush1.msra.mxu0 0.0
    %1932 = vmatprep.subr.mxu0 0.0
    %1933 = vmatpush1.msra.mxu0 0.0
    %1934 = vmatprep.subr.mxu0 0.0
    %1935 = vmatpush1.msra.mxu0 0.0
    %1936 = vmatprep.subr.mxu0 0.0
    %1937 = vmatpush1.msra.mxu0 0.0
    %1938 = vmatprep.subr.mxu0 0.0
    %1939 = vmatpush1.msra.mxu0 0.0
    %1940 = vmatprep.subr.mxu0 0.0
    %1941 = vmatpush1.msra.mxu0 0.0
    %1942 = vmatprep.subr.mxu0 0.0
    %1943 = vmatpush1.msra.mxu0 0.0
    %1944 = vmatprep.subr.mxu0 0.0
    %1945 = vmatpush1.msra.mxu0 0.0
    %1946 = vmatprep.subr.mxu0 0.0
    %1947 = vmatpush1.msra.mxu0 0.0
    %1948 = vmatprep.subr.mxu0 0.0
    %1949 = vmatpush1.msra.mxu0 0.0
    %1950 = vmatprep.subr.mxu0 0.0
    %1951 = vmatpush1.msra.mxu0 0.0
    %1952 = vmatprep.subr.mxu0 0.0
    %1953 = vmatpush1.msra.mxu0 0.0
    %1954 = vmatprep.subr.mxu0 0.0
    %1955 = vmatpush1.msra.mxu0 0.0
    %1956 = vmatprep.subr.mxu0 0.0
    %1957 = vmatpush1.msra.mxu0 0.0
    %1958 = vmatprep.subr.mxu0 0.0
    %1959 = vmatpush1.msra.mxu0 0.0
    %1960 = vmatprep.mubr.f32.mxu0 0.0
    %1961 = vmatmul.mubr.f32.gmra.mrb[0].mxu0 %v1894
    %v1962 = vpop.f32.mrb[0].mxu0
    %v1963 = vadd.f32 0.0, %v1962
    %v1964 = vpop.f32.mrb[0].mxu0
    %v1965 = vadd.f32 0.0, %v1964
    %1966 = vdwg.mxu0
    %v1967 = vadd.f32 %v1889, %v1963
    %v1968 = vadd.f32 %v1890, %v1965
    %v1969 = vmul.f32 %v1967, %v332
    %v1970 = vmul.f32 %v1968, %v333
    %v1971 = vtanh.pop %v1969
    %v1972 = vtanh.pop %v1970
    %v1973 = vmul.f32 %v1971, 0.5
    %v1974 = vmul.f32 %v1972, 0.5
    %v1975 = vadd.f32 %v1973, 0.5
    %v1976 = vadd.f32 %v1974, 0.5
    %v1977 = vsel %vm330, %v1971, %v1975
    %v1978 = vsel %vm331, %v1972, %v1976
    %v1979 = vmul.f32 %v1977, %v1856
    %v1980 = vmul.f32 %v1977, %v1978
    %1982 = vrot.lane.b32.xlu0 %v1980, 64
    %v1983 = vpop.permute.xlu0 %1982
    %v1985 = vadd.f32 %v1979, %v1983
    %v1986 = vtanh.pop %v1985
    %v1987 = vmul.f32 %v1978, %v1986
    %v1988 = vsub.f32 %v1985, %v1856
    %v1989 = vmul.f32 %v750, %v1988
    %v1990 = vadd.f32 %v1856, %v1989
    %v1991 = vsub.f32 %v1987, %v1859
    %v1992 = vmul.f32 %v750, %v1991
    %v1993 = vadd.f32 %v1859, %v1992
    %v1994 = vmul.f32 %v750, %v1987
    %1996 = vrot.lane.b32.xlu0 %v1994, 64
    %v1997 = vpop.permute.xlu0 %1996
    %1999 = vst.msk [vmem:[#allocation3 + $0x2] sm:$0x1] %vm584, %v1997
    %2000 = vst.msk [vmem:[#allocation3 + $0x9] sm:$0x2] %vm586, %v1997
    %2001 = vst.msk [vmem:[#allocation3 + $0x3] sm:$0x4] %vm588, %v1997
    %2002 = vst.msk [vmem:[#allocation3 + $0xa] sm:$0x8] %vm590, %v1997
    %v2003 = vsel %vm319, %v1877, %v1881
    %v2004 = vsel %vm319, %v1878, %v1882
    %v2005 = vsel %vm321, %v2003, %v1869
    %v2006 = vsel %vm321, %v2004, %v1870
    %v2007 = vsel %vm323, %v2005, %v1873
    %v2008 = vsel %vm323, %v2006, %v1874
    %2010 = vrot.lane.b32.xlu0 %v1993, 64
    %v2011 = vpop.permute.xlu0 %2010
    %v2012 = vsel %vm480, %v2011, 0
    %2014 = vmatprep.subr.mxu0 %v1487
    %2015 = vmatpush1.msra.mxu0 %v1486
    %2016 = vmatprep.subr.mxu0 %v1489
    %2017 = vmatpush1.msra.mxu0 %v1488
    %2018 = vmatprep.subr.mxu0 %v1491
    %2019 = vmatpush1.msra.mxu0 %v1490
    %2020 = vmatprep.subr.mxu0 %v1493
    %2021 = vmatpush1.msra.mxu0 %v1492
    %2022 = vmatprep.subr.mxu0 %v1495
    %2023 = vmatpush1.msra.mxu0 %v1494
    %2024 = vmatprep.subr.mxu0 %v1497
    %2025 = vmatpush1.msra.mxu0 %v1496
    %2026 = vmatprep.subr.mxu0 %v1499
    %2027 = vmatpush1.msra.mxu0 %v1498
    %2028 = vmatprep.subr.mxu0 %v1501
    %2029 = vmatpush1.msra.mxu0 %v1500
    %2030 = vmatprep.subr.mxu0 0.0
    %2031 = vmatpush1.msra.mxu0 0.0
    %2032 = vmatprep.subr.mxu0 0.0
    %2033 = vmatpush1.msra.mxu0 0.0
    %2034 = vmatprep.subr.mxu0 0.0
    %2035 = vmatpush1.msra.mxu0 0.0
    %2036 = vmatprep.subr.mxu0 0.0
    %2037 = vmatpush1.msra.mxu0 0.0
    %2038 = vmatprep.subr.mxu0 0.0
    %2039 = vmatpush1.msra.mxu0 0.0
    %2040 = vmatprep.subr.mxu0 0.0
    %2041 = vmatpush1.msra.mxu0 0.0
    %2042 = vmatprep.subr.mxu0 0.0
    %2043 = vmatpush1.msra.mxu0 0.0
    %2044 = vmatprep.subr.mxu0 0.0
    %2045 = vmatpush1.msra.mxu0 0.0
    %2046 = vmatprep.subr.mxu0 0.0
    %2047 = vmatpush1.msra.mxu0 0.0
    %2048 = vmatprep.subr.mxu0 0.0
    %2049 = vmatpush1.msra.mxu0 0.0
    %2050 = vmatprep.subr.mxu0 0.0
    %2051 = vmatpush1.msra.mxu0 0.0
    %2052 = vmatprep.subr.mxu0 0.0
    %2053 = vmatpush1.msra.mxu0 0.0
    %2054 = vmatprep.subr.mxu0 0.0
    %2055 = vmatpush1.msra.mxu0 0.0
    %2056 = vmatprep.subr.mxu0 0.0
    %2057 = vmatpush1.msra.mxu0 0.0
    %2058 = vmatprep.subr.mxu0 0.0
    %2059 = vmatpush1.msra.mxu0 0.0
    %2060 = vmatprep.subr.mxu0 0.0
    %2061 = vmatpush1.msra.mxu0 0.0
    %2062 = vmatprep.subr.mxu0 0.0
    %2063 = vmatpush1.msra.mxu0 0.0
    %2064 = vmatprep.subr.mxu0 0.0
    %2065 = vmatpush1.msra.mxu0 0.0
    %2066 = vmatprep.subr.mxu0 0.0
    %2067 = vmatpush1.msra.mxu0 0.0
    %2068 = vmatprep.subr.mxu0 0.0
    %2069 = vmatpush1.msra.mxu0 0.0
    %2070 = vmatprep.subr.mxu0 0.0
    %2071 = vmatpush1.msra.mxu0 0.0
    %2072 = vmatprep.subr.mxu0 0.0
    %2073 = vmatpush1.msra.mxu0 0.0
    %2074 = vmatprep.subr.mxu0 0.0
    %2075 = vmatpush1.msra.mxu0 0.0
    %2076 = vmatprep.subr.mxu0 0.0
    %2077 = vmatpush1.msra.mxu0 0.0
    %2078 = vmatprep.mubr.f32.mxu0 0.0
    %2079 = vmatmul.mubr.f32.gmra.mrb[0].mxu0 %v2012
    %v2080 = vpop.f32.mrb[0].mxu0
    %v2081 = vadd.f32 0.0, %v2080
    %v2082 = vpop.f32.mrb[0].mxu0
    %v2083 = vadd.f32 0.0, %v2082
    %2084 = vdwg.mxu0
    %v2085 = vadd.f32 %v2007, %v2081
    %v2086 = vadd.f32 %v2008, %v2083
    %v2087 = vmul.f32 %v2085, %v332
    %v2088 = vmul.f32 %v2086, %v333
    %v2089 = vtanh.pop %v2087
    %v2090 = vtanh.pop %v2088
    %v2091 = vmul.f32 %v2089, 0.5
    %v2092 = vmul.f32 %v2090, 0.5
    %v2093 = vadd.f32 %v2091, 0.5
    %v2094 = vadd.f32 %v2092, 0.5
    %v2095 = vsel %vm330, %v2089, %v2093
    %v2096 = vsel %vm331, %v2090, %v2094
    %v2097 = vmul.f32 %v2095, %v1990
    %v2098 = vmul.f32 %v2095, %v2096
    %2100 = vrot.lane.b32.xlu0 %v2098, 64
    %v2101 = vpop.permute.xlu0 %2100
    %v2103 = vadd.f32 %v2097, %v2101
    %v2104 = vtanh.pop %v2103
    %v2105 = vmul.f32 %v2096, %v2104
    %v2106 = vsub.f32 %v2103, %v1990
    %v2107 = vmul.f32 %v872, %v2106
    %v2108 = vadd.f32 %v1990, %v2107
    %v2109 = vsub.f32 %v2105, %v1993
    %v2110 = vmul.f32 %v872, %v2109
    %v2111 = vadd.f32 %v1993, %v2110
    %v2112 = vmul.f32 %v872, %v2105
    %2114 = vrot.lane.b32.xlu0 %v2112, 64
    %v2115 = vpop.permute.xlu0 %2114
    %2117 = vst.msk [vmem:[#allocation3 + $0x3] sm:$0x1] %vm584, %v2115
    %2118 = vst.msk [vmem:[#allocation3 + $0xa] sm:$0x2] %vm586, %v2115
    %2119 = vst.msk [vmem:[#allocation3 + $0x2] sm:$0x4] %vm588, %v2115
    %2120 = vst.msk [vmem:[#allocation3 + $0x9] sm:$0x8] %vm590, %v2115
    %v2121 = vsel %vm319, %v1743, %v1747
    %v2122 = vsel %vm319, %v1744, %v1748
    %v2123 = vsel %vm321, %v2121, %v1739
    %v2124 = vsel %vm321, %v2122, %v1740
    %v2125 = vsel %vm323, %v2123, %v1609
    %v2126 = vsel %vm323, %v2124, %v1611
    %2128 = vrot.lane.b32.xlu0 %v2111, 64
    %v2129 = vpop.permute.xlu0 %2128
    %v2130 = vsel %vm480, %v2129, 0
    %2132 = vmatprep.subr.mxu0 %v1487
    %2133 = vmatpush1.msra.mxu0 %v1486
    %2134 = vmatprep.subr.mxu0 %v1489
    %2135 = vmatpush1.msra.mxu0 %v1488
    %2136 = vmatprep.subr.mxu0 %v1491
    %2137 = vmatpush1.msra.mxu0 %v1490
    %2138 = vmatprep.subr.mxu0 %v1493
    %2139 = vmatpush1.msra.mxu0 %v1492
    %2140 = vmatprep.subr.mxu0 %v1495
    %2141 = vmatpush1.msra.mxu0 %v1494
    %2142 = vmatprep.subr.mxu0 %v1497
    %2143 = vmatpush1.msra.mxu0 %v1496
    %2144 = vmatprep.subr.mxu0 %v1499
    %2145 = vmatpush1.msra.mxu0 %v1498
    %2146 = vmatprep.subr.mxu0 %v1501
    %2147 = vmatpush1.msra.mxu0 %v1500
    %2148 = vmatprep.subr.mxu0 0.0
    %2149 = vmatpush1.msra.mxu0 0.0
    %2150 = vmatprep.subr.mxu0 0.0
    %2151 = vmatpush1.msra.mxu0 0.0
    %2152 = vmatprep.subr.mxu0 0.0
    %2153 = vmatpush1.msra.mxu0 0.0
    %2154 = vmatprep.subr.mxu0 0.0
    %2155 = vmatpush1.msra.mxu0 0.0
    %2156 = vmatprep.subr.mxu0 0.0
    %2157 = vmatpush1.msra.mxu0 0.0
    %2158 = vmatprep.subr.mxu0 0.0
    %2159 = vmatpush1.msra.mxu0 0.0
    %2160 = vmatprep.subr.mxu0 0.0
    %2161 = vmatpush1.msra.mxu0 0.0
    %2162 = vmatprep.subr.mxu0 0.0
    %2163 = vmatpush1.msra.mxu0 0.0
    %2164 = vmatprep.subr.mxu0 0.0
    %2165 = vmatpush1.msra.mxu0 0.0
    %2166 = vmatprep.subr.mxu0 0.0
    %2167 = vmatpush1.msra.mxu0 0.0
    %2168 = vmatprep.subr.mxu0 0.0
    %2169 = vmatpush1.msra.mxu0 0.0
    %2170 = vmatprep.subr.mxu0 0.0
    %2171 = vmatpush1.msra.mxu0 0.0
    %2172 = vmatprep.subr.mxu0 0.0
    %2173 = vmatpush1.msra.mxu0 0.0
    %2174 = vmatprep.subr.mxu0 0.0
    %2175 = vmatpush1.msra.mxu0 0.0
    %2176 = vmatprep.subr.mxu0 0.0
    %2177 = vmatpush1.msra.mxu0 0.0
    %2178 = vmatprep.subr.mxu0 0.0
    %2179 = vmatpush1.msra.mxu0 0.0
    %2180 = vmatprep.subr.mxu0 0.0
    %2181 = vmatpush1.msra.mxu0 0.0
    %2182 = vmatprep.subr.mxu0 0.0
    %2183 = vmatpush1.msra.mxu0 0.0
    %2184 = vmatprep.subr.mxu0 0.0
    %2185 = vmatpush1.msra.mxu0 0.0
    %2186 = vmatprep.subr.mxu0 0.0
    %2187 = vmatpush1.msra.mxu0 0.0
    %2188 = vmatprep.subr.mxu0 0.0
    %2189 = vmatpush1.msra.mxu0 0.0
    %2190 = vmatprep.subr.mxu0 0.0
    %2191 = vmatpush1.msra.mxu0 0.0
    %2192 = vmatprep.subr.mxu0 0.0
    %2193 = vmatpush1.msra.mxu0 0.0
    %2194 = vmatprep.subr.mxu0 0.0
    %2195 = vmatpush1.msra.mxu0 0.0
    %2196 = vmatprep.mubr.f32.mxu0 0.0
    %2197 = vmatmul.mubr.f32.gmra.mrb[0].mxu0 %v2130
    %v2198 = vpop.f32.mrb[0].mxu0
    %v2199 = vadd.f32 0.0, %v2198
    %v2200 = vpop.f32.mrb[0].mxu0
    %v2201 = vadd.f32 0.0, %v2200
    %2202 = vdwg.mxu0
    %v2203 = vadd.f32 %v2125, %v2199
    %v2204 = vadd.f32 %v2126, %v2201
    %v2205 = vmul.f32 %v2203, %v332
    %v2206 = vmul.f32 %v2204, %v333
    %v2207 = vtanh.pop %v2205
    %v2208 = vtanh.pop %v2206
    %v2209 = vmul.f32 %v2207, 0.5
    %v2210 = vmul.f32 %v2208, 0.5
    %v2211 = vadd.f32 %v2209, 0.5
    %v2212 = vadd.f32 %v2210, 0.5
    %v2213 = vsel %vm330, %v2207, %v2211
    %v2214 = vsel %vm331, %v2208, %v2212
    %v2215 = vmul.f32 %v2213, %v2108
    %v2216 = vmul.f32 %v2213, %v2214
    %2218 = vrot.lane.b32.xlu0 %v2216, 64
    %v2219 = vpop.permute.xlu0 %2218
    %v2221 = vadd.f32 %v2215, %v2219
    %v2222 = vtanh.pop %v2221
    %v2223 = vmul.f32 %v2214, %v2222
    %v2224 = vsub.f32 %v2221, %v2108
    %v2225 = vmul.f32 %v994, %v2224
    %v2226 = vadd.f32 %v2108, %v2225
    %v2227 = vsub.f32 %v2223, %v2111
    %v2228 = vmul.f32 %v994, %v2227
    %v2229 = vadd.f32 %v2111, %v2228
    %v2230 = vmul.f32 %v994, %v2223
    %2232 = vrot.lane.b32.xlu0 %v2230, 64
    %v2233 = vpop.permute.xlu0 %2232
    %2235 = vst.msk [vmem:[#allocation3 + $0x4] sm:$0x1] %vm584, %v2233
    %2236 = vst.msk [vmem:[#allocation3 + $0xb] sm:$0x2] %vm586, %v2233
    %2237 = vst.msk [vmem:[#allocation3 + $0x1] sm:$0x4] %vm588, %v2233
    %2238 = vst.msk [vmem:[#allocation3 + $0x8] sm:$0x8] %vm590, %v2233
    %v2239 = vsel %vm319, %v1621, %v1625
    %v2240 = vsel %vm319, %v1622, %v1626
    %v2241 = vsel %vm321, %v2239, %v1603
    %v2242 = vsel %vm321, %v2240, %v1605
    %v2243 = vsel %vm323, %v2241, %v1615
    %v2244 = vsel %vm323, %v2242, %v1616
    %2246 = vrot.lane.b32.xlu0 %v2229, 64
    %v2247 = vpop.permute.xlu0 %2246
    %v2248 = vsel %vm480, %v2247, 0
    %2250 = vmatprep.subr.mxu0 %v1487
    %2251 = vmatpush1.msra.mxu0 %v1486
    %2252 = vmatprep.subr.mxu0 %v1489
    %2253 = vmatpush1.msra.mxu0 %v1488
    %2254 = vmatprep.subr.mxu0 %v1491
    %2255 = vmatpush1.msra.mxu0 %v1490
    %2256 = vmatprep.subr.mxu0 %v1493
    %2257 = vmatpush1.msra.mxu0 %v1492
    %2258 = vmatprep.subr.mxu0 %v1495
    %2259 = vmatpush1.msra.mxu0 %v1494
    %2260 = vmatprep.subr.mxu0 %v1497
    %2261 = vmatpush1.msra.mxu0 %v1496
    %2262 = vmatprep.subr.mxu0 %v1499
    %2263 = vmatpush1.msra.mxu0 %v1498
    %2264 = vmatprep.subr.mxu0 %v1501
    %2265 = vmatpush1.msra.mxu0 %v1500
    %2266 = vmatprep.subr.mxu0 0.0
    %2267 = vmatpush1.msra.mxu0 0.0
    %2268 = vmatprep.subr.mxu0 0.0
    %2269 = vmatpush1.msra.mxu0 0.0
    %2270 = vmatprep.subr.mxu0 0.0
    %2271 = vmatpush1.msra.mxu0 0.0
    %2272 = vmatprep.subr.mxu0 0.0
    %2273 = vmatpush1.msra.mxu0 0.0
    %2274 = vmatprep.subr.mxu0 0.0
    %2275 = vmatpush1.msra.mxu0 0.0
    %2276 = vmatprep.subr.mxu0 0.0
    %2277 = vmatpush1.msra.mxu0 0.0
    %2278 = vmatprep.subr.mxu0 0.0
    %2279 = vmatpush1.msra.mxu0 0.0
    %2280 = vmatprep.subr.mxu0 0.0
    %2281 = vmatpush1.msra.mxu0 0.0
    %2282 = vmatprep.subr.mxu0 0.0
    %2283 = vmatpush1.msra.mxu0 0.0
    %2284 = vmatprep.subr.mxu0 0.0
    %2285 = vmatpush1.msra.mxu0 0.0
    %2286 = vmatprep.subr.mxu0 0.0
    %2287 = vmatpush1.msra.mxu0 0.0
    %2288 = vmatprep.subr.mxu0 0.0
    %2289 = vmatpush1.msra.mxu0 0.0
    %2290 = vmatprep.subr.mxu0 0.0
    %2291 = vmatpush1.msra.mxu0 0.0
    %2292 = vmatprep.subr.mxu0 0.0
    %2293 = vmatpush1.msra.mxu0 0.0
    %2294 = vmatprep.subr.mxu0 0.0
    %2295 = vmatpush1.msra.mxu0 0.0
    %2296 = vmatprep.subr.mxu0 0.0
    %2297 = vmatpush1.msra.mxu0 0.0
    %2298 = vmatprep.subr.mxu0 0.0
    %2299 = vmatpush1.msra.mxu0 0.0
    %2300 = vmatprep.subr.mxu0 0.0
    %2301 = vmatpush1.msra.mxu0 0.0
    %2302 = vmatprep.subr.mxu0 0.0
    %2303 = vmatpush1.msra.mxu0 0.0
    %2304 = vmatprep.subr.mxu0 0.0
    %2305 = vmatpush1.msra.mxu0 0.0
    %2306 = vmatprep.subr.mxu0 0.0
    %2307 = vmatpush1.msra.mxu0 0.0
    %2308 = vmatprep.subr.mxu0 0.0
    %2309 = vmatpush1.msra.mxu0 0.0
    %2310 = vmatprep.subr.mxu0 0.0
    %2311 = vmatpush1.msra.mxu0 0.0
    %2312 = vmatprep.subr.mxu0 0.0
    %2313 = vmatpush1.msra.mxu0 0.0
    %2314 = vmatprep.mubr.f32.mxu0 0.0
    %2315 = vmatmul.mubr.f32.gmra.mrb[0].mxu0 %v2248
    %v2316 = vpop.f32.mrb[0].mxu0
    %v2317 = vadd.f32 0.0, %v2316
    %v2318 = vpop.f32.mrb[0].mxu0
    %v2319 = vadd.f32 0.0, %v2318
    %2320 = vdwg.mxu0
    %v2321 = vadd.f32 %v2243, %v2317
    %v2322 = vadd.f32 %v2244, %v2319
    %v2323 = vmul.f32 %v2321, %v332
    %v2324 = vmul.f32 %v2322, %v333
    %v2325 = vtanh.pop %v2323
    %v2326 = vtanh.pop %v2324
    %v2327 = vmul.f32 %v2325, 0.5
    %v2328 = vmul.f32 %v2326, 0.5
    %v2329 = vadd.f32 %v2327, 0.5
    %v2330 = vadd.f32 %v2328, 0.5
    %v2331 = vsel %vm330, %v2325, %v2329
    %v2332 = vsel %vm331, %v2326, %v2330
    %v2333 = vmul.f32 %v2331, %v2226
    %v2334 = vmul.f32 %v2331, %v2332
    %2336 = vrot.lane.b32.xlu0 %v2334, 64
    %v2337 = vpop.permute.xlu0 %2336
    %v2339 = vadd.f32 %v2333, %v2337
    %v2340 = vtanh.pop %v2339
    %v2341 = vmul.f32 %v2332, %v2340
    %v2342 = vsub.f32 %v2339, %v2226
    %v2343 = vmul.f32 %v1116, %v2342
    %v2344 = vadd.f32 %v2226, %v2343
    %v2345 = vsub.f32 %v2341, %v2229
    %v2346 = vmul.f32 %v1116, %v2345
    %v2347 = vadd.f32 %v2229, %v2346
    %v2348 = vmul.f32 %v1116, %v2341
    %2350 = vrot.lane.b32.xlu0 %v2348, 64
    %v2351 = vpop.permute.xlu0 %2350
    %2353 = vst.msk [vmem:[#allocation3 + $0x5] sm:$0x1] %vm584, %v2351
    %2354 = vst.msk [vmem:[#allocation3 + $0xc] sm:$0x2] %vm586, %v2351
    %2355 = vst.msk [vmem:[#allocation3] sm:$0x4] %vm588, %v2351
    %2356 = vst.msk [vmem:[#allocation3 + $0x7] sm:$0x8] %vm590, %v2351
    %v2357 = vrot.slane %v1603, 6
    %v2358 = vrot.slane %v1605, 6
    %v2361 = vrot.slane %v1609, 5
    %v2362 = vrot.slane %v1611, 5
    %v2365 = vrot.slane %v1603, 7
    %v2366 = vrot.slane %v1605, 7
    %v2369 = vrot.slane %v1609, 6
    %v2370 = vrot.slane %v1611, 6
    %v2373 = vsel %vm319, %v2357, %v2361
    %v2374 = vsel %vm319, %v2358, %v2362
    %v2375 = vsel %vm321, %v2373, %v2365
    %v2376 = vsel %vm321, %v2374, %v2366
    %v2377 = vsel %vm323, %v2375, %v2369
    %v2378 = vsel %vm323, %v2376, %v2370
    %2380 = vrot.lane.b32.xlu0 %v2347, 64
    %v2381 = vpop.permute.xlu0 %2380
    %v2382 = vsel %vm480, %v2381, 0
    %2384 = vmatprep.subr.mxu0 %v1487
    %2385 = vmatpush1.msra.mxu0 %v1486
    %2386 = vmatprep.subr.mxu0 %v1489
    %2387 = vmatpush1.msra.mxu0 %v1488
    %2388 = vmatprep.subr.mxu0 %v1491
    %2389 = vmatpush1.msra.mxu0 %v1490
    %2390 = vmatprep.subr.mxu0 %v1493
    %2391 = vmatpush1.msra.mxu0 %v1492
    %2392 = vmatprep.subr.mxu0 %v1495
    %2393 = vmatpush1.msra.mxu0 %v1494
    %2394 = vmatprep.subr.mxu0 %v1497
    %2395 = vmatpush1.msra.mxu0 %v1496
    %2396 = vmatprep.subr.mxu0 %v1499
    %2397 = vmatpush1.msra.mxu0 %v1498
    %2398 = vmatprep.subr.mxu0 %v1501
    %2399 = vmatpush1.msra.mxu0 %v1500
    %2400 = vmatprep.subr.mxu0 0.0
    %2401 = vmatpush1.msra.mxu0 0.0
    %2402 = vmatprep.subr.mxu0 0.0
    %2403 = vmatpush1.msra.mxu0 0.0
    %2404 = vmatprep.subr.mxu0 0.0
    %2405 = vmatpush1.msra.mxu0 0.0
    %2406 = vmatprep.subr.mxu0 0.0
    %2407 = vmatpush1.msra.mxu0 0.0
    %2408 = vmatprep.subr.mxu0 0.0
    %2409 = vmatpush1.msra.mxu0 0.0
    %2410 = vmatprep.subr.mxu0 0.0
    %2411 = vmatpush1.msra.mxu0 0.0
    %2412 = vmatprep.subr.mxu0 0.0
    %2413 = vmatpush1.msra.mxu0 0.0
    %2414 = vmatprep.subr.mxu0 0.0
    %2415 = vmatpush1.msra.mxu0 0.0
    %2416 = vmatprep.subr.mxu0 0.0
    %2417 = vmatpush1.msra.mxu0 0.0
    %2418 = vmatprep.subr.mxu0 0.0
    %2419 = vmatpush1.msra.mxu0 0.0
    %2420 = vmatprep.subr.mxu0 0.0
    %2421 = vmatpush1.msra.mxu0 0.0
    %2422 = vmatprep.subr.mxu0 0.0
    %2423 = vmatpush1.msra.mxu0 0.0
    %2424 = vmatprep.subr.mxu0 0.0
    %2425 = vmatpush1.msra.mxu0 0.0
    %2426 = vmatprep.subr.mxu0 0.0
    %2427 = vmatpush1.msra.mxu0 0.0
    %2428 = vmatprep.subr.mxu0 0.0
    %2429 = vmatpush1.msra.mxu0 0.0
    %2430 = vmatprep.subr.mxu0 0.0
    %2431 = vmatpush1.msra.mxu0 0.0
    %2432 = vmatprep.subr.mxu0 0.0
    %2433 = vmatpush1.msra.mxu0 0.0
    %2434 = vmatprep.subr.mxu0 0.0
    %2435 = vmatpush1.msra.mxu0 0.0
    %2436 = vmatprep.subr.mxu0 0.0
    %2437 = vmatpush1.msra.mxu0 0.0
    %2438 = vmatprep.subr.mxu0 0.0
    %2439 = vmatpush1.msra.mxu0 0.0
    %2440 = vmatprep.subr.mxu0 0.0
    %2441 = vmatpush1.msra.mxu0 0.0
    %2442 = vmatprep.subr.mxu0 0.0
    %2443 = vmatpush1.msra.mxu0 0.0
    %2444 = vmatprep.subr.mxu0 0.0
    %2445 = vmatpush1.msra.mxu0 0.0
    %2446 = vmatprep.subr.mxu0 0.0
    %2447 = vmatpush1.msra.mxu0 0.0
    %2448 = vmatprep.mubr.f32.mxu0 0.0
    %2449 = vmatmul.mubr.f32.gmra.mrb[0].mxu0 %v2382
    %v2450 = vpop.f32.mrb[0].mxu0
    %v2451 = vadd.f32 0.0, %v2450
    %v2452 = vpop.f32.mrb[0].mxu0
    %v2453 = vadd.f32 0.0, %v2452
    %2454 = vdwg.mxu0
    %v2455 = vadd.f32 %v2377, %v2451
    %v2456 = vadd.f32 %v2378, %v2453
    %v2457 = vmul.f32 %v2455, %v332
    %v2458 = vmul.f32 %v2456, %v333
    %v2459 = vtanh.pop %v2457
    %v2460 = vtanh.pop %v2458
    %v2461 = vmul.f32 %v2459, 0.5
    %v2462 = vmul.f32 %v2460, 0.5
    %v2463 = vadd.f32 %v2461, 0.5
    %v2464 = vadd.f32 %v2462, 0.5
    %v2465 = vsel %vm330, %v2459, %v2463
    %v2466 = vsel %vm331, %v2460, %v2464
    %v2467 = vmul.f32 %v2465, %v2344
    %v2468 = vmul.f32 %v2465, %v2466
    %2470 = vrot.lane.b32.xlu0 %v2468, 64
    %v2471 = vpop.permute.xlu0 %2470
    %v2473 = vadd.f32 %v2467, %v2471
    %v2474 = vtanh.pop %v2473
    %v2475 = vmul.f32 %v2466, %v2474
    %v2476 = vsub.f32 %v2473, %v2344
    %v2477 = vmul.f32 %v1254, %v2476
    %v2478 = vadd.f32 %v2344, %v2477
    %v2479 = vsub.f32 %v2475, %v2347
    %v2480 = vmul.f32 %v1254, %v2479
    %v2481 = vadd.f32 %v2347, %v2480
    %v2482 = vmul.f32 %v1254, %v2475
    %2484 = vrot.lane.b32.xlu0 %v2482, 64
    %v2485 = vpop.permute.xlu0 %2484
    %2487 = vst.msk [vmem:[#allocation3 + $0x6] sm:$0x1] %vm584, %v2485
    %2488 = vst.msk [vmem:[#allocation3 + $0xd] sm:$0x2] %vm586, %v2485
    %2489 = vst.msk [vmem:[#allocation3 - $0x1] sm:$0x4] %vm588, %v2485
    %2490 = vst.msk [vmem:[#allocation3 + $0x6] sm:$0x8] %vm590, %v2485
    %v2491 = vsel %vm319, %v2365, %v2369
    %v2492 = vsel %vm319, %v2366, %v2370
    %v2493 = vsel %vm321, %v2491, %v2357
    %v2494 = vsel %vm321, %v2492, %v2358
    %v2495 = vsel %vm323, %v2493, %v2361
    %v2496 = vsel %vm323, %v2494, %v2362
    %2498 = vrot.lane.b32.xlu0 %v2481, 64
    %v2499 = vpop.permute.xlu0 %2498
    %v2500 = vsel %vm480, %v2499, 0
    %2502 = vmatprep.subr.mxu0 %v1487
    %2503 = vmatpush1.msra.mxu0 %v1486
    %2504 = vmatprep.subr.mxu0 %v1489
    %2505 = vmatpush1.msra.mxu0 %v1488
    %2506 = vmatprep.subr.mxu0 %v1491
    %2507 = vmatpush1.msra.mxu0 %v1490
    %2508 = vmatprep.subr.mxu0 %v1493
    %2509 = vmatpush1.msra.mxu0 %v1492
    %2510 = vmatprep.subr.mxu0 %v1495
    %2511 = vmatpush1.msra.mxu0 %v1494
    %2512 = vmatprep.subr.mxu0 %v1497
    %2513 = vmatpush1.msra.mxu0 %v1496
    %2514 = vmatprep.subr.mxu0 %v1499
    %2515 = vmatpush1.msra.mxu0 %v1498
    %2516 = vmatprep.subr.mxu0 %v1501
    %2517 = vmatpush1.msra.mxu0 %v1500
    %2518 = vmatprep.subr.mxu0 0.0
    %2519 = vmatpush1.msra.mxu0 0.0
    %2520 = vmatprep.subr.mxu0 0.0
    %2521 = vmatpush1.msra.mxu0 0.0
    %2522 = vmatprep.subr.mxu0 0.0
    %2523 = vmatpush1.msra.mxu0 0.0
    %2524 = vmatprep.subr.mxu0 0.0
    %2525 = vmatpush1.msra.mxu0 0.0
    %2526 = vmatprep.subr.mxu0 0.0
    %2527 = vmatpush1.msra.mxu0 0.0
    %2528 = vmatprep.subr.mxu0 0.0
    %2529 = vmatpush1.msra.mxu0 0.0
    %2530 = vmatprep.subr.mxu0 0.0
    %2531 = vmatpush1.msra.mxu0 0.0
    %2532 = vmatprep.subr.mxu0 0.0
    %2533 = vmatpush1.msra.mxu0 0.0
    %2534 = vmatprep.subr.mxu0 0.0
    %2535 = vmatpush1.msra.mxu0 0.0
    %2536 = vmatprep.subr.mxu0 0.0
    %2537 = vmatpush1.msra.mxu0 0.0
    %2538 = vmatprep.subr.mxu0 0.0
    %2539 = vmatpush1.msra.mxu0 0.0
    %2540 = vmatprep.subr.mxu0 0.0
    %2541 = vmatpush1.msra.mxu0 0.0
    %2542 = vmatprep.subr.mxu0 0.0
    %2543 = vmatpush1.msra.mxu0 0.0
    %2544 = vmatprep.subr.mxu0 0.0
    %2545 = vmatpush1.msra.mxu0 0.0
    %2546 = vmatprep.subr.mxu0 0.0
    %2547 = vmatpush1.msra.mxu0 0.0
    %2548 = vmatprep.subr.mxu0 0.0
    %2549 = vmatpush1.msra.mxu0 0.0
    %2550 = vmatprep.subr.mxu0 0.0
    %2551 = vmatpush1.msra.mxu0 0.0
    %2552 = vmatprep.subr.mxu0 0.0
    %2553 = vmatpush1.msra.mxu0 0.0
    %2554 = vmatprep.subr.mxu0 0.0
    %2555 = vmatpush1.msra.mxu0 0.0
    %2556 = vmatprep.subr.mxu0 0.0
    %2557 = vmatpush1.msra.mxu0 0.0
    %2558 = vmatprep.subr.mxu0 0.0
    %2559 = vmatpush1.msra.mxu0 0.0
    %2560 = vmatprep.subr.mxu0 0.0
    %2561 = vmatpush1.msra.mxu0 0.0
    %2562 = vmatprep.subr.mxu0 0.0
    %2563 = vmatpush1.msra.mxu0 0.0
    %2564 = vmatprep.subr.mxu0 0.0
    %2565 = vmatpush1.msra.mxu0 0.0
    %2566 = vmatprep.mubr.f32.mxu0 0.0
    %2567 = vmatmul.mubr.f32.gmra.mrb[0].mxu0 %v2500
    %v2568 = vpop.f32.mrb[0].mxu0
    %v2569 = vadd.f32 0.0, %v2568
    %v2570 = vpop.f32.mrb[0].mxu0
    %v2571 = vadd.f32 0.0, %v2570
    %2572 = vdwg.mxu0
    %v2573 = vadd.f32 %v2495, %v2569
    %v2574 = vadd.f32 %v2496, %v2571
    %v2575 = vmul.f32 %v2573, %v332
    %v2576 = vmul.f32 %v2574, %v333
    %v2577 = vtanh.pop %v2575
    %v2578 = vtanh.pop %v2576
    %v2579 = vmul.f32 %v2577, 0.5
    %v2580 = vmul.f32 %v2578, 0.5
    %v2581 = vadd.f32 %v2579, 0.5
    %v2582 = vadd.f32 %v2580, 0.5
    %v2583 = vsel %vm330, %v2577, %v2581
    %v2584 = vsel %vm331, %v2578, %v2582
    %v2585 = vmul.f32 %v2583, %v2478
    %v2586 = vmul.f32 %v2583, %v2584
    %2588 = vrot.lane.b32.xlu0 %v2586, 64
    %v2589 = vpop.permute.xlu0 %2588
    %v2591 = vadd.f32 %v2585, %v2589
    %v2592 = vtanh.pop %v2591
    %v2593 = vmul.f32 %v2584, %v2592
    %v2594 = vmul.f32 %v1376, %v2593
    %2596 = vrot.lane.b32.xlu0 %v2594, 64
    %v2597 = vpop.permute.xlu0 %2596
    %2599 = vst.msk [vmem:[#allocation3 + $0x7] sm:$0x1] %vm584, %v2597
    %2600 = vst.msk [vmem:[#allocation3 + $0xe] sm:$0x2] %vm586, %v2597
    %2601 = vst.msk [vmem:[#allocation3 - $0x2] sm:$0x4] %vm588, %v2597
    %2602 = vst.msk [vmem:[#allocation3 + $0x5] sm:$0x8] %vm590, %v2597
    %v2603 = vld [vmem:[#allocation3] sm:$0xff]
    %v2604 = vld [vmem:[#allocation3 + $0x8] sm:$0xff]
    %v2605 = vld [vmem:[#allocation15] sm:$0xff]
    %v2606 = vld [vmem:[#allocation15 + $0x8] sm:$0xff]
    %v2607 = vld [vmem:[#allocation15 + $0x10] sm:$0xff]
    %v2608 = vld [vmem:[#allocation15 + $0x18] sm:$0xff]
    %v2609 = vld [vmem:[#allocation15 + $0x20] sm:$0xff]
    %v2610 = vld [vmem:[#allocation15 + $0x28] sm:$0xff]
    %v2611 = vld [vmem:[#allocation15 + $0x30] sm:$0xff]
    %v2612 = vld [vmem:[#allocation15 + $0x38] sm:$0xff]
    %v2613 = vld [vmem:[%s9] sm:$0x1]
    %v2615 = vlaneseq
    %v2616 = vshrl.u32 %v2615, 7
    %v2617 = vsub.s32 0, %v2616
    %v2618 = vrot.slane %v2613, %v2617
    %v2621 = vsel %vm480, %v2603, 0
    %v2624 = vsel %vm480, %v2604, 0
    %2626 = vmatprep.subr.mxu0 0.0
    %2627 = vmatpush1.msra.mxu0 %v2605
    %2628 = vmatprep.subr.mxu0 0.0
    %2629 = vmatpush1.msra.mxu0 %v2606
    %2630 = vmatprep.subr.mxu0 0.0
    %2631 = vmatpush1.msra.mxu0 %v2607
    %2632 = vmatprep.subr.mxu0 0.0
    %2633 = vmatpush1.msra.mxu0 %v2608
    %2634 = vmatprep.subr.mxu0 0.0
    %2635 = vmatpush1.msra.mxu0 %v2609
    %2636 = vmatprep.subr.mxu0 0.0
    %2637 = vmatpush1.msra.mxu0 %v2610
    %2638 = vmatprep.subr.mxu0 0.0
    %2639 = vmatpush1.msra.mxu0 %v2611
    %2640 = vmatprep.subr.mxu0 0.0
    %2641 = vmatpush1.msra.mxu0 %v2612
    %2642 = vmatprep.subr.mxu0 0.0
    %2643 = vmatpush1.msra.mxu0 0.0
    %2644 = vmatprep.subr.mxu0 0.0
    %2645 = vmatpush1.msra.mxu0 0.0
    %2646 = vmatprep.subr.mxu0 0.0
    %2647 = vmatpush1.msra.mxu0 0.0
    %2648 = vmatprep.subr.mxu0 0.0
    %2649 = vmatpush1.msra.mxu0 0.0
    %2650 = vmatprep.subr.mxu0 0.0
    %2651 = vmatpush1.msra.mxu0 0.0
    %2652 = vmatprep.subr.mxu0 0.0
    %2653 = vmatpush1.msra.mxu0 0.0
    %2654 = vmatprep.subr.mxu0 0.0
    %2655 = vmatpush1.msra.mxu0 0.0
    %2656 = vmatprep.subr.mxu0 0.0
    %2657 = vmatpush1.msra.mxu0 0.0
    %2658 = vmatprep.subr.mxu0 0.0
    %2659 = vmatpush1.msra.mxu0 0.0
    %2660 = vmatprep.subr.mxu0 0.0
    %2661 = vmatpush1.msra.mxu0 0.0
    %2662 = vmatprep.subr.mxu0 0.0
    %2663 = vmatpush1.msra.mxu0 0.0
    %2664 = vmatprep.subr.mxu0 0.0
    %2665 = vmatpush1.msra.mxu0 0.0
    %2666 = vmatprep.subr.mxu0 0.0
    %2667 = vmatpush1.msra.mxu0 0.0
    %2668 = vmatprep.subr.mxu0 0.0
    %2669 = vmatpush1.msra.mxu0 0.0
    %2670 = vmatprep.subr.mxu0 0.0
    %2671 = vmatpush1.msra.mxu0 0.0
    %2672 = vmatprep.subr.mxu0 0.0
    %2673 = vmatpush1.msra.mxu0 0.0
    %2674 = vmatprep.subr.mxu0 0.0
    %2675 = vmatpush1.msra.mxu0 0.0
    %2676 = vmatprep.subr.mxu0 0.0
    %2677 = vmatpush1.msra.mxu0 0.0
    %2678 = vmatprep.subr.mxu0 0.0
    %2679 = vmatpush1.msra.mxu0 0.0
    %2680 = vmatprep.subr.mxu0 0.0
    %2681 = vmatpush1.msra.mxu0 0.0
    %2682 = vmatprep.subr.mxu0 0.0
    %2683 = vmatpush1.msra.mxu0 0.0
    %2684 = vmatprep.subr.mxu0 0.0
    %2685 = vmatpush1.msra.mxu0 0.0
    %2686 = vmatprep.subr.mxu0 0.0
    %2687 = vmatpush1.msra.mxu0 0.0
    %2688 = vmatprep.subr.mxu0 0.0
    %2689 = vmatpush1.msra.mxu0 0.0
    %2690 = vmatprep.mubr.f32.mxu0 0.0
    %2691 = vmatmul.mubr.f32.gmra.mrb[0].mxu0 %v2621
    %v2692 = vpop.f32.mrb[0].mxu0
    %v2693 = vadd.f32 %v2618, %v2692
    %v2694 = vpop.f32.mrb[0].mxu0
    %2695 = vmatprep.mubr.f32.mxu0 0.0
    %2696 = vmatmul.mubr.f32.gmra.mrb[0].mxu0 %v2624
    %v2697 = vpop.f32.mrb[0].mxu0
    %v2698 = vadd.f32 %v2618, %v2697
    %v2699 = vpop.f32.mrb[0].mxu0
    %2700 = vdwg.mxu0
    %2701 = vst [vmem:[#allocation17] sm:$0xff] %v2693
    %2702 = vst [vmem:[#allocation17 + $0x8] sm:$0xff] %v2698
    // Predicated region
    $region70: #{tpu_custom_call.1} parent=1 // pred_check
      _
    $region71: #{tpu_custom_call.1} parent=1 // pred_check_branch
      %2704 = sbr.rel (0) target = $region73
    $region72: #{tpu_custom_call.1} parent=1 // pred_region
      %s2706 = ssub.s32 256, 256
      %2707 = vsyncadd [#allocation6], %s2706
      %s2708 = sshll.u32 [#allocation16], 4
      %s2709 = int_to_ptr.vmem [resolvable:$true] %s2708
      %2714 = dma.vmem_to_hbm [thread:$0]  %s2709, 256, %s10, [#allocation6], 128, 128, 8
    $region73: #{tpu_custom_call.1} parent=1 // pred_fallthru
      _
    // Predicated region
    $region74: #{tpu_custom_call.1} parent=1 // pred_check
      _
    $region75: #{tpu_custom_call.1} parent=1 // pred_check_branch
      %2716 = sbr.rel (0) target = $region77
    $region76: #{tpu_custom_call.1} parent=1 // pred_region
      %s2718 = ssub.s32 256, 256
      %2719 = vsyncadd [#allocation18], %s2718
      %s2720 = sshll.u32 [#allocation17], 4
      %s2721 = int_to_ptr.vmem [resolvable:$true] %s2720
      %2726 = dma.vmem_to_hbm [thread:$0]  %s2721, 256, %s11, [#allocation18], 128, 128, 8
    $region77: #{tpu_custom_call.1} parent=1 // pred_fallthru
      _
    // Predicated region
    $region78: #{tpu_custom_call.1} parent=1 // pred_check
      _
    $region79: #{tpu_custom_call.1} parent=1 // pred_check_branch
      %2728 = sbr.rel (0) target = $region81
    $region80: #{tpu_custom_call.1} parent=1 // pred_region
      %2729 = dma.done [#allocation6], 256
    $region81: #{tpu_custom_call.1} parent=1 // pred_fallthru
      _
    // Predicated region
    $region82: #{tpu_custom_call.1} parent=1 // pred_check
      _
    $region83: #{tpu_custom_call.1} parent=1 // pred_check_branch
      %2731 = sbr.rel (0) target = $region85
    $region84: #{tpu_custom_call.1} parent=1 // pred_region
      %2732 = dma.done [#allocation18], 256
    $region85: #{tpu_custom_call.1} parent=1 // pred_fallthru
      _
    %2733 = vsyncpa [#allocation5], 1
    %2734 = vsyncpa [#allocation8], 1
    %2735 = vsyncpa [#allocation11], 1
    %2736 = vsyncpa [#allocation14], 1
    %2737 = vsyncpa [#allocation6], 1
    %2738 = vsyncpa [#allocation18], 1

</llo_original>
